<compile_context>
chip_gen: v7x
topology: tpu7x:2x2x1
jax: 0.10.0
libtpu: 0.0.40
codegen_flags: <defaults>
</compile_context>

<pallas_src>
import jax
import jax.numpy as jnp
from jax.experimental import pallas as pl
from jax.experimental.pallas import tpu as pltpu


def _linear_ae_kernel(x_ref,
                      w1_ref, b1_ref,
                      w2_ref, b2_ref,
                      w3_ref, b3_ref,
                      w4_ref, b4_ref,
                      out_ref):
    # Matmul inputs in bf16 (MXU fast path, halves weight bytes); accumulate
    # in f32; bias add / sigmoid epilogue stays in f32.
    x = x_ref[...].astype(jnp.bfloat16)

    # Encoder: Linear(flat -> 512), Linear(512 -> 64)   (no nonlinearity, as in the module)
    h1 = jnp.dot(x, w1_ref[...], preferred_element_type=jnp.float32) + b1_ref[...]
    z = jnp.dot(h1.astype(jnp.bfloat16), w2_ref[...],
                preferred_element_type=jnp.float32) + b2_ref[...]

    # Decoder: Linear(64 -> 512), Linear(512 -> flat), Sigmoid
    h2 = jnp.dot(z.astype(jnp.bfloat16), w3_ref[...],
                 preferred_element_type=jnp.float32) + b3_ref[...]
    logits = jnp.dot(h2.astype(jnp.bfloat16), w4_ref[...],
                     preferred_element_type=jnp.float32) + b4_ref[...]

    # sigmoid = 1 / (1 + exp(-x)); exp -> EUP, approx reciprocal -> EUP too.
    sig = pl.reciprocal(1.0 + jnp.exp(-logits), approx=True)
    out_ref[...] = sig.astype(out_ref.dtype)


def _round_up(x, m):
    return ((x + m - 1) // m) * m


def _vmem_bytes_estimate(tm, flat, hidden, latent):
    """Right-size the scoped VMEM request for this tiling (generation-aware:
    never ask for the full 64 MiB of a v7x core)."""
    bf16, f32 = 2, 4
    weights = (flat * hidden + hidden * latent + latent * hidden + hidden * flat) * bf16
    biases = (hidden + latent + hidden + flat) * f32
    io_tiles = 2 * 2 * (tm * flat * f32)            # x + out, double-buffered
    work = tm * (hidden + latent + hidden + flat) * f32  # intermediates
    total = 2 * (weights + biases) + io_tiles + work      # 2x: pipeline buffer slots
    total = int(total * 1.5) + (4 << 20)                  # headroom for compiler scratch
    return max(16 << 20, min(total, 48 << 20))


def linear_ae_forward(x_nchw, params, *, tm=None):
    """x_nchw: (B, C, H, W) float32.  Returns (B, C, H, W) float32."""
    B, C, H, W = x_nchw.shape
    flat = C * H * W
    x_flat = x_nchw.reshape(B, flat).astype(jnp.float32)

    w1, b1, w2, b2, w3, b3, w4, b4 = params
    hidden = w1.shape[1]
    latent = w2.shape[1]

    # bf16 weights (bandwidth), f32 biases (added post-accumulation).
    w1 = w1.astype(jnp.bfloat16)
    w2 = w2.astype(jnp.bfloat16)
    w3 = w3.astype(jnp.bfloat16)
    w4 = w4.astype(jnp.bfloat16)
    b1 = b1.astype(jnp.float32)
    b2 = b2.astype(jnp.float32)
    b3 = b3.astype(jnp.float32)
    b4 = b4.astype(jnp.float32)

    # Batch tile: multiple of 8 (sublane), capped at 128.  Pad batch up to a
    # multiple of TM; padded rows are computed and discarded.
    if tm is None:
        tm = 128 if B >= 128 else _round_up(B, 8)
    grid_b = pl.cdiv(B, tm)
    Bp = grid_b * tm
    if Bp != B:
        x_flat = jnp.pad(x_flat, ((0, Bp - B), (0, 0)))

    def tile_spec(shape):        # x / out: tiled along batch
        return pl.BlockSpec(shape, lambda i: (i, 0),
                            memory_space=pltpu.MemorySpace.VMEM)

    def const_spec(shape):       # weights / biases: resident, same block every step
        return pl.BlockSpec(shape, lambda i: tuple(0 for _ in shape),
                            memory_space=pltpu.MemorySpace.VMEM)

    # TODO(synk): for very large flat (>~12k on v7x), also tile w1 over K and
    # w4 over N (reduction grid axis + pl.when-gated bias/finalize) so whole
    # (flat,512)/(512,flat) weights need not be VMEM-resident.
    out_flat = pl.pallas_call(
        _linear_ae_kernel,
        out_shape=jax.ShapeDtypeStruct((Bp, flat), jnp.float32),
        grid=(grid_b,),
        in_specs=[
            tile_spec((tm, flat)),
            const_spec(w1.shape), const_spec(b1.shape),
            const_spec(w2.shape), const_spec(b2.shape),
            const_spec(w3.shape), const_spec(b3.shape),
            const_spec(w4.shape), const_spec(b4.shape),
        ],
        out_specs=tile_spec((tm, flat)),
        compiler_params=pltpu.CompilerParams(
            dimension_semantics=("parallel",),
            vmem_limit_bytes=_vmem_bytes_estimate(tm, flat, hidden, latent),
        ),
    )(x_flat, w1, b1, w2, b2, w3, b3, w4, b4)

    return out_flat[:B].reshape(B, C, H, W)


def init_params(key, flat_dim, hidden=512, latent=64):
    """Deterministic init mimicking torch.nn.Linear default U(-1/sqrt(fan_in), 1/sqrt(fan_in)).

    Weights stored (in_features, out_features); biases as (1, out_features).
    """
    dims = [(flat_dim, hidden), (hidden, latent), (latent, hidden), (hidden, flat_dim)]
    params = []
    keys = jax.random.split(key, 2 * len(dims))
    for i, (fan_in, fan_out) in enumerate(dims):
        bound = 1.0 / (fan_in ** 0.5)
        w = jax.random.uniform(keys[2 * i], (fan_in, fan_out),
                               minval=-bound, maxval=bound, dtype=jnp.float32)
        b = jax.random.uniform(keys[2 * i + 1], (1, fan_out),
                               minval=-bound, maxval=bound, dtype=jnp.float32)
        params.extend([w, b])
    return tuple(params)


if __name__ == "__main__":
    # data_dim = (H, W, channels) = (16, 16, 4)  ->  flat = 1024
    B, C, H, W = 2, 4, 16, 16
    flat_dim = C * H * W

    key = jax.random.PRNGKey(0)
    k_x, k_p = jax.random.split(key)
    x = jax.random.normal(k_x, (B, C, H, W), dtype=jnp.float32)
    params = init_params(k_p, flat_dim)

    out = linear_ae_forward(x, params)
    out = jax.block_until_ready(out)

    assert out.shape == (B, C, H, W), out.shape
    assert out.dtype == jnp.float32, out.dtype
    assert bool(jnp.all(jnp.isfinite(out)))
    assert bool(jnp.all((out >= 0.0) & (out <= 1.0)))  # sigmoid range
    print("KERNEL_OK")
</pallas_src>

<mosaic_0001>
module attributes {stable_mosaic.version = 11 : i64} {
  func.func @_linear_ae_kernel(%arg0: i32, %arg1: memref<8x1024xf32, #tpu.memory_space<vmem>>, %arg2: memref<1024x512xbf16, #tpu.memory_space<vmem>>, %arg3: memref<1x512xf32, #tpu.memory_space<vmem>>, %arg4: memref<512x64xbf16, #tpu.memory_space<vmem>>, %arg5: memref<1x64xf32, #tpu.memory_space<vmem>>, %arg6: memref<64x512xbf16, #tpu.memory_space<vmem>>, %arg7: memref<1x512xf32, #tpu.memory_space<vmem>>, %arg8: memref<512x1024xbf16, #tpu.memory_space<vmem>>, %arg9: memref<1x1024xf32, #tpu.memory_space<vmem>>, %arg10: memref<8x1024xf32, #tpu.memory_space<vmem>>) attributes {dimension_semantics = [#tpu.dimension_semantics<parallel>], iteration_bounds = array<i64: 1>, scalar_prefetch = 0 : i64, scratch_operands = 0 : i64, tpu.core_type = #tpu.core_type<tc>, window_params = [{transform_indices = @transform_0, window_bounds = array<i64: 8, 1024>}, {pipeline_mode = #tpu.pipeline_mode<synchronous>, transform_indices = @transform_1, window_bounds = array<i64: 1024, 512>}, {pipeline_mode = #tpu.pipeline_mode<synchronous>, transform_indices = @transform_2, window_bounds = array<i64: 1, 512>}, {pipeline_mode = #tpu.pipeline_mode<synchronous>, transform_indices = @transform_3, window_bounds = array<i64: 512, 64>}, {pipeline_mode = #tpu.pipeline_mode<synchronous>, transform_indices = @transform_4, window_bounds = array<i64: 1, 64>}, {pipeline_mode = #tpu.pipeline_mode<synchronous>, transform_indices = @transform_5, window_bounds = array<i64: 64, 512>}, {pipeline_mode = #tpu.pipeline_mode<synchronous>, transform_indices = @transform_6, window_bounds = array<i64: 1, 512>}, {pipeline_mode = #tpu.pipeline_mode<synchronous>, transform_indices = @transform_7, window_bounds = array<i64: 512, 1024>}, {pipeline_mode = #tpu.pipeline_mode<synchronous>, transform_indices = @transform_8, window_bounds = array<i64: 1, 1024>}, {transform_indices = @transform_9, window_bounds = array<i64: 8, 1024>}]} {
    %c0 = arith.constant 0 : index
    %c0_0 = arith.constant 0 : index
    %0 = vector.load %arg1[%c0, %c0_0] : memref<8x1024xf32, #tpu.memory_space<vmem>>, vector<8x1024xf32>
    %1 = arith.truncf %0 : vector<8x1024xf32> to vector<8x1024xbf16>
    %c0_1 = arith.constant 0 : index
    %c0_2 = arith.constant 0 : index
    %2 = vector.load %arg2[%c0_1, %c0_2] : memref<1024x512xbf16, #tpu.memory_space<vmem>>, vector<1024x512xbf16>
    %cst = arith.constant dense<0.000000e+00> : vector<8x512xf32>
    %3 = tpu.matmul %1, %2, %cst {dimension_numbers = #tpu.dot_dimension_numbers<[1], [0], [0], [1], [0, 0, 1, 1], [], []>} : vector<8x1024xbf16>, vector<1024x512xbf16>, vector<8x512xf32> -> vector<8x512xf32>
    %c0_3 = arith.constant 0 : index
    %c0_4 = arith.constant 0 : index
    %4 = vector.load %arg3[%c0_3, %c0_4] : memref<1x512xf32, #tpu.memory_space<vmem>>, vector<1x512xf32>
    %5 = vector.broadcast %4 : vector<1x512xf32> to vector<8x512xf32>
    %6 = arith.addf %3, %5 : vector<8x512xf32>
    %7 = arith.truncf %6 : vector<8x512xf32> to vector<8x512xbf16>
    %c0_5 = arith.constant 0 : index
    %c0_6 = arith.constant 0 : index
    %8 = vector.load %arg4[%c0_5, %c0_6] : memref<512x64xbf16, #tpu.memory_space<vmem>>, vector<512x64xbf16>
    %cst_7 = arith.constant dense<0.000000e+00> : vector<8x64xf32>
    %9 = tpu.matmul %7, %8, %cst_7 {dimension_numbers = #tpu.dot_dimension_numbers<[1], [0], [0], [1], [0, 0, 1, 1], [], []>} : vector<8x512xbf16>, vector<512x64xbf16>, vector<8x64xf32> -> vector<8x64xf32>
    %c0_8 = arith.constant 0 : index
    %c0_9 = arith.constant 0 : index
    %10 = vector.load %arg5[%c0_8, %c0_9] : memref<1x64xf32, #tpu.memory_space<vmem>>, vector<1x64xf32>
    %11 = vector.broadcast %10 : vector<1x64xf32> to vector<8x64xf32>
    %12 = arith.addf %9, %11 : vector<8x64xf32>
    %13 = arith.truncf %12 : vector<8x64xf32> to vector<8x64xbf16>
    %c0_10 = arith.constant 0 : index
    %c0_11 = arith.constant 0 : index
    %14 = vector.load %arg6[%c0_10, %c0_11] : memref<64x512xbf16, #tpu.memory_space<vmem>>, vector<64x512xbf16>
    %cst_12 = arith.constant dense<0.000000e+00> : vector<8x512xf32>
    %15 = tpu.matmul %13, %14, %cst_12 {dimension_numbers = #tpu.dot_dimension_numbers<[1], [0], [0], [1], [0, 0, 1, 1], [], []>} : vector<8x64xbf16>, vector<64x512xbf16>, vector<8x512xf32> -> vector<8x512xf32>
    %c0_13 = arith.constant 0 : index
    %c0_14 = arith.constant 0 : index
    %16 = vector.load %arg7[%c0_13, %c0_14] : memref<1x512xf32, #tpu.memory_space<vmem>>, vector<1x512xf32>
    %17 = vector.broadcast %16 : vector<1x512xf32> to vector<8x512xf32>
    %18 = arith.addf %15, %17 : vector<8x512xf32>
    %19 = arith.truncf %18 : vector<8x512xf32> to vector<8x512xbf16>
    %c0_15 = arith.constant 0 : index
    %c0_16 = arith.constant 0 : index
    %20 = vector.load %arg8[%c0_15, %c0_16] : memref<512x1024xbf16, #tpu.memory_space<vmem>>, vector<512x1024xbf16>
    %cst_17 = arith.constant dense<0.000000e+00> : vector<8x1024xf32>
    %21 = tpu.matmul %19, %20, %cst_17 {dimension_numbers = #tpu.dot_dimension_numbers<[1], [0], [0], [1], [0, 0, 1, 1], [], []>} : vector<8x512xbf16>, vector<512x1024xbf16>, vector<8x1024xf32> -> vector<8x1024xf32>
    %c0_18 = arith.constant 0 : index
    %c0_19 = arith.constant 0 : index
    %22 = vector.load %arg9[%c0_18, %c0_19] : memref<1x1024xf32, #tpu.memory_space<vmem>>, vector<1x1024xf32>
    %23 = vector.broadcast %22 : vector<1x1024xf32> to vector<8x1024xf32>
    %24 = arith.addf %21, %23 : vector<8x1024xf32>
    %cst_20 = arith.constant 0.000000e+00 : f32
    %25 = vector.broadcast %cst_20 : f32 to vector<8x1024xf32>
    %26 = arith.subf %25, %24 : vector<8x1024xf32>
    %27 = math.exp %26 : vector<8x1024xf32>
    %cst_21 = arith.constant 1.000000e+00 : f32
    %28 = vector.broadcast %cst_21 : f32 to vector<8x1024xf32>
    %29 = arith.addf %28, %27 : vector<8x1024xf32>
    %30 = tpu.reciprocal %29 {approx = true} : vector<8x1024xf32> -> vector<8x1024xf32>
    %c0_22 = arith.constant 0 : index
    %c0_23 = arith.constant 0 : index
    %31 = vector.load %arg10[%c0_22, %c0_23] : memref<8x1024xf32, #tpu.memory_space<vmem>>, vector<8x1024xf32>
    tpu.vector_store %arg10[%c0_22, %c0_23], %30 {strides = array<i32>} : memref<8x1024xf32, #tpu.memory_space<vmem>>, vector<8x1024xf32>,
    return
  }
  func.func @transform_0(%arg0: i32) -> (i32, i32) {
    %c0_i32 = arith.constant 0 : i32
    %c0_i32_0 = arith.constant 0 : i32
    return %arg0, %c0_i32 : i32, i32
  }
  func.func @transform_1(%arg0: i32) -> (i32, i32) {
    %c0_i32 = arith.constant 0 : i32
    %c0_i32_0 = arith.constant 0 : i32
    %c0_i32_1 = arith.constant 0 : i32
    return %c0_i32, %c0_i32_0 : i32, i32
  }
  func.func @transform_2(%arg0: i32) -> (i32, i32) {
    %c0_i32 = arith.constant 0 : i32
    %c0_i32_0 = arith.constant 0 : i32
    %c0_i32_1 = arith.constant 0 : i32
    return %c0_i32, %c0_i32_0 : i32, i32
  }
  func.func @transform_3(%arg0: i32) -> (i32, i32) {
    %c0_i32 = arith.constant 0 : i32
    %c0_i32_0 = arith.constant 0 : i32
    %c0_i32_1 = arith.constant 0 : i32
    return %c0_i32, %c0_i32_0 : i32, i32
  }
  func.func @transform_4(%arg0: i32) -> (i32, i32) {
    %c0_i32 = arith.constant 0 : i32
    %c0_i32_0 = arith.constant 0 : i32
    %c0_i32_1 = arith.constant 0 : i32
    return %c0_i32, %c0_i32_0 : i32, i32
  }
  func.func @transform_5(%arg0: i32) -> (i32, i32) {
    %c0_i32 = arith.constant 0 : i32
    %c0_i32_0 = arith.constant 0 : i32
    %c0_i32_1 = arith.constant 0 : i32
    return %c0_i32, %c0_i32_0 : i32, i32
  }
  func.func @transform_6(%arg0: i32) -> (i32, i32) {
    %c0_i32 = arith.constant 0 : i32
    %c0_i32_0 = arith.constant 0 : i32
    %c0_i32_1 = arith.constant 0 : i32
    return %c0_i32, %c0_i32_0 : i32, i32
  }
  func.func @transform_7(%arg0: i32) -> (i32, i32) {
    %c0_i32 = arith.constant 0 : i32
    %c0_i32_0 = arith.constant 0 : i32
    %c0_i32_1 = arith.constant 0 : i32
    return %c0_i32, %c0_i32_0 : i32, i32
  }
  func.func @transform_8(%arg0: i32) -> (i32, i32) {
    %c0_i32 = arith.constant 0 : i32
    %c0_i32_0 = arith.constant 0 : i32
    %c0_i32_1 = arith.constant 0 : i32
    return %c0_i32, %c0_i32_0 : i32, i32
  }
  func.func @transform_9(%arg0: i32) -> (i32, i32) {
    %c0_i32 = arith.constant 0 : i32
    %c0_i32_0 = arith.constant 0 : i32
    return %arg0, %c0_i32 : i32, i32
  }
}

</mosaic_0001>

<llo_original>
// kernel: tpu_custom_call.1
$region0: #{tpu_custom_call.1}
  #allocation0 [shape = 'u32[]', space=smem, size = 0x4, offset = 0x4, fixed_abs, tag = 'smem constant byte address 0x4 - core index']
  #allocation1 [shape = 'u32[144,128]{1,0:T(1,128)}', space=vmem, size = 0x12000, scoped, tag = 'internal scratch']
  %s0 = inlined_call_operand.vmem [shape: f32[8,1024], index: 0, kind: input, shape index: {}]
  %s1 = inlined_call_operand.hbm [shape: bf16[1024,512], index: 1, kind: input, shape index: {}]
  %s2 = inlined_call_operand.vmem [shape: f32[1,512], index: 2, kind: input, shape index: {}]
  %s3 = inlined_call_operand.vmem [shape: bf16[512,64], index: 3, kind: input, shape index: {}]
  %s4 = inlined_call_operand.vmem [shape: f32[1,64], index: 4, kind: input, shape index: {}]
  %s5 = inlined_call_operand.vmem [shape: bf16[64,512], index: 5, kind: input, shape index: {}]
  %s6 = inlined_call_operand.vmem [shape: f32[1,512], index: 6, kind: input, shape index: {}]
  %s7 = inlined_call_operand.hbm [shape: bf16[512,1024], index: 7, kind: input, shape index: {}]
  %s8 = inlined_call_operand.vmem [shape: f32[1,1024], index: 8, kind: input, shape index: {}]
  %s9 = inlined_call_operand.hbm [shape: f32[8,1024], index: 9, kind: output, shape index: {}]
  %s10 = sld [smem:[#allocation0]]
  $region54: #{tpu_custom_call.1} parent=0
    _
  %s12 = ssub.s32 1, %s10
  %s13 = scalar_select 0, %s12, %s10
  $region1: #{tpu_custom_call.1} parent=0
    #allocation2 [shape = 'u8[1048576]{0}', space=vmem, size = 0x100000, scoped, tag = 'input window, operand 1, single buffered']
    #allocation3 [shape = 's32[1]{0}', space=sflag, size = 0x4, scoped, tag = 'scoped memory for tpu_custom_call.1']
    #allocation4 [shape = 's32[1]{0}', space=sflag, size = 0x4, scoped, tag = 'scoped memory for tpu_custom_call.1']
    #allocation5 [shape = 'u8[1048576]{0}', space=vmem, size = 0x100000, scoped, tag = 'input window, operand 7, single buffered']
    #allocation6 [shape = 's32[1]{0}', space=sflag, size = 0x4, scoped, tag = 'scoped memory for tpu_custom_call.1']
    #allocation7 [shape = 'u8[32768]{0}', space=vmem, size = 0x8000, scoped, tag = 'output window, operand 0, single buffered']
    %14 = vsyncpa [#allocation3], 0
    %15 = vsyncpa [#allocation6], 0
    %16 = vsyncpa [#allocation4], 0
    // Predicated region
    $region2: #{tpu_custom_call.1} parent=1 // pred_check
      _
    $region3: #{tpu_custom_call.1} parent=1 // pred_check_branch
      %18 = sbr.rel (0) target = $region5
    $region4: #{tpu_custom_call.1} parent=1 // pred_region
      _
    $region5: #{tpu_custom_call.1} parent=1 // pred_fallthru
      _
    // Predicated region
    $region6: #{tpu_custom_call.1} parent=1 // pred_check
      _
    $region7: #{tpu_custom_call.1} parent=1 // pred_check_branch
      %20 = sbr.rel (0) target = $region9
    $region8: #{tpu_custom_call.1} parent=1 // pred_region
      %s22 = ssub.s32 32768, 32768
      %23 = vsyncadd [#allocation3], %s22
      %s24 = sshll.u32 [#allocation2], 4
      %s25 = int_to_ptr.vmem [resolvable:$true] %s24
      %30 = dma.hbm_to_vmem [thread:$0]  %s1, 32768, %s25, [#allocation3], 256, 256, 16
    $region9: #{tpu_custom_call.1} parent=1 // pred_fallthru
      _
    // Predicated region
    $region10: #{tpu_custom_call.1} parent=1 // pred_check
      _
    $region11: #{tpu_custom_call.1} parent=1 // pred_check_branch
      %32 = sbr.rel (0) target = $region13
    $region12: #{tpu_custom_call.1} parent=1 // pred_region
      _
    $region13: #{tpu_custom_call.1} parent=1 // pred_fallthru
      _
    // Predicated region
    $region14: #{tpu_custom_call.1} parent=1 // pred_check
      _
    $region15: #{tpu_custom_call.1} parent=1 // pred_check_branch
      %34 = sbr.rel (0) target = $region17
    $region16: #{tpu_custom_call.1} parent=1 // pred_region
      _
    $region17: #{tpu_custom_call.1} parent=1 // pred_fallthru
      _
    // Predicated region
    $region18: #{tpu_custom_call.1} parent=1 // pred_check
      _
    $region19: #{tpu_custom_call.1} parent=1 // pred_check_branch
      %36 = sbr.rel (0) target = $region21
    $region20: #{tpu_custom_call.1} parent=1 // pred_region
      _
    $region21: #{tpu_custom_call.1} parent=1 // pred_fallthru
      _
    // Predicated region
    $region22: #{tpu_custom_call.1} parent=1 // pred_check
      _
    $region23: #{tpu_custom_call.1} parent=1 // pred_check_branch
      %38 = sbr.rel (0) target = $region25
    $region24: #{tpu_custom_call.1} parent=1 // pred_region
      _
    $region25: #{tpu_custom_call.1} parent=1 // pred_fallthru
      _
    // Predicated region
    $region26: #{tpu_custom_call.1} parent=1 // pred_check
      _
    $region27: #{tpu_custom_call.1} parent=1 // pred_check_branch
      %40 = sbr.rel (0) target = $region29
    $region28: #{tpu_custom_call.1} parent=1 // pred_region
      _
    $region29: #{tpu_custom_call.1} parent=1 // pred_fallthru
      _
    // Predicated region
    $region30: #{tpu_custom_call.1} parent=1 // pred_check
      _
    $region31: #{tpu_custom_call.1} parent=1 // pred_check_branch
      %42 = sbr.rel (0) target = $region33
    $region32: #{tpu_custom_call.1} parent=1 // pred_region
      %s44 = ssub.s32 32768, 32768
      %45 = vsyncadd [#allocation6], %s44
      %s46 = sshll.u32 [#allocation5], 4
      %s47 = int_to_ptr.vmem [resolvable:$true] %s46
      %52 = dma.hbm_to_vmem [thread:$0]  %s7, 32768, %s47, [#allocation6], 512, 512, 32
    $region33: #{tpu_custom_call.1} parent=1 // pred_fallthru
      _
    // Predicated region
    $region34: #{tpu_custom_call.1} parent=1 // pred_check
      _
    $region35: #{tpu_custom_call.1} parent=1 // pred_check_branch
      %54 = sbr.rel (0) target = $region37
    $region36: #{tpu_custom_call.1} parent=1 // pred_region
      _
    $region37: #{tpu_custom_call.1} parent=1 // pred_fallthru
      _
    // Predicated region
    $region38: #{tpu_custom_call.1} parent=1 // pred_check
      _
    $region39: #{tpu_custom_call.1} parent=1 // pred_check_branch
      %56 = sbr.rel (0) target = $region41
    $region40: #{tpu_custom_call.1} parent=1 // pred_region
      %57 = dma.done [#allocation3], 32768
    $region41: #{tpu_custom_call.1} parent=1 // pred_fallthru
      _
    // Predicated region
    $region42: #{tpu_custom_call.1} parent=1 // pred_check
      _
    $region43: #{tpu_custom_call.1} parent=1 // pred_check_branch
      %59 = sbr.rel (0) target = $region45
    $region44: #{tpu_custom_call.1} parent=1 // pred_region
      %60 = dma.done [#allocation6], 32768
    $region45: #{tpu_custom_call.1} parent=1 // pred_fallthru
      _
    %v62 = vld [vmem:[%s0] sm:$0xff]
    %v63 = vld [vmem:[%s0 + $0x8] sm:$0xff]
    %v64 = vld [vmem:[%s0 + $0x10] sm:$0xff]
    %v65 = vld [vmem:[%s0 + $0x18] sm:$0xff]
    %v66 = vld [vmem:[%s0 + $0x20] sm:$0xff]
    %v67 = vld [vmem:[%s0 + $0x28] sm:$0xff]
    %v68 = vld [vmem:[%s0 + $0x30] sm:$0xff]
    %v69 = vld [vmem:[%s0 + $0x38] sm:$0xff]
    %v70 = vpack.c.bf16 %v62, %v62
    %v71 = vpack.c.bf16 %v63, %v63
    %v72 = vpack.c.bf16 %v64, %v64
    %v73 = vpack.c.bf16 %v65, %v65
    %v74 = vpack.c.bf16 %v66, %v66
    %v75 = vpack.c.bf16 %v67, %v67
    %v76 = vpack.c.bf16 %v68, %v68
    %v77 = vpack.c.bf16 %v69, %v69
    %v78 = vld [vmem:[#allocation2] sm:$0xff]
    %v79 = vld [vmem:[#allocation2 + $0x8] sm:$0xff]
    %v80 = vld [vmem:[#allocation2 + $0x10] sm:$0xff]
    %v81 = vld [vmem:[#allocation2 + $0x18] sm:$0xff]
    %v82 = vld [vmem:[#allocation2 + $0x20] sm:$0xff]
    %v83 = vld [vmem:[#allocation2 + $0x28] sm:$0xff]
    %v84 = vld [vmem:[#allocation2 + $0x30] sm:$0xff]
    %v85 = vld [vmem:[#allocation2 + $0x38] sm:$0xff]
    %v86 = vld [vmem:[#allocation2 + $0x40] sm:$0xff]
    %v87 = vld [vmem:[#allocation2 + $0x48] sm:$0xff]
    %v88 = vld [vmem:[#allocation2 + $0x50] sm:$0xff]
    %v89 = vld [vmem:[#allocation2 + $0x58] sm:$0xff]
    %v90 = vld [vmem:[#allocation2 + $0x60] sm:$0xff]
    %v91 = vld [vmem:[#allocation2 + $0x68] sm:$0xff]
    %v92 = vld [vmem:[#allocation2 + $0x70] sm:$0xff]
    %v93 = vld [vmem:[#allocation2 + $0x78] sm:$0xff]
    %v94 = vld [vmem:[#allocation2 + $0x80] sm:$0xff]
    %v95 = vld [vmem:[#allocation2 + $0x88] sm:$0xff]
    %v96 = vld [vmem:[#allocation2 + $0x90] sm:$0xff]
    %v97 = vld [vmem:[#allocation2 + $0x98] sm:$0xff]
    %v98 = vld [vmem:[#allocation2 + $0xa0] sm:$0xff]
    %v99 = vld [vmem:[#allocation2 + $0xa8] sm:$0xff]
    %v100 = vld [vmem:[#allocation2 + $0xb0] sm:$0xff]
    %v101 = vld [vmem:[#allocation2 + $0xb8] sm:$0xff]
    %v102 = vld [vmem:[#allocation2 + $0xc0] sm:$0xff]
    %v103 = vld [vmem:[#allocation2 + $0xc8] sm:$0xff]
    %v104 = vld [vmem:[#allocation2 + $0xd0] sm:$0xff]
    %v105 = vld [vmem:[#allocation2 + $0xd8] sm:$0xff]
    %v106 = vld [vmem:[#allocation2 + $0xe0] sm:$0xff]
    %v107 = vld [vmem:[#allocation2 + $0xe8] sm:$0xff]
    %v108 = vld [vmem:[#allocation2 + $0xf0] sm:$0xff]
    %v109 = vld [vmem:[#allocation2 + $0xf8] sm:$0xff]
    %v110 = vld [vmem:[#allocation2 + $0x100] sm:$0xff]
    %v111 = vld [vmem:[#allocation2 + $0x108] sm:$0xff]
    %v112 = vld [vmem:[#allocation2 + $0x110] sm:$0xff]
    %v113 = vld [vmem:[#allocation2 + $0x118] sm:$0xff]
    %v114 = vld [vmem:[#allocation2 + $0x120] sm:$0xff]
    %v115 = vld [vmem:[#allocation2 + $0x128] sm:$0xff]
    %v116 = vld [vmem:[#allocation2 + $0x130] sm:$0xff]
    %v117 = vld [vmem:[#allocation2 + $0x138] sm:$0xff]
    %v118 = vld [vmem:[#allocation2 + $0x140] sm:$0xff]
    %v119 = vld [vmem:[#allocation2 + $0x148] sm:$0xff]
    %v120 = vld [vmem:[#allocation2 + $0x150] sm:$0xff]
    %v121 = vld [vmem:[#allocation2 + $0x158] sm:$0xff]
    %v122 = vld [vmem:[#allocation2 + $0x160] sm:$0xff]
    %v123 = vld [vmem:[#allocation2 + $0x168] sm:$0xff]
    %v124 = vld [vmem:[#allocation2 + $0x170] sm:$0xff]
    %v125 = vld [vmem:[#allocation2 + $0x178] sm:$0xff]
    %v126 = vld [vmem:[#allocation2 + $0x180] sm:$0xff]
    %v127 = vld [vmem:[#allocation2 + $0x188] sm:$0xff]
    %v128 = vld [vmem:[#allocation2 + $0x190] sm:$0xff]
    %v129 = vld [vmem:[#allocation2 + $0x198] sm:$0xff]
    %v130 = vld [vmem:[#allocation2 + $0x1a0] sm:$0xff]
    %v131 = vld [vmem:[#allocation2 + $0x1a8] sm:$0xff]
    %v132 = vld [vmem:[#allocation2 + $0x1b0] sm:$0xff]
    %v133 = vld [vmem:[#allocation2 + $0x1b8] sm:$0xff]
    %v134 = vld [vmem:[#allocation2 + $0x1c0] sm:$0xff]
    %v135 = vld [vmem:[#allocation2 + $0x1c8] sm:$0xff]
    %v136 = vld [vmem:[#allocation2 + $0x1d0] sm:$0xff]
    %v137 = vld [vmem:[#allocation2 + $0x1d8] sm:$0xff]
    %v138 = vld [vmem:[#allocation2 + $0x1e0] sm:$0xff]
    %v139 = vld [vmem:[#allocation2 + $0x1e8] sm:$0xff]
    %v140 = vld [vmem:[#allocation2 + $0x1f0] sm:$0xff]
    %v141 = vld [vmem:[#allocation2 + $0x1f8] sm:$0xff]
    %v142 = vld [vmem:[#allocation2 + $0x200] sm:$0xff]
    %v143 = vld [vmem:[#allocation2 + $0x208] sm:$0xff]
    %v144 = vld [vmem:[#allocation2 + $0x210] sm:$0xff]
    %v145 = vld [vmem:[#allocation2 + $0x218] sm:$0xff]
    %v146 = vld [vmem:[#allocation2 + $0x220] sm:$0xff]
    %v147 = vld [vmem:[#allocation2 + $0x228] sm:$0xff]
    %v148 = vld [vmem:[#allocation2 + $0x230] sm:$0xff]
    %v149 = vld [vmem:[#allocation2 + $0x238] sm:$0xff]
    %v150 = vld [vmem:[#allocation2 + $0x240] sm:$0xff]
    %v151 = vld [vmem:[#allocation2 + $0x248] sm:$0xff]
    %v152 = vld [vmem:[#allocation2 + $0x250] sm:$0xff]
    %v153 = vld [vmem:[#allocation2 + $0x258] sm:$0xff]
    %v154 = vld [vmem:[#allocation2 + $0x260] sm:$0xff]
    %v155 = vld [vmem:[#allocation2 + $0x268] sm:$0xff]
    %v156 = vld [vmem:[#allocation2 + $0x270] sm:$0xff]
    %v157 = vld [vmem:[#allocation2 + $0x278] sm:$0xff]
    %v158 = vld [vmem:[#allocation2 + $0x280] sm:$0xff]
    %v159 = vld [vmem:[#allocation2 + $0x288] sm:$0xff]
    %v160 = vld [vmem:[#allocation2 + $0x290] sm:$0xff]
    %v161 = vld [vmem:[#allocation2 + $0x298] sm:$0xff]
    %v162 = vld [vmem:[#allocation2 + $0x2a0] sm:$0xff]
    %v163 = vld [vmem:[#allocation2 + $0x2a8] sm:$0xff]
    %v164 = vld [vmem:[#allocation2 + $0x2b0] sm:$0xff]
    %v165 = vld [vmem:[#allocation2 + $0x2b8] sm:$0xff]
    %v166 = vld [vmem:[#allocation2 + $0x2c0] sm:$0xff]
    %v167 = vld [vmem:[#allocation2 + $0x2c8] sm:$0xff]
    %v168 = vld [vmem:[#allocation2 + $0x2d0] sm:$0xff]
    %v169 = vld [vmem:[#allocation2 + $0x2d8] sm:$0xff]
    %v170 = vld [vmem:[#allocation2 + $0x2e0] sm:$0xff]
    %v171 = vld [vmem:[#allocation2 + $0x2e8] sm:$0xff]
    %v172 = vld [vmem:[#allocation2 + $0x2f0] sm:$0xff]
    %v173 = vld [vmem:[#allocation2 + $0x2f8] sm:$0xff]
    %v174 = vld [vmem:[#allocation2 + $0x300] sm:$0xff]
    %v175 = vld [vmem:[#allocation2 + $0x308] sm:$0xff]
    %v176 = vld [vmem:[#allocation2 + $0x310] sm:$0xff]
    %v177 = vld [vmem:[#allocation2 + $0x318] sm:$0xff]
    %v178 = vld [vmem:[#allocation2 + $0x320] sm:$0xff]
    %v179 = vld [vmem:[#allocation2 + $0x328] sm:$0xff]
    %v180 = vld [vmem:[#allocation2 + $0x330] sm:$0xff]
    %v181 = vld [vmem:[#allocation2 + $0x338] sm:$0xff]
    %v182 = vld [vmem:[#allocation2 + $0x340] sm:$0xff]
    %v183 = vld [vmem:[#allocation2 + $0x348] sm:$0xff]
    %v184 = vld [vmem:[#allocation2 + $0x350] sm:$0xff]
    %v185 = vld [vmem:[#allocation2 + $0x358] sm:$0xff]
    %v186 = vld [vmem:[#allocation2 + $0x360] sm:$0xff]
    %v187 = vld [vmem:[#allocation2 + $0x368] sm:$0xff]
    %v188 = vld [vmem:[#allocation2 + $0x370] sm:$0xff]
    %v189 = vld [vmem:[#allocation2 + $0x378] sm:$0xff]
    %v190 = vld [vmem:[#allocation2 + $0x380] sm:$0xff]
    %v191 = vld [vmem:[#allocation2 + $0x388] sm:$0xff]
    %v192 = vld [vmem:[#allocation2 + $0x390] sm:$0xff]
    %v193 = vld [vmem:[#allocation2 + $0x398] sm:$0xff]
    %v194 = vld [vmem:[#allocation2 + $0x3a0] sm:$0xff]
    %v195 = vld [vmem:[#allocation2 + $0x3a8] sm:$0xff]
    %v196 = vld [vmem:[#allocation2 + $0x3b0] sm:$0xff]
    %v197 = vld [vmem:[#allocation2 + $0x3b8] sm:$0xff]
    %v198 = vld [vmem:[#allocation2 + $0x3c0] sm:$0xff]
    %v199 = vld [vmem:[#allocation2 + $0x3c8] sm:$0xff]
    %v200 = vld [vmem:[#allocation2 + $0x3d0] sm:$0xff]
    %v201 = vld [vmem:[#allocation2 + $0x3d8] sm:$0xff]
    %v202 = vld [vmem:[#allocation2 + $0x3e0] sm:$0xff]
    %v203 = vld [vmem:[#allocation2 + $0x3e8] sm:$0xff]
    %v204 = vld [vmem:[#allocation2 + $0x3f0] sm:$0xff]
    %v205 = vld [vmem:[#allocation2 + $0x3f8] sm:$0xff]
    %v206 = vld [vmem:[#allocation2 + $0x400] sm:$0xff]
    %v207 = vld [vmem:[#allocation2 + $0x408] sm:$0xff]
    %v208 = vld [vmem:[#allocation2 + $0x410] sm:$0xff]
    %v209 = vld [vmem:[#allocation2 + $0x418] sm:$0xff]
    %v210 = vld [vmem:[#allocation2 + $0x420] sm:$0xff]
    %v211 = vld [vmem:[#allocation2 + $0x428] sm:$0xff]
    %v212 = vld [vmem:[#allocation2 + $0x430] sm:$0xff]
    %v213 = vld [vmem:[#allocation2 + $0x438] sm:$0xff]
    %v214 = vld [vmem:[#allocation2 + $0x440] sm:$0xff]
    %v215 = vld [vmem:[#allocation2 + $0x448] sm:$0xff]
    %v216 = vld [vmem:[#allocation2 + $0x450] sm:$0xff]
    %v217 = vld [vmem:[#allocation2 + $0x458] sm:$0xff]
    %v218 = vld [vmem:[#allocation2 + $0x460] sm:$0xff]
    %v219 = vld [vmem:[#allocation2 + $0x468] sm:$0xff]
    %v220 = vld [vmem:[#allocation2 + $0x470] sm:$0xff]
    %v221 = vld [vmem:[#allocation2 + $0x478] sm:$0xff]
    %v222 = vld [vmem:[#allocation2 + $0x480] sm:$0xff]
    %v223 = vld [vmem:[#allocation2 + $0x488] sm:$0xff]
    %v224 = vld [vmem:[#allocation2 + $0x490] sm:$0xff]
    %v225 = vld [vmem:[#allocation2 + $0x498] sm:$0xff]
    %v226 = vld [vmem:[#allocation2 + $0x4a0] sm:$0xff]
    %v227 = vld [vmem:[#allocation2 + $0x4a8] sm:$0xff]
    %v228 = vld [vmem:[#allocation2 + $0x4b0] sm:$0xff]
    %v229 = vld [vmem:[#allocation2 + $0x4b8] sm:$0xff]
    %v230 = vld [vmem:[#allocation2 + $0x4c0] sm:$0xff]
    %v231 = vld [vmem:[#allocation2 + $0x4c8] sm:$0xff]
    %v232 = vld [vmem:[#allocation2 + $0x4d0] sm:$0xff]
    %v233 = vld [vmem:[#allocation2 + $0x4d8] sm:$0xff]
    %v234 = vld [vmem:[#allocation2 + $0x4e0] sm:$0xff]
    %v235 = vld [vmem:[#allocation2 + $0x4e8] sm:$0xff]
    %v236 = vld [vmem:[#allocation2 + $0x4f0] sm:$0xff]
    %v237 = vld [vmem:[#allocation2 + $0x4f8] sm:$0xff]
    %v238 = vld [vmem:[#allocation2 + $0x500] sm:$0xff]
    %v239 = vld [vmem:[#allocation2 + $0x508] sm:$0xff]
    %v240 = vld [vmem:[#allocation2 + $0x510] sm:$0xff]
    %v241 = vld [vmem:[#allocation2 + $0x518] sm:$0xff]
    %v242 = vld [vmem:[#allocation2 + $0x520] sm:$0xff]
    %v243 = vld [vmem:[#allocation2 + $0x528] sm:$0xff]
    %v244 = vld [vmem:[#allocation2 + $0x530] sm:$0xff]
    %v245 = vld [vmem:[#allocation2 + $0x538] sm:$0xff]
    %v246 = vld [vmem:[#allocation2 + $0x540] sm:$0xff]
    %v247 = vld [vmem:[#allocation2 + $0x548] sm:$0xff]
    %v248 = vld [vmem:[#allocation2 + $0x550] sm:$0xff]
    %v249 = vld [vmem:[#allocation2 + $0x558] sm:$0xff]
    %v250 = vld [vmem:[#allocation2 + $0x560] sm:$0xff]
    %v251 = vld [vmem:[#allocation2 + $0x568] sm:$0xff]
    %v252 = vld [vmem:[#allocation2 + $0x570] sm:$0xff]
    %v253 = vld [vmem:[#allocation2 + $0x578] sm:$0xff]
    %v254 = vld [vmem:[#allocation2 + $0x580] sm:$0xff]
    %v255 = vld [vmem:[#allocation2 + $0x588] sm:$0xff]
    %v256 = vld [vmem:[#allocation2 + $0x590] sm:$0xff]
    %v257 = vld [vmem:[#allocation2 + $0x598] sm:$0xff]
    %v258 = vld [vmem:[#allocation2 + $0x5a0] sm:$0xff]
    %v259 = vld [vmem:[#allocation2 + $0x5a8] sm:$0xff]
    %v260 = vld [vmem:[#allocation2 + $0x5b0] sm:$0xff]
    %v261 = vld [vmem:[#allocation2 + $0x5b8] sm:$0xff]
    %v262 = vld [vmem:[#allocation2 + $0x5c0] sm:$0xff]
    %v263 = vld [vmem:[#allocation2 + $0x5c8] sm:$0xff]
    %v264 = vld [vmem:[#allocation2 + $0x5d0] sm:$0xff]
    %v265 = vld [vmem:[#allocation2 + $0x5d8] sm:$0xff]
    %v266 = vld [vmem:[#allocation2 + $0x5e0] sm:$0xff]
    %v267 = vld [vmem:[#allocation2 + $0x5e8] sm:$0xff]
    %v268 = vld [vmem:[#allocation2 + $0x5f0] sm:$0xff]
    %v269 = vld [vmem:[#allocation2 + $0x5f8] sm:$0xff]
    %v270 = vld [vmem:[#allocation2 + $0x600] sm:$0xff]
    %v271 = vld [vmem:[#allocation2 + $0x608] sm:$0xff]
    %v272 = vld [vmem:[#allocation2 + $0x610] sm:$0xff]
    %v273 = vld [vmem:[#allocation2 + $0x618] sm:$0xff]
    %v274 = vld [vmem:[#allocation2 + $0x620] sm:$0xff]
    %v275 = vld [vmem:[#allocation2 + $0x628] sm:$0xff]
    %v276 = vld [vmem:[#allocation2 + $0x630] sm:$0xff]
    %v277 = vld [vmem:[#allocation2 + $0x638] sm:$0xff]
    %v278 = vld [vmem:[#allocation2 + $0x640] sm:$0xff]
    %v279 = vld [vmem:[#allocation2 + $0x648] sm:$0xff]
    %v280 = vld [vmem:[#allocation2 + $0x650] sm:$0xff]
    %v281 = vld [vmem:[#allocation2 + $0x658] sm:$0xff]
    %v282 = vld [vmem:[#allocation2 + $0x660] sm:$0xff]
    %v283 = vld [vmem:[#allocation2 + $0x668] sm:$0xff]
    %v284 = vld [vmem:[#allocation2 + $0x670] sm:$0xff]
    %v285 = vld [vmem:[#allocation2 + $0x678] sm:$0xff]
    %v286 = vld [vmem:[#allocation2 + $0x680] sm:$0xff]
    %v287 = vld [vmem:[#allocation2 + $0x688] sm:$0xff]
    %v288 = vld [vmem:[#allocation2 + $0x690] sm:$0xff]
    %v289 = vld [vmem:[#allocation2 + $0x698] sm:$0xff]
    %v290 = vld [vmem:[#allocation2 + $0x6a0] sm:$0xff]
    %v291 = vld [vmem:[#allocation2 + $0x6a8] sm:$0xff]
    %v292 = vld [vmem:[#allocation2 + $0x6b0] sm:$0xff]
    %v293 = vld [vmem:[#allocation2 + $0x6b8] sm:$0xff]
    %v294 = vld [vmem:[#allocation2 + $0x6c0] sm:$0xff]
    %v295 = vld [vmem:[#allocation2 + $0x6c8] sm:$0xff]
    %v296 = vld [vmem:[#allocation2 + $0x6d0] sm:$0xff]
    %v297 = vld [vmem:[#allocation2 + $0x6d8] sm:$0xff]
    %v298 = vld [vmem:[#allocation2 + $0x6e0] sm:$0xff]
    %v299 = vld [vmem:[#allocation2 + $0x6e8] sm:$0xff]
    %v300 = vld [vmem:[#allocation2 + $0x6f0] sm:$0xff]
    %v301 = vld [vmem:[#allocation2 + $0x6f8] sm:$0xff]
    %v302 = vld [vmem:[#allocation2 + $0x700] sm:$0xff]
    %v303 = vld [vmem:[#allocation2 + $0x708] sm:$0xff]
    %v304 = vld [vmem:[#allocation2 + $0x710] sm:$0xff]
    %v305 = vld [vmem:[#allocation2 + $0x718] sm:$0xff]
    %v306 = vld [vmem:[#allocation2 + $0x720] sm:$0xff]
    %v307 = vld [vmem:[#allocation2 + $0x728] sm:$0xff]
    %v308 = vld [vmem:[#allocation2 + $0x730] sm:$0xff]
    %v309 = vld [vmem:[#allocation2 + $0x738] sm:$0xff]
    %v310 = vld [vmem:[#allocation2 + $0x740] sm:$0xff]
    %v311 = vld [vmem:[#allocation2 + $0x748] sm:$0xff]
    %v312 = vld [vmem:[#allocation2 + $0x750] sm:$0xff]
    %v313 = vld [vmem:[#allocation2 + $0x758] sm:$0xff]
    %v314 = vld [vmem:[#allocation2 + $0x760] sm:$0xff]
    %v315 = vld [vmem:[#allocation2 + $0x768] sm:$0xff]
    %v316 = vld [vmem:[#allocation2 + $0x770] sm:$0xff]
    %v317 = vld [vmem:[#allocation2 + $0x778] sm:$0xff]
    %v318 = vld [vmem:[#allocation2 + $0x780] sm:$0xff]
    %v319 = vld [vmem:[#allocation2 + $0x788] sm:$0xff]
    %v320 = vld [vmem:[#allocation2 + $0x790] sm:$0xff]
    %v321 = vld [vmem:[#allocation2 + $0x798] sm:$0xff]
    %v322 = vld [vmem:[#allocation2 + $0x7a0] sm:$0xff]
    %v323 = vld [vmem:[#allocation2 + $0x7a8] sm:$0xff]
    %v324 = vld [vmem:[#allocation2 + $0x7b0] sm:$0xff]
    %v325 = vld [vmem:[#allocation2 + $0x7b8] sm:$0xff]
    %v326 = vld [vmem:[#allocation2 + $0x7c0] sm:$0xff]
    %v327 = vld [vmem:[#allocation2 + $0x7c8] sm:$0xff]
    %v328 = vld [vmem:[#allocation2 + $0x7d0] sm:$0xff]
    %v329 = vld [vmem:[#allocation2 + $0x7d8] sm:$0xff]
    %v330 = vld [vmem:[#allocation2 + $0x7e0] sm:$0xff]
    %v331 = vld [vmem:[#allocation2 + $0x7e8] sm:$0xff]
    %v332 = vld [vmem:[#allocation2 + $0x7f0] sm:$0xff]
    %v333 = vld [vmem:[#allocation2 + $0x7f8] sm:$0xff]
    %v334 = vld [vmem:[%s2] sm:$0xf]
    %v336 = vlaneseq
    %v337 = vshrl.u32 %v336, 7
    %v338 = vsub.s32 0, %v337
    %v339 = vrot.slane %v334, %v338
    %v340 = vlaneseq
    %v341 = vshrl.u32 %v340, 7
    %v342 = vsub.s32 1, %v341
    %v343 = vrot.slane %v334, %v342
    %v344 = vlaneseq
    %v345 = vshrl.u32 %v344, 7
    %v346 = vsub.s32 2, %v345
    %v347 = vrot.slane %v334, %v346
    %v348 = vlaneseq
    %v349 = vshrl.u32 %v348, 7
    %v350 = vsub.s32 3, %v349
    %v351 = vrot.slane %v334, %v350
    %v612 = vunpack.c.l.b16 %v78
    %v613 = vunpack.c.h.b16 %v78
    %v614 = vunpack.c.l.b16 %v79
    %v615 = vunpack.c.h.b16 %v79
    %v616 = vunpack.c.l.b16 %v80
    %v617 = vunpack.c.h.b16 %v80
    %v618 = vunpack.c.l.b16 %v81
    %v619 = vunpack.c.h.b16 %v81
    %v620 = vunpack.c.l.b16 %v82
    %v621 = vunpack.c.h.b16 %v82
    %v622 = vunpack.c.l.b16 %v83
    %v623 = vunpack.c.h.b16 %v83
    %v624 = vunpack.c.l.b16 %v84
    %v625 = vunpack.c.h.b16 %v84
    %v626 = vunpack.c.l.b16 %v85
    %v627 = vunpack.c.h.b16 %v85
    %v628 = vunpack.c.l.b16 %v86
    %v629 = vunpack.c.h.b16 %v86
    %v630 = vunpack.c.l.b16 %v87
    %v631 = vunpack.c.h.b16 %v87
    %v632 = vunpack.c.l.b16 %v88
    %v633 = vunpack.c.h.b16 %v88
    %v634 = vunpack.c.l.b16 %v89
    %v635 = vunpack.c.h.b16 %v89
    %v636 = vunpack.c.l.b16 %v90
    %v637 = vunpack.c.h.b16 %v90
    %v638 = vunpack.c.l.b16 %v91
    %v639 = vunpack.c.h.b16 %v91
    %v640 = vunpack.c.l.b16 %v92
    %v641 = vunpack.c.h.b16 %v92
    %v642 = vunpack.c.l.b16 %v93
    %v643 = vunpack.c.h.b16 %v93
    %v644 = vunpack.c.l.b16 %v94
    %v645 = vunpack.c.h.b16 %v94
    %v646 = vunpack.c.l.b16 %v95
    %v647 = vunpack.c.h.b16 %v95
    %v648 = vunpack.c.l.b16 %v96
    %v649 = vunpack.c.h.b16 %v96
    %v650 = vunpack.c.l.b16 %v97
    %v651 = vunpack.c.h.b16 %v97
    %v652 = vunpack.c.l.b16 %v98
    %v653 = vunpack.c.h.b16 %v98
    %v654 = vunpack.c.l.b16 %v99
    %v655 = vunpack.c.h.b16 %v99
    %v656 = vunpack.c.l.b16 %v100
    %v657 = vunpack.c.h.b16 %v100
    %v658 = vunpack.c.l.b16 %v101
    %v659 = vunpack.c.h.b16 %v101
    %v660 = vunpack.c.l.b16 %v102
    %v661 = vunpack.c.h.b16 %v102
    %v662 = vunpack.c.l.b16 %v103
    %v663 = vunpack.c.h.b16 %v103
    %v664 = vunpack.c.l.b16 %v104
    %v665 = vunpack.c.h.b16 %v104
    %v666 = vunpack.c.l.b16 %v105
    %v667 = vunpack.c.h.b16 %v105
    %v668 = vunpack.c.l.b16 %v106
    %v669 = vunpack.c.h.b16 %v106
    %v670 = vunpack.c.l.b16 %v107
    %v671 = vunpack.c.h.b16 %v107
    %v672 = vunpack.c.l.b16 %v108
    %v673 = vunpack.c.h.b16 %v108
    %v674 = vunpack.c.l.b16 %v109
    %v675 = vunpack.c.h.b16 %v109
    %v676 = vunpack.c.l.b16 %v110
    %v677 = vunpack.c.h.b16 %v110
    %v678 = vunpack.c.l.b16 %v111
    %v679 = vunpack.c.h.b16 %v111
    %v680 = vunpack.c.l.b16 %v112
    %v681 = vunpack.c.h.b16 %v112
    %v682 = vunpack.c.l.b16 %v113
    %v683 = vunpack.c.h.b16 %v113
    %v684 = vunpack.c.l.b16 %v114
    %v685 = vunpack.c.h.b16 %v114
    %v686 = vunpack.c.l.b16 %v115
    %v687 = vunpack.c.h.b16 %v115
    %v688 = vunpack.c.l.b16 %v116
    %v689 = vunpack.c.h.b16 %v116
    %v690 = vunpack.c.l.b16 %v117
    %v691 = vunpack.c.h.b16 %v117
    %v692 = vunpack.c.l.b16 %v118
    %v693 = vunpack.c.h.b16 %v118
    %v694 = vunpack.c.l.b16 %v119
    %v695 = vunpack.c.h.b16 %v119
    %v696 = vunpack.c.l.b16 %v120
    %v697 = vunpack.c.h.b16 %v120
    %v698 = vunpack.c.l.b16 %v121
    %v699 = vunpack.c.h.b16 %v121
    %v700 = vunpack.c.l.b16 %v122
    %v701 = vunpack.c.h.b16 %v122
    %v702 = vunpack.c.l.b16 %v123
    %v703 = vunpack.c.h.b16 %v123
    %v704 = vunpack.c.l.b16 %v124
    %v705 = vunpack.c.h.b16 %v124
    %v706 = vunpack.c.l.b16 %v125
    %v707 = vunpack.c.h.b16 %v125
    %v708 = vunpack.c.l.b16 %v126
    %v709 = vunpack.c.h.b16 %v126
    %v710 = vunpack.c.l.b16 %v127
    %v711 = vunpack.c.h.b16 %v127
    %v712 = vunpack.c.l.b16 %v128
    %v713 = vunpack.c.h.b16 %v128
    %v714 = vunpack.c.l.b16 %v129
    %v715 = vunpack.c.h.b16 %v129
    %v716 = vunpack.c.l.b16 %v130
    %v717 = vunpack.c.h.b16 %v130
    %v718 = vunpack.c.l.b16 %v131
    %v719 = vunpack.c.h.b16 %v131
    %v720 = vunpack.c.l.b16 %v132
    %v721 = vunpack.c.h.b16 %v132
    %v722 = vunpack.c.l.b16 %v133
    %v723 = vunpack.c.h.b16 %v133
    %v724 = vunpack.c.l.b16 %v134
    %v725 = vunpack.c.h.b16 %v134
    %v726 = vunpack.c.l.b16 %v135
    %v727 = vunpack.c.h.b16 %v135
    %v728 = vunpack.c.l.b16 %v136
    %v729 = vunpack.c.h.b16 %v136
    %v730 = vunpack.c.l.b16 %v137
    %v731 = vunpack.c.h.b16 %v137
    %v732 = vunpack.c.l.b16 %v138
    %v733 = vunpack.c.h.b16 %v138
    %v734 = vunpack.c.l.b16 %v139
    %v735 = vunpack.c.h.b16 %v139
    %v736 = vunpack.c.l.b16 %v140
    %v737 = vunpack.c.h.b16 %v140
    %v738 = vunpack.c.l.b16 %v141
    %v739 = vunpack.c.h.b16 %v141
    %v740 = vunpack.c.l.b16 %v142
    %v741 = vunpack.c.h.b16 %v142
    %v742 = vunpack.c.l.b16 %v143
    %v743 = vunpack.c.h.b16 %v143
    %v744 = vunpack.c.l.b16 %v144
    %v745 = vunpack.c.h.b16 %v144
    %v746 = vunpack.c.l.b16 %v145
    %v747 = vunpack.c.h.b16 %v145
    %v748 = vunpack.c.l.b16 %v146
    %v749 = vunpack.c.h.b16 %v146
    %v750 = vunpack.c.l.b16 %v147
    %v751 = vunpack.c.h.b16 %v147
    %v752 = vunpack.c.l.b16 %v148
    %v753 = vunpack.c.h.b16 %v148
    %v754 = vunpack.c.l.b16 %v149
    %v755 = vunpack.c.h.b16 %v149
    %v756 = vunpack.c.l.b16 %v150
    %v757 = vunpack.c.h.b16 %v150
    %v758 = vunpack.c.l.b16 %v151
    %v759 = vunpack.c.h.b16 %v151
    %v760 = vunpack.c.l.b16 %v152
    %v761 = vunpack.c.h.b16 %v152
    %v762 = vunpack.c.l.b16 %v153
    %v763 = vunpack.c.h.b16 %v153
    %v764 = vunpack.c.l.b16 %v154
    %v765 = vunpack.c.h.b16 %v154
    %v766 = vunpack.c.l.b16 %v155
    %v767 = vunpack.c.h.b16 %v155
    %v768 = vunpack.c.l.b16 %v156
    %v769 = vunpack.c.h.b16 %v156
    %v770 = vunpack.c.l.b16 %v157
    %v771 = vunpack.c.h.b16 %v157
    %v772 = vunpack.c.l.b16 %v158
    %v773 = vunpack.c.h.b16 %v158
    %v774 = vunpack.c.l.b16 %v159
    %v775 = vunpack.c.h.b16 %v159
    %v776 = vunpack.c.l.b16 %v160
    %v777 = vunpack.c.h.b16 %v160
    %v778 = vunpack.c.l.b16 %v161
    %v779 = vunpack.c.h.b16 %v161
    %v780 = vunpack.c.l.b16 %v162
    %v781 = vunpack.c.h.b16 %v162
    %v782 = vunpack.c.l.b16 %v163
    %v783 = vunpack.c.h.b16 %v163
    %v784 = vunpack.c.l.b16 %v164
    %v785 = vunpack.c.h.b16 %v164
    %v786 = vunpack.c.l.b16 %v165
    %v787 = vunpack.c.h.b16 %v165
    %v788 = vunpack.c.l.b16 %v166
    %v789 = vunpack.c.h.b16 %v166
    %v790 = vunpack.c.l.b16 %v167
    %v791 = vunpack.c.h.b16 %v167
    %v792 = vunpack.c.l.b16 %v168
    %v793 = vunpack.c.h.b16 %v168
    %v794 = vunpack.c.l.b16 %v169
    %v795 = vunpack.c.h.b16 %v169
    %v796 = vunpack.c.l.b16 %v170
    %v797 = vunpack.c.h.b16 %v170
    %v798 = vunpack.c.l.b16 %v171
    %v799 = vunpack.c.h.b16 %v171
    %v800 = vunpack.c.l.b16 %v172
    %v801 = vunpack.c.h.b16 %v172
    %v802 = vunpack.c.l.b16 %v173
    %v803 = vunpack.c.h.b16 %v173
    %v804 = vunpack.c.l.b16 %v174
    %v805 = vunpack.c.h.b16 %v174
    %v806 = vunpack.c.l.b16 %v175
    %v807 = vunpack.c.h.b16 %v175
    %v808 = vunpack.c.l.b16 %v176
    %v809 = vunpack.c.h.b16 %v176
    %v810 = vunpack.c.l.b16 %v177
    %v811 = vunpack.c.h.b16 %v177
    %v812 = vunpack.c.l.b16 %v178
    %v813 = vunpack.c.h.b16 %v178
    %v814 = vunpack.c.l.b16 %v179
    %v815 = vunpack.c.h.b16 %v179
    %v816 = vunpack.c.l.b16 %v180
    %v817 = vunpack.c.h.b16 %v180
    %v818 = vunpack.c.l.b16 %v181
    %v819 = vunpack.c.h.b16 %v181
    %v820 = vunpack.c.l.b16 %v182
    %v821 = vunpack.c.h.b16 %v182
    %v822 = vunpack.c.l.b16 %v183
    %v823 = vunpack.c.h.b16 %v183
    %v824 = vunpack.c.l.b16 %v184
    %v825 = vunpack.c.h.b16 %v184
    %v826 = vunpack.c.l.b16 %v185
    %v827 = vunpack.c.h.b16 %v185
    %v828 = vunpack.c.l.b16 %v186
    %v829 = vunpack.c.h.b16 %v186
    %v830 = vunpack.c.l.b16 %v187
    %v831 = vunpack.c.h.b16 %v187
    %v832 = vunpack.c.l.b16 %v188
    %v833 = vunpack.c.h.b16 %v188
    %v834 = vunpack.c.l.b16 %v189
    %v835 = vunpack.c.h.b16 %v189
    %v836 = vunpack.c.l.b16 %v190
    %v837 = vunpack.c.h.b16 %v190
    %v838 = vunpack.c.l.b16 %v191
    %v839 = vunpack.c.h.b16 %v191
    %v840 = vunpack.c.l.b16 %v192
    %v841 = vunpack.c.h.b16 %v192
    %v842 = vunpack.c.l.b16 %v193
    %v843 = vunpack.c.h.b16 %v193
    %v844 = vunpack.c.l.b16 %v194
    %v845 = vunpack.c.h.b16 %v194
    %v846 = vunpack.c.l.b16 %v195
    %v847 = vunpack.c.h.b16 %v195
    %v848 = vunpack.c.l.b16 %v196
    %v849 = vunpack.c.h.b16 %v196
    %v850 = vunpack.c.l.b16 %v197
    %v851 = vunpack.c.h.b16 %v197
    %v852 = vunpack.c.l.b16 %v198
    %v853 = vunpack.c.h.b16 %v198
    %v854 = vunpack.c.l.b16 %v199
    %v855 = vunpack.c.h.b16 %v199
    %v856 = vunpack.c.l.b16 %v200
    %v857 = vunpack.c.h.b16 %v200
    %v858 = vunpack.c.l.b16 %v201
    %v859 = vunpack.c.h.b16 %v201
    %v860 = vunpack.c.l.b16 %v202
    %v861 = vunpack.c.h.b16 %v202
    %v862 = vunpack.c.l.b16 %v203
    %v863 = vunpack.c.h.b16 %v203
    %v864 = vunpack.c.l.b16 %v204
    %v865 = vunpack.c.h.b16 %v204
    %v866 = vunpack.c.l.b16 %v205
    %v867 = vunpack.c.h.b16 %v205
    %v868 = vunpack.c.l.b16 %v206
    %v869 = vunpack.c.h.b16 %v206
    %v870 = vunpack.c.l.b16 %v207
    %v871 = vunpack.c.h.b16 %v207
    %v872 = vunpack.c.l.b16 %v208
    %v873 = vunpack.c.h.b16 %v208
    %v874 = vunpack.c.l.b16 %v209
    %v875 = vunpack.c.h.b16 %v209
    %v876 = vunpack.c.l.b16 %v210
    %v877 = vunpack.c.h.b16 %v210
    %v878 = vunpack.c.l.b16 %v211
    %v879 = vunpack.c.h.b16 %v211
    %v880 = vunpack.c.l.b16 %v212
    %v881 = vunpack.c.h.b16 %v212
    %v882 = vunpack.c.l.b16 %v213
    %v883 = vunpack.c.h.b16 %v213
    %v884 = vunpack.c.l.b16 %v214
    %v885 = vunpack.c.h.b16 %v214
    %v886 = vunpack.c.l.b16 %v215
    %v887 = vunpack.c.h.b16 %v215
    %v888 = vunpack.c.l.b16 %v216
    %v889 = vunpack.c.h.b16 %v216
    %v890 = vunpack.c.l.b16 %v217
    %v891 = vunpack.c.h.b16 %v217
    %v892 = vunpack.c.l.b16 %v218
    %v893 = vunpack.c.h.b16 %v218
    %v894 = vunpack.c.l.b16 %v219
    %v895 = vunpack.c.h.b16 %v219
    %v896 = vunpack.c.l.b16 %v220
    %v897 = vunpack.c.h.b16 %v220
    %v898 = vunpack.c.l.b16 %v221
    %v899 = vunpack.c.h.b16 %v221
    %v900 = vunpack.c.l.b16 %v222
    %v901 = vunpack.c.h.b16 %v222
    %v902 = vunpack.c.l.b16 %v223
    %v903 = vunpack.c.h.b16 %v223
    %v904 = vunpack.c.l.b16 %v224
    %v905 = vunpack.c.h.b16 %v224
    %v906 = vunpack.c.l.b16 %v225
    %v907 = vunpack.c.h.b16 %v225
    %v908 = vunpack.c.l.b16 %v226
    %v909 = vunpack.c.h.b16 %v226
    %v910 = vunpack.c.l.b16 %v227
    %v911 = vunpack.c.h.b16 %v227
    %v912 = vunpack.c.l.b16 %v228
    %v913 = vunpack.c.h.b16 %v228
    %v914 = vunpack.c.l.b16 %v229
    %v915 = vunpack.c.h.b16 %v229
    %v916 = vunpack.c.l.b16 %v230
    %v917 = vunpack.c.h.b16 %v230
    %v918 = vunpack.c.l.b16 %v231
    %v919 = vunpack.c.h.b16 %v231
    %v920 = vunpack.c.l.b16 %v232
    %v921 = vunpack.c.h.b16 %v232
    %v922 = vunpack.c.l.b16 %v233
    %v923 = vunpack.c.h.b16 %v233
    %v924 = vunpack.c.l.b16 %v234
    %v925 = vunpack.c.h.b16 %v234
    %v926 = vunpack.c.l.b16 %v235
    %v927 = vunpack.c.h.b16 %v235
    %v928 = vunpack.c.l.b16 %v236
    %v929 = vunpack.c.h.b16 %v236
    %v930 = vunpack.c.l.b16 %v237
    %v931 = vunpack.c.h.b16 %v237
    %v932 = vunpack.c.l.b16 %v238
    %v933 = vunpack.c.h.b16 %v238
    %v934 = vunpack.c.l.b16 %v239
    %v935 = vunpack.c.h.b16 %v239
    %v936 = vunpack.c.l.b16 %v240
    %v937 = vunpack.c.h.b16 %v240
    %v938 = vunpack.c.l.b16 %v241
    %v939 = vunpack.c.h.b16 %v241
    %v940 = vunpack.c.l.b16 %v242
    %v941 = vunpack.c.h.b16 %v242
    %v942 = vunpack.c.l.b16 %v243
    %v943 = vunpack.c.h.b16 %v243
    %v944 = vunpack.c.l.b16 %v244
    %v945 = vunpack.c.h.b16 %v244
    %v946 = vunpack.c.l.b16 %v245
    %v947 = vunpack.c.h.b16 %v245
    %v948 = vunpack.c.l.b16 %v246
    %v949 = vunpack.c.h.b16 %v246
    %v950 = vunpack.c.l.b16 %v247
    %v951 = vunpack.c.h.b16 %v247
    %v952 = vunpack.c.l.b16 %v248
    %v953 = vunpack.c.h.b16 %v248
    %v954 = vunpack.c.l.b16 %v249
    %v955 = vunpack.c.h.b16 %v249
    %v956 = vunpack.c.l.b16 %v250
    %v957 = vunpack.c.h.b16 %v250
    %v958 = vunpack.c.l.b16 %v251
    %v959 = vunpack.c.h.b16 %v251
    %v960 = vunpack.c.l.b16 %v252
    %v961 = vunpack.c.h.b16 %v252
    %v962 = vunpack.c.l.b16 %v253
    %v963 = vunpack.c.h.b16 %v253
    %v964 = vunpack.c.l.b16 %v254
    %v965 = vunpack.c.h.b16 %v254
    %v966 = vunpack.c.l.b16 %v255
    %v967 = vunpack.c.h.b16 %v255
    %v968 = vunpack.c.l.b16 %v256
    %v969 = vunpack.c.h.b16 %v256
    %v970 = vunpack.c.l.b16 %v257
    %v971 = vunpack.c.h.b16 %v257
    %v972 = vunpack.c.l.b16 %v258
    %v973 = vunpack.c.h.b16 %v258
    %v974 = vunpack.c.l.b16 %v259
    %v975 = vunpack.c.h.b16 %v259
    %v976 = vunpack.c.l.b16 %v260
    %v977 = vunpack.c.h.b16 %v260
    %v978 = vunpack.c.l.b16 %v261
    %v979 = vunpack.c.h.b16 %v261
    %v980 = vunpack.c.l.b16 %v262
    %v981 = vunpack.c.h.b16 %v262
    %v982 = vunpack.c.l.b16 %v263
    %v983 = vunpack.c.h.b16 %v263
    %v984 = vunpack.c.l.b16 %v264
    %v985 = vunpack.c.h.b16 %v264
    %v986 = vunpack.c.l.b16 %v265
    %v987 = vunpack.c.h.b16 %v265
    %v988 = vunpack.c.l.b16 %v266
    %v989 = vunpack.c.h.b16 %v266
    %v990 = vunpack.c.l.b16 %v267
    %v991 = vunpack.c.h.b16 %v267
    %v992 = vunpack.c.l.b16 %v268
    %v993 = vunpack.c.h.b16 %v268
    %v994 = vunpack.c.l.b16 %v269
    %v995 = vunpack.c.h.b16 %v269
    %v996 = vunpack.c.l.b16 %v270
    %v997 = vunpack.c.h.b16 %v270
    %v998 = vunpack.c.l.b16 %v271
    %v999 = vunpack.c.h.b16 %v271
    %v1000 = vunpack.c.l.b16 %v272
    %v1001 = vunpack.c.h.b16 %v272
    %v1002 = vunpack.c.l.b16 %v273
    %v1003 = vunpack.c.h.b16 %v273
    %v1004 = vunpack.c.l.b16 %v274
    %v1005 = vunpack.c.h.b16 %v274
    %v1006 = vunpack.c.l.b16 %v275
    %v1007 = vunpack.c.h.b16 %v275
    %v1008 = vunpack.c.l.b16 %v276
    %v1009 = vunpack.c.h.b16 %v276
    %v1010 = vunpack.c.l.b16 %v277
    %v1011 = vunpack.c.h.b16 %v277
    %v1012 = vunpack.c.l.b16 %v278
    %v1013 = vunpack.c.h.b16 %v278
    %v1014 = vunpack.c.l.b16 %v279
    %v1015 = vunpack.c.h.b16 %v279
    %v1016 = vunpack.c.l.b16 %v280
    %v1017 = vunpack.c.h.b16 %v280
    %v1018 = vunpack.c.l.b16 %v281
    %v1019 = vunpack.c.h.b16 %v281
    %v1020 = vunpack.c.l.b16 %v282
    %v1021 = vunpack.c.h.b16 %v282
    %v1022 = vunpack.c.l.b16 %v283
    %v1023 = vunpack.c.h.b16 %v283
    %v1024 = vunpack.c.l.b16 %v284
    %v1025 = vunpack.c.h.b16 %v284
    %v1026 = vunpack.c.l.b16 %v285
    %v1027 = vunpack.c.h.b16 %v285
    %v1028 = vunpack.c.l.b16 %v286
    %v1029 = vunpack.c.h.b16 %v286
    %v1030 = vunpack.c.l.b16 %v287
    %v1031 = vunpack.c.h.b16 %v287
    %v1032 = vunpack.c.l.b16 %v288
    %v1033 = vunpack.c.h.b16 %v288
    %v1034 = vunpack.c.l.b16 %v289
    %v1035 = vunpack.c.h.b16 %v289
    %v1036 = vunpack.c.l.b16 %v290
    %v1037 = vunpack.c.h.b16 %v290
    %v1038 = vunpack.c.l.b16 %v291
    %v1039 = vunpack.c.h.b16 %v291
    %v1040 = vunpack.c.l.b16 %v292
    %v1041 = vunpack.c.h.b16 %v292
    %v1042 = vunpack.c.l.b16 %v293
    %v1043 = vunpack.c.h.b16 %v293
    %v1044 = vunpack.c.l.b16 %v294
    %v1045 = vunpack.c.h.b16 %v294
    %v1046 = vunpack.c.l.b16 %v295
    %v1047 = vunpack.c.h.b16 %v295
    %v1048 = vunpack.c.l.b16 %v296
    %v1049 = vunpack.c.h.b16 %v296
    %v1050 = vunpack.c.l.b16 %v297
    %v1051 = vunpack.c.h.b16 %v297
    %v1052 = vunpack.c.l.b16 %v298
    %v1053 = vunpack.c.h.b16 %v298
    %v1054 = vunpack.c.l.b16 %v299
    %v1055 = vunpack.c.h.b16 %v299
    %v1056 = vunpack.c.l.b16 %v300
    %v1057 = vunpack.c.h.b16 %v300
    %v1058 = vunpack.c.l.b16 %v301
    %v1059 = vunpack.c.h.b16 %v301
    %v1060 = vunpack.c.l.b16 %v302
    %v1061 = vunpack.c.h.b16 %v302
    %v1062 = vunpack.c.l.b16 %v303
    %v1063 = vunpack.c.h.b16 %v303
    %v1064 = vunpack.c.l.b16 %v304
    %v1065 = vunpack.c.h.b16 %v304
    %v1066 = vunpack.c.l.b16 %v305
    %v1067 = vunpack.c.h.b16 %v305
    %v1068 = vunpack.c.l.b16 %v306
    %v1069 = vunpack.c.h.b16 %v306
    %v1070 = vunpack.c.l.b16 %v307
    %v1071 = vunpack.c.h.b16 %v307
    %v1072 = vunpack.c.l.b16 %v308
    %v1073 = vunpack.c.h.b16 %v308
    %v1074 = vunpack.c.l.b16 %v309
    %v1075 = vunpack.c.h.b16 %v309
    %v1076 = vunpack.c.l.b16 %v310
    %v1077 = vunpack.c.h.b16 %v310
    %v1078 = vunpack.c.l.b16 %v311
    %v1079 = vunpack.c.h.b16 %v311
    %v1080 = vunpack.c.l.b16 %v312
    %v1081 = vunpack.c.h.b16 %v312
    %v1082 = vunpack.c.l.b16 %v313
    %v1083 = vunpack.c.h.b16 %v313
    %v1084 = vunpack.c.l.b16 %v314
    %v1085 = vunpack.c.h.b16 %v314
    %v1086 = vunpack.c.l.b16 %v315
    %v1087 = vunpack.c.h.b16 %v315
    %v1088 = vunpack.c.l.b16 %v316
    %v1089 = vunpack.c.h.b16 %v316
    %v1090 = vunpack.c.l.b16 %v317
    %v1091 = vunpack.c.h.b16 %v317
    %v1092 = vunpack.c.l.b16 %v318
    %v1093 = vunpack.c.h.b16 %v318
    %v1094 = vunpack.c.l.b16 %v319
    %v1095 = vunpack.c.h.b16 %v319
    %v1096 = vunpack.c.l.b16 %v320
    %v1097 = vunpack.c.h.b16 %v320
    %v1098 = vunpack.c.l.b16 %v321
    %v1099 = vunpack.c.h.b16 %v321
    %v1100 = vunpack.c.l.b16 %v322
    %v1101 = vunpack.c.h.b16 %v322
    %v1102 = vunpack.c.l.b16 %v323
    %v1103 = vunpack.c.h.b16 %v323
    %v1104 = vunpack.c.l.b16 %v324
    %v1105 = vunpack.c.h.b16 %v324
    %v1106 = vunpack.c.l.b16 %v325
    %v1107 = vunpack.c.h.b16 %v325
    %v1108 = vunpack.c.l.b16 %v326
    %v1109 = vunpack.c.h.b16 %v326
    %v1110 = vunpack.c.l.b16 %v327
    %v1111 = vunpack.c.h.b16 %v327
    %v1112 = vunpack.c.l.b16 %v328
    %v1113 = vunpack.c.h.b16 %v328
    %v1114 = vunpack.c.l.b16 %v329
    %v1115 = vunpack.c.h.b16 %v329
    %v1116 = vunpack.c.l.b16 %v330
    %v1117 = vunpack.c.h.b16 %v330
    %v1118 = vunpack.c.l.b16 %v331
    %v1119 = vunpack.c.h.b16 %v331
    %v1120 = vunpack.c.l.b16 %v332
    %v1121 = vunpack.c.h.b16 %v332
    %v1122 = vunpack.c.l.b16 %v333
    %v1123 = vunpack.c.h.b16 %v333
    %v1124 = vpack.c.b16 %v616, %v612
    %v1125 = vpack.c.b16 %v617, %v613
    %v1126 = vpack.c.b16 %v618, %v614
    %v1127 = vpack.c.b16 %v619, %v615
    %v1128 = vpack.c.b16 %v624, %v620
    %v1129 = vpack.c.b16 %v625, %v621
    %v1130 = vpack.c.b16 %v626, %v622
    %v1131 = vpack.c.b16 %v627, %v623
    %v1132 = vpack.c.b16 %v632, %v628
    %v1133 = vpack.c.b16 %v633, %v629
    %v1134 = vpack.c.b16 %v634, %v630
    %v1135 = vpack.c.b16 %v635, %v631
    %v1136 = vpack.c.b16 %v640, %v636
    %v1137 = vpack.c.b16 %v641, %v637
    %v1138 = vpack.c.b16 %v642, %v638
    %v1139 = vpack.c.b16 %v643, %v639
    %v1140 = vpack.c.b16 %v648, %v644
    %v1141 = vpack.c.b16 %v649, %v645
    %v1142 = vpack.c.b16 %v650, %v646
    %v1143 = vpack.c.b16 %v651, %v647
    %v1144 = vpack.c.b16 %v656, %v652
    %v1145 = vpack.c.b16 %v657, %v653
    %v1146 = vpack.c.b16 %v658, %v654
    %v1147 = vpack.c.b16 %v659, %v655
    %v1148 = vpack.c.b16 %v664, %v660
    %v1149 = vpack.c.b16 %v665, %v661
    %v1150 = vpack.c.b16 %v666, %v662
    %v1151 = vpack.c.b16 %v667, %v663
    %v1152 = vpack.c.b16 %v672, %v668
    %v1153 = vpack.c.b16 %v673, %v669
    %v1154 = vpack.c.b16 %v674, %v670
    %v1155 = vpack.c.b16 %v675, %v671
    %v1156 = vpack.c.b16 %v680, %v676
    %v1157 = vpack.c.b16 %v681, %v677
    %v1158 = vpack.c.b16 %v682, %v678
    %v1159 = vpack.c.b16 %v683, %v679
    %v1160 = vpack.c.b16 %v688, %v684
    %v1161 = vpack.c.b16 %v689, %v685
    %v1162 = vpack.c.b16 %v690, %v686
    %v1163 = vpack.c.b16 %v691, %v687
    %v1164 = vpack.c.b16 %v696, %v692
    %v1165 = vpack.c.b16 %v697, %v693
    %v1166 = vpack.c.b16 %v698, %v694
    %v1167 = vpack.c.b16 %v699, %v695
    %v1168 = vpack.c.b16 %v704, %v700
    %v1169 = vpack.c.b16 %v705, %v701
    %v1170 = vpack.c.b16 %v706, %v702
    %v1171 = vpack.c.b16 %v707, %v703
    %v1172 = vpack.c.b16 %v712, %v708
    %v1173 = vpack.c.b16 %v713, %v709
    %v1174 = vpack.c.b16 %v714, %v710
    %v1175 = vpack.c.b16 %v715, %v711
    %v1176 = vpack.c.b16 %v720, %v716
    %v1177 = vpack.c.b16 %v721, %v717
    %v1178 = vpack.c.b16 %v722, %v718
    %v1179 = vpack.c.b16 %v723, %v719
    %v1180 = vpack.c.b16 %v728, %v724
    %v1181 = vpack.c.b16 %v729, %v725
    %v1182 = vpack.c.b16 %v730, %v726
    %v1183 = vpack.c.b16 %v731, %v727
    %v1184 = vpack.c.b16 %v736, %v732
    %v1185 = vpack.c.b16 %v737, %v733
    %v1186 = vpack.c.b16 %v738, %v734
    %v1187 = vpack.c.b16 %v739, %v735
    %v1188 = vpack.c.b16 %v744, %v740
    %v1189 = vpack.c.b16 %v745, %v741
    %v1190 = vpack.c.b16 %v746, %v742
    %v1191 = vpack.c.b16 %v747, %v743
    %v1192 = vpack.c.b16 %v752, %v748
    %v1193 = vpack.c.b16 %v753, %v749
    %v1194 = vpack.c.b16 %v754, %v750
    %v1195 = vpack.c.b16 %v755, %v751
    %v1196 = vpack.c.b16 %v760, %v756
    %v1197 = vpack.c.b16 %v761, %v757
    %v1198 = vpack.c.b16 %v762, %v758
    %v1199 = vpack.c.b16 %v763, %v759
    %v1200 = vpack.c.b16 %v768, %v764
    %v1201 = vpack.c.b16 %v769, %v765
    %v1202 = vpack.c.b16 %v770, %v766
    %v1203 = vpack.c.b16 %v771, %v767
    %v1204 = vpack.c.b16 %v776, %v772
    %v1205 = vpack.c.b16 %v777, %v773
    %v1206 = vpack.c.b16 %v778, %v774
    %v1207 = vpack.c.b16 %v779, %v775
    %v1208 = vpack.c.b16 %v784, %v780
    %v1209 = vpack.c.b16 %v785, %v781
    %v1210 = vpack.c.b16 %v786, %v782
    %v1211 = vpack.c.b16 %v787, %v783
    %v1212 = vpack.c.b16 %v792, %v788
    %v1213 = vpack.c.b16 %v793, %v789
    %v1214 = vpack.c.b16 %v794, %v790
    %v1215 = vpack.c.b16 %v795, %v791
    %v1216 = vpack.c.b16 %v800, %v796
    %v1217 = vpack.c.b16 %v801, %v797
    %v1218 = vpack.c.b16 %v802, %v798
    %v1219 = vpack.c.b16 %v803, %v799
    %v1220 = vpack.c.b16 %v808, %v804
    %v1221 = vpack.c.b16 %v809, %v805
    %v1222 = vpack.c.b16 %v810, %v806
    %v1223 = vpack.c.b16 %v811, %v807
    %v1224 = vpack.c.b16 %v816, %v812
    %v1225 = vpack.c.b16 %v817, %v813
    %v1226 = vpack.c.b16 %v818, %v814
    %v1227 = vpack.c.b16 %v819, %v815
    %v1228 = vpack.c.b16 %v824, %v820
    %v1229 = vpack.c.b16 %v825, %v821
    %v1230 = vpack.c.b16 %v826, %v822
    %v1231 = vpack.c.b16 %v827, %v823
    %v1232 = vpack.c.b16 %v832, %v828
    %v1233 = vpack.c.b16 %v833, %v829
    %v1234 = vpack.c.b16 %v834, %v830
    %v1235 = vpack.c.b16 %v835, %v831
    %v1236 = vpack.c.b16 %v840, %v836
    %v1237 = vpack.c.b16 %v841, %v837
    %v1238 = vpack.c.b16 %v842, %v838
    %v1239 = vpack.c.b16 %v843, %v839
    %v1240 = vpack.c.b16 %v848, %v844
    %v1241 = vpack.c.b16 %v849, %v845
    %v1242 = vpack.c.b16 %v850, %v846
    %v1243 = vpack.c.b16 %v851, %v847
    %v1244 = vpack.c.b16 %v856, %v852
    %v1245 = vpack.c.b16 %v857, %v853
    %v1246 = vpack.c.b16 %v858, %v854
    %v1247 = vpack.c.b16 %v859, %v855
    %v1248 = vpack.c.b16 %v864, %v860
    %v1249 = vpack.c.b16 %v865, %v861
    %v1250 = vpack.c.b16 %v866, %v862
    %v1251 = vpack.c.b16 %v867, %v863
    %v1252 = vpack.c.b16 %v872, %v868
    %v1253 = vpack.c.b16 %v873, %v869
    %v1254 = vpack.c.b16 %v874, %v870
    %v1255 = vpack.c.b16 %v875, %v871
    %v1256 = vpack.c.b16 %v880, %v876
    %v1257 = vpack.c.b16 %v881, %v877
    %v1258 = vpack.c.b16 %v882, %v878
    %v1259 = vpack.c.b16 %v883, %v879
    %v1260 = vpack.c.b16 %v888, %v884
    %v1261 = vpack.c.b16 %v889, %v885
    %v1262 = vpack.c.b16 %v890, %v886
    %v1263 = vpack.c.b16 %v891, %v887
    %v1264 = vpack.c.b16 %v896, %v892
    %v1265 = vpack.c.b16 %v897, %v893
    %v1266 = vpack.c.b16 %v898, %v894
    %v1267 = vpack.c.b16 %v899, %v895
    %v1268 = vpack.c.b16 %v904, %v900
    %v1269 = vpack.c.b16 %v905, %v901
    %v1270 = vpack.c.b16 %v906, %v902
    %v1271 = vpack.c.b16 %v907, %v903
    %v1272 = vpack.c.b16 %v912, %v908
    %v1273 = vpack.c.b16 %v913, %v909
    %v1274 = vpack.c.b16 %v914, %v910
    %v1275 = vpack.c.b16 %v915, %v911
    %v1276 = vpack.c.b16 %v920, %v916
    %v1277 = vpack.c.b16 %v921, %v917
    %v1278 = vpack.c.b16 %v922, %v918
    %v1279 = vpack.c.b16 %v923, %v919
    %v1280 = vpack.c.b16 %v928, %v924
    %v1281 = vpack.c.b16 %v929, %v925
    %v1282 = vpack.c.b16 %v930, %v926
    %v1283 = vpack.c.b16 %v931, %v927
    %v1284 = vpack.c.b16 %v936, %v932
    %v1285 = vpack.c.b16 %v937, %v933
    %v1286 = vpack.c.b16 %v938, %v934
    %v1287 = vpack.c.b16 %v939, %v935
    %v1288 = vpack.c.b16 %v944, %v940
    %v1289 = vpack.c.b16 %v945, %v941
    %v1290 = vpack.c.b16 %v946, %v942
    %v1291 = vpack.c.b16 %v947, %v943
    %v1292 = vpack.c.b16 %v952, %v948
    %v1293 = vpack.c.b16 %v953, %v949
    %v1294 = vpack.c.b16 %v954, %v950
    %v1295 = vpack.c.b16 %v955, %v951
    %v1296 = vpack.c.b16 %v960, %v956
    %v1297 = vpack.c.b16 %v961, %v957
    %v1298 = vpack.c.b16 %v962, %v958
    %v1299 = vpack.c.b16 %v963, %v959
    %v1300 = vpack.c.b16 %v968, %v964
    %v1301 = vpack.c.b16 %v969, %v965
    %v1302 = vpack.c.b16 %v970, %v966
    %v1303 = vpack.c.b16 %v971, %v967
    %v1304 = vpack.c.b16 %v976, %v972
    %v1305 = vpack.c.b16 %v977, %v973
    %v1306 = vpack.c.b16 %v978, %v974
    %v1307 = vpack.c.b16 %v979, %v975
    %v1308 = vpack.c.b16 %v984, %v980
    %v1309 = vpack.c.b16 %v985, %v981
    %v1310 = vpack.c.b16 %v986, %v982
    %v1311 = vpack.c.b16 %v987, %v983
    %v1312 = vpack.c.b16 %v992, %v988
    %v1313 = vpack.c.b16 %v993, %v989
    %v1314 = vpack.c.b16 %v994, %v990
    %v1315 = vpack.c.b16 %v995, %v991
    %v1316 = vpack.c.b16 %v1000, %v996
    %v1317 = vpack.c.b16 %v1001, %v997
    %v1318 = vpack.c.b16 %v1002, %v998
    %v1319 = vpack.c.b16 %v1003, %v999
    %v1320 = vpack.c.b16 %v1008, %v1004
    %v1321 = vpack.c.b16 %v1009, %v1005
    %v1322 = vpack.c.b16 %v1010, %v1006
    %v1323 = vpack.c.b16 %v1011, %v1007
    %v1324 = vpack.c.b16 %v1016, %v1012
    %v1325 = vpack.c.b16 %v1017, %v1013
    %v1326 = vpack.c.b16 %v1018, %v1014
    %v1327 = vpack.c.b16 %v1019, %v1015
    %v1328 = vpack.c.b16 %v1024, %v1020
    %v1329 = vpack.c.b16 %v1025, %v1021
    %v1330 = vpack.c.b16 %v1026, %v1022
    %v1331 = vpack.c.b16 %v1027, %v1023
    %v1332 = vpack.c.b16 %v1032, %v1028
    %v1333 = vpack.c.b16 %v1033, %v1029
    %v1334 = vpack.c.b16 %v1034, %v1030
    %v1335 = vpack.c.b16 %v1035, %v1031
    %v1336 = vpack.c.b16 %v1040, %v1036
    %v1337 = vpack.c.b16 %v1041, %v1037
    %v1338 = vpack.c.b16 %v1042, %v1038
    %v1339 = vpack.c.b16 %v1043, %v1039
    %v1340 = vpack.c.b16 %v1048, %v1044
    %v1341 = vpack.c.b16 %v1049, %v1045
    %v1342 = vpack.c.b16 %v1050, %v1046
    %v1343 = vpack.c.b16 %v1051, %v1047
    %v1344 = vpack.c.b16 %v1056, %v1052
    %v1345 = vpack.c.b16 %v1057, %v1053
    %v1346 = vpack.c.b16 %v1058, %v1054
    %v1347 = vpack.c.b16 %v1059, %v1055
    %v1348 = vpack.c.b16 %v1064, %v1060
    %v1349 = vpack.c.b16 %v1065, %v1061
    %v1350 = vpack.c.b16 %v1066, %v1062
    %v1351 = vpack.c.b16 %v1067, %v1063
    %v1352 = vpack.c.b16 %v1072, %v1068
    %v1353 = vpack.c.b16 %v1073, %v1069
    %v1354 = vpack.c.b16 %v1074, %v1070
    %v1355 = vpack.c.b16 %v1075, %v1071
    %v1356 = vpack.c.b16 %v1080, %v1076
    %v1357 = vpack.c.b16 %v1081, %v1077
    %v1358 = vpack.c.b16 %v1082, %v1078
    %v1359 = vpack.c.b16 %v1083, %v1079
    %v1360 = vpack.c.b16 %v1088, %v1084
    %v1361 = vpack.c.b16 %v1089, %v1085
    %v1362 = vpack.c.b16 %v1090, %v1086
    %v1363 = vpack.c.b16 %v1091, %v1087
    %v1364 = vpack.c.b16 %v1096, %v1092
    %v1365 = vpack.c.b16 %v1097, %v1093
    %v1366 = vpack.c.b16 %v1098, %v1094
    %v1367 = vpack.c.b16 %v1099, %v1095
    %v1368 = vpack.c.b16 %v1104, %v1100
    %v1369 = vpack.c.b16 %v1105, %v1101
    %v1370 = vpack.c.b16 %v1106, %v1102
    %v1371 = vpack.c.b16 %v1107, %v1103
    %v1372 = vpack.c.b16 %v1112, %v1108
    %v1373 = vpack.c.b16 %v1113, %v1109
    %v1374 = vpack.c.b16 %v1114, %v1110
    %v1375 = vpack.c.b16 %v1115, %v1111
    %v1376 = vpack.c.b16 %v1120, %v1116
    %v1377 = vpack.c.b16 %v1121, %v1117
    %v1378 = vpack.c.b16 %v1122, %v1118
    %v1379 = vpack.c.b16 %v1123, %v1119
    %1636 = vmatprep.subr.bf16.mxu0 %v1125
    %1637 = vmatpush1.bf16.msra.mxu0 %v1124
    %1638 = vmatprep.subr.bf16.mxu0 %v1129
    %1639 = vmatpush1.bf16.msra.mxu0 %v1128
    %1640 = vmatprep.subr.bf16.mxu0 %v1133
    %1641 = vmatpush1.bf16.msra.mxu0 %v1132
    %1642 = vmatprep.subr.bf16.mxu0 %v1137
    %1643 = vmatpush1.bf16.msra.mxu0 %v1136
    %1644 = vmatprep.subr.bf16.mxu0 %v1141
    %1645 = vmatpush1.bf16.msra.mxu0 %v1140
    %1646 = vmatprep.subr.bf16.mxu0 %v1145
    %1647 = vmatpush1.bf16.msra.mxu0 %v1144
    %1648 = vmatprep.subr.bf16.mxu0 %v1149
    %1649 = vmatpush1.bf16.msra.mxu0 %v1148
    %1650 = vmatprep.subr.bf16.mxu0 %v1153
    %1651 = vmatpush1.bf16.msra.mxu0 %v1152
    %1652 = vmatprep.subr.bf16.mxu0 %v1157
    %1653 = vmatpush1.bf16.msra.mxu0 %v1156
    %1654 = vmatprep.subr.bf16.mxu0 %v1161
    %1655 = vmatpush1.bf16.msra.mxu0 %v1160
    %1656 = vmatprep.subr.bf16.mxu0 %v1165
    %1657 = vmatpush1.bf16.msra.mxu0 %v1164
    %1658 = vmatprep.subr.bf16.mxu0 %v1169
    %1659 = vmatpush1.bf16.msra.mxu0 %v1168
    %1660 = vmatprep.subr.bf16.mxu0 %v1173
    %1661 = vmatpush1.bf16.msra.mxu0 %v1172
    %1662 = vmatprep.subr.bf16.mxu0 %v1177
    %1663 = vmatpush1.bf16.msra.mxu0 %v1176
    %1664 = vmatprep.subr.bf16.mxu0 %v1181
    %1665 = vmatpush1.bf16.msra.mxu0 %v1180
    %1666 = vmatprep.subr.bf16.mxu0 %v1185
    %1667 = vmatpush1.bf16.msra.mxu0 %v1184
    %1668 = vmatprep.mubr.bf16.mxu0 %v71
    %1669 = vmatmul.mubr.bf16.gmra.mrb[0].mxu0 %v70
    %v1670 = vpop.f32.mrb[0].mxu0
    %v1671 = vadd.f32 %v339, %v1670
    %v1672 = vpop.f32.mrb[0].mxu0
    %v1673 = vadd.f32 %v343, %v1672
    %v1674 = vpop.f32.mrb[0].mxu0
    %v1675 = vpop.f32.mrb[0].mxu0
    %1676 = vdwg.mxu0
    %1677 = vmatprep.subr.bf16.mxu0 %v1189
    %1678 = vmatpush1.bf16.msra.mxu0 %v1188
    %1679 = vmatprep.subr.bf16.mxu0 %v1193
    %1680 = vmatpush1.bf16.msra.mxu0 %v1192
    %1681 = vmatprep.subr.bf16.mxu0 %v1197
    %1682 = vmatpush1.bf16.msra.mxu0 %v1196
    %1683 = vmatprep.subr.bf16.mxu0 %v1201
    %1684 = vmatpush1.bf16.msra.mxu0 %v1200
    %1685 = vmatprep.subr.bf16.mxu0 %v1205
    %1686 = vmatpush1.bf16.msra.mxu0 %v1204
    %1687 = vmatprep.subr.bf16.mxu0 %v1209
    %1688 = vmatpush1.bf16.msra.mxu0 %v1208
    %1689 = vmatprep.subr.bf16.mxu0 %v1213
    %1690 = vmatpush1.bf16.msra.mxu0 %v1212
    %1691 = vmatprep.subr.bf16.mxu0 %v1217
    %1692 = vmatpush1.bf16.msra.mxu0 %v1216
    %1693 = vmatprep.subr.bf16.mxu0 %v1221
    %1694 = vmatpush1.bf16.msra.mxu0 %v1220
    %1695 = vmatprep.subr.bf16.mxu0 %v1225
    %1696 = vmatpush1.bf16.msra.mxu0 %v1224
    %1697 = vmatprep.subr.bf16.mxu0 %v1229
    %1698 = vmatpush1.bf16.msra.mxu0 %v1228
    %1699 = vmatprep.subr.bf16.mxu0 %v1233
    %1700 = vmatpush1.bf16.msra.mxu0 %v1232
    %1701 = vmatprep.subr.bf16.mxu0 %v1237
    %1702 = vmatpush1.bf16.msra.mxu0 %v1236
    %1703 = vmatprep.subr.bf16.mxu0 %v1241
    %1704 = vmatpush1.bf16.msra.mxu0 %v1240
    %1705 = vmatprep.subr.bf16.mxu0 %v1245
    %1706 = vmatpush1.bf16.msra.mxu0 %v1244
    %1707 = vmatprep.subr.bf16.mxu0 %v1249
    %1708 = vmatpush1.bf16.msra.mxu0 %v1248
    %1709 = vmatprep.mubr.bf16.mxu0 %v73
    %1710 = vmatmul.mubr.bf16.gmra.mrb[0].mxu0 %v72
    %v1711 = vpop.f32.mrb[0].mxu0
    %v1712 = vadd.f32 %v1671, %v1711
    %v1713 = vpop.f32.mrb[0].mxu0
    %v1714 = vadd.f32 %v1673, %v1713
    %v1715 = vpop.f32.mrb[0].mxu0
    %v1716 = vpop.f32.mrb[0].mxu0
    %1717 = vdwg.mxu0
    %1718 = vmatprep.subr.bf16.mxu0 %v1253
    %1719 = vmatpush1.bf16.msra.mxu0 %v1252
    %1720 = vmatprep.subr.bf16.mxu0 %v1257
    %1721 = vmatpush1.bf16.msra.mxu0 %v1256
    %1722 = vmatprep.subr.bf16.mxu0 %v1261
    %1723 = vmatpush1.bf16.msra.mxu0 %v1260
    %1724 = vmatprep.subr.bf16.mxu0 %v1265
    %1725 = vmatpush1.bf16.msra.mxu0 %v1264
    %1726 = vmatprep.subr.bf16.mxu0 %v1269
    %1727 = vmatpush1.bf16.msra.mxu0 %v1268
    %1728 = vmatprep.subr.bf16.mxu0 %v1273
    %1729 = vmatpush1.bf16.msra.mxu0 %v1272
    %1730 = vmatprep.subr.bf16.mxu0 %v1277
    %1731 = vmatpush1.bf16.msra.mxu0 %v1276
    %1732 = vmatprep.subr.bf16.mxu0 %v1281
    %1733 = vmatpush1.bf16.msra.mxu0 %v1280
    %1734 = vmatprep.subr.bf16.mxu0 %v1285
    %1735 = vmatpush1.bf16.msra.mxu0 %v1284
    %1736 = vmatprep.subr.bf16.mxu0 %v1289
    %1737 = vmatpush1.bf16.msra.mxu0 %v1288
    %1738 = vmatprep.subr.bf16.mxu0 %v1293
    %1739 = vmatpush1.bf16.msra.mxu0 %v1292
    %1740 = vmatprep.subr.bf16.mxu0 %v1297
    %1741 = vmatpush1.bf16.msra.mxu0 %v1296
    %1742 = vmatprep.subr.bf16.mxu0 %v1301
    %1743 = vmatpush1.bf16.msra.mxu0 %v1300
    %1744 = vmatprep.subr.bf16.mxu0 %v1305
    %1745 = vmatpush1.bf16.msra.mxu0 %v1304
    %1746 = vmatprep.subr.bf16.mxu0 %v1309
    %1747 = vmatpush1.bf16.msra.mxu0 %v1308
    %1748 = vmatprep.subr.bf16.mxu0 %v1313
    %1749 = vmatpush1.bf16.msra.mxu0 %v1312
    %1750 = vmatprep.mubr.bf16.mxu0 %v75
    %1751 = vmatmul.mubr.bf16.gmra.mrb[0].mxu0 %v74
    %v1752 = vpop.f32.mrb[0].mxu0
    %v1753 = vadd.f32 %v1712, %v1752
    %v1754 = vpop.f32.mrb[0].mxu0
    %v1755 = vadd.f32 %v1714, %v1754
    %v1756 = vpop.f32.mrb[0].mxu0
    %v1757 = vpop.f32.mrb[0].mxu0
    %1758 = vdwg.mxu0
    %1759 = vmatprep.subr.bf16.mxu0 %v1317
    %1760 = vmatpush1.bf16.msra.mxu0 %v1316
    %1761 = vmatprep.subr.bf16.mxu0 %v1321
    %1762 = vmatpush1.bf16.msra.mxu0 %v1320
    %1763 = vmatprep.subr.bf16.mxu0 %v1325
    %1764 = vmatpush1.bf16.msra.mxu0 %v1324
    %1765 = vmatprep.subr.bf16.mxu0 %v1329
    %1766 = vmatpush1.bf16.msra.mxu0 %v1328
    %1767 = vmatprep.subr.bf16.mxu0 %v1333
    %1768 = vmatpush1.bf16.msra.mxu0 %v1332
    %1769 = vmatprep.subr.bf16.mxu0 %v1337
    %1770 = vmatpush1.bf16.msra.mxu0 %v1336
    %1771 = vmatprep.subr.bf16.mxu0 %v1341
    %1772 = vmatpush1.bf16.msra.mxu0 %v1340
    %1773 = vmatprep.subr.bf16.mxu0 %v1345
    %1774 = vmatpush1.bf16.msra.mxu0 %v1344
    %1775 = vmatprep.subr.bf16.mxu0 %v1349
    %1776 = vmatpush1.bf16.msra.mxu0 %v1348
    %1777 = vmatprep.subr.bf16.mxu0 %v1353
    %1778 = vmatpush1.bf16.msra.mxu0 %v1352
    %1779 = vmatprep.subr.bf16.mxu0 %v1357
    %1780 = vmatpush1.bf16.msra.mxu0 %v1356
    %1781 = vmatprep.subr.bf16.mxu0 %v1361
    %1782 = vmatpush1.bf16.msra.mxu0 %v1360
    %1783 = vmatprep.subr.bf16.mxu0 %v1365
    %1784 = vmatpush1.bf16.msra.mxu0 %v1364
    %1785 = vmatprep.subr.bf16.mxu0 %v1369
    %1786 = vmatpush1.bf16.msra.mxu0 %v1368
    %1787 = vmatprep.subr.bf16.mxu0 %v1373
    %1788 = vmatpush1.bf16.msra.mxu0 %v1372
    %1789 = vmatprep.subr.bf16.mxu0 %v1377
    %1790 = vmatpush1.bf16.msra.mxu0 %v1376
    %1791 = vmatprep.mubr.bf16.mxu0 %v77
    %1792 = vmatmul.mubr.bf16.gmra.mrb[0].mxu0 %v76
    %v1793 = vpop.f32.mrb[0].mxu0
    %v1794 = vadd.f32 %v1753, %v1793
    %v1795 = vpop.f32.mrb[0].mxu0
    %v1796 = vadd.f32 %v1755, %v1795
    %v1797 = vpop.f32.mrb[0].mxu0
    %v1798 = vpop.f32.mrb[0].mxu0
    %1799 = vdwg.mxu0
    %1800 = vmatprep.subr.bf16.mxu0 %v1127
    %1801 = vmatpush1.bf16.msra.mxu0 %v1126
    %1802 = vmatprep.subr.bf16.mxu0 %v1131
    %1803 = vmatpush1.bf16.msra.mxu0 %v1130
    %1804 = vmatprep.subr.bf16.mxu0 %v1135
    %1805 = vmatpush1.bf16.msra.mxu0 %v1134
    %1806 = vmatprep.subr.bf16.mxu0 %v1139
    %1807 = vmatpush1.bf16.msra.mxu0 %v1138
    %1808 = vmatprep.subr.bf16.mxu0 %v1143
    %1809 = vmatpush1.bf16.msra.mxu0 %v1142
    %1810 = vmatprep.subr.bf16.mxu0 %v1147
    %1811 = vmatpush1.bf16.msra.mxu0 %v1146
    %1812 = vmatprep.subr.bf16.mxu0 %v1151
    %1813 = vmatpush1.bf16.msra.mxu0 %v1150
    %1814 = vmatprep.subr.bf16.mxu0 %v1155
    %1815 = vmatpush1.bf16.msra.mxu0 %v1154
    %1816 = vmatprep.subr.bf16.mxu0 %v1159
    %1817 = vmatpush1.bf16.msra.mxu0 %v1158
    %1818 = vmatprep.subr.bf16.mxu0 %v1163
    %1819 = vmatpush1.bf16.msra.mxu0 %v1162
    %1820 = vmatprep.subr.bf16.mxu0 %v1167
    %1821 = vmatpush1.bf16.msra.mxu0 %v1166
    %1822 = vmatprep.subr.bf16.mxu0 %v1171
    %1823 = vmatpush1.bf16.msra.mxu0 %v1170
    %1824 = vmatprep.subr.bf16.mxu0 %v1175
    %1825 = vmatpush1.bf16.msra.mxu0 %v1174
    %1826 = vmatprep.subr.bf16.mxu0 %v1179
    %1827 = vmatpush1.bf16.msra.mxu0 %v1178
    %1828 = vmatprep.subr.bf16.mxu0 %v1183
    %1829 = vmatpush1.bf16.msra.mxu0 %v1182
    %1830 = vmatprep.subr.bf16.mxu0 %v1187
    %1831 = vmatpush1.bf16.msra.mxu0 %v1186
    %1832 = vmatprep.mubr.bf16.mxu0 %v71
    %1833 = vmatmul.mubr.bf16.gmra.mrb[0].mxu0 %v70
    %v1834 = vpop.f32.mrb[0].mxu0
    %v1835 = vadd.f32 %v347, %v1834
    %v1836 = vpop.f32.mrb[0].mxu0
    %v1837 = vadd.f32 %v351, %v1836
    %v1838 = vpop.f32.mrb[0].mxu0
    %v1839 = vpop.f32.mrb[0].mxu0
    %1840 = vdwg.mxu0
    %1841 = vmatprep.subr.bf16.mxu0 %v1191
    %1842 = vmatpush1.bf16.msra.mxu0 %v1190
    %1843 = vmatprep.subr.bf16.mxu0 %v1195
    %1844 = vmatpush1.bf16.msra.mxu0 %v1194
    %1845 = vmatprep.subr.bf16.mxu0 %v1199
    %1846 = vmatpush1.bf16.msra.mxu0 %v1198
    %1847 = vmatprep.subr.bf16.mxu0 %v1203
    %1848 = vmatpush1.bf16.msra.mxu0 %v1202
    %1849 = vmatprep.subr.bf16.mxu0 %v1207
    %1850 = vmatpush1.bf16.msra.mxu0 %v1206
    %1851 = vmatprep.subr.bf16.mxu0 %v1211
    %1852 = vmatpush1.bf16.msra.mxu0 %v1210
    %1853 = vmatprep.subr.bf16.mxu0 %v1215
    %1854 = vmatpush1.bf16.msra.mxu0 %v1214
    %1855 = vmatprep.subr.bf16.mxu0 %v1219
    %1856 = vmatpush1.bf16.msra.mxu0 %v1218
    %1857 = vmatprep.subr.bf16.mxu0 %v1223
    %1858 = vmatpush1.bf16.msra.mxu0 %v1222
    %1859 = vmatprep.subr.bf16.mxu0 %v1227
    %1860 = vmatpush1.bf16.msra.mxu0 %v1226
    %1861 = vmatprep.subr.bf16.mxu0 %v1231
    %1862 = vmatpush1.bf16.msra.mxu0 %v1230
    %1863 = vmatprep.subr.bf16.mxu0 %v1235
    %1864 = vmatpush1.bf16.msra.mxu0 %v1234
    %1865 = vmatprep.subr.bf16.mxu0 %v1239
    %1866 = vmatpush1.bf16.msra.mxu0 %v1238
    %1867 = vmatprep.subr.bf16.mxu0 %v1243
    %1868 = vmatpush1.bf16.msra.mxu0 %v1242
    %1869 = vmatprep.subr.bf16.mxu0 %v1247
    %1870 = vmatpush1.bf16.msra.mxu0 %v1246
    %1871 = vmatprep.subr.bf16.mxu0 %v1251
    %1872 = vmatpush1.bf16.msra.mxu0 %v1250
    %1873 = vmatprep.mubr.bf16.mxu0 %v73
    %1874 = vmatmul.mubr.bf16.gmra.mrb[0].mxu0 %v72
    %v1875 = vpop.f32.mrb[0].mxu0
    %v1876 = vadd.f32 %v1835, %v1875
    %v1877 = vpop.f32.mrb[0].mxu0
    %v1878 = vadd.f32 %v1837, %v1877
    %v1879 = vpop.f32.mrb[0].mxu0
    %v1880 = vpop.f32.mrb[0].mxu0
    %1881 = vdwg.mxu0
    %1882 = vmatprep.subr.bf16.mxu0 %v1255
    %1883 = vmatpush1.bf16.msra.mxu0 %v1254
    %1884 = vmatprep.subr.bf16.mxu0 %v1259
    %1885 = vmatpush1.bf16.msra.mxu0 %v1258
    %1886 = vmatprep.subr.bf16.mxu0 %v1263
    %1887 = vmatpush1.bf16.msra.mxu0 %v1262
    %1888 = vmatprep.subr.bf16.mxu0 %v1267
    %1889 = vmatpush1.bf16.msra.mxu0 %v1266
    %1890 = vmatprep.subr.bf16.mxu0 %v1271
    %1891 = vmatpush1.bf16.msra.mxu0 %v1270
    %1892 = vmatprep.subr.bf16.mxu0 %v1275
    %1893 = vmatpush1.bf16.msra.mxu0 %v1274
    %1894 = vmatprep.subr.bf16.mxu0 %v1279
    %1895 = vmatpush1.bf16.msra.mxu0 %v1278
    %1896 = vmatprep.subr.bf16.mxu0 %v1283
    %1897 = vmatpush1.bf16.msra.mxu0 %v1282
    %1898 = vmatprep.subr.bf16.mxu0 %v1287
    %1899 = vmatpush1.bf16.msra.mxu0 %v1286
    %1900 = vmatprep.subr.bf16.mxu0 %v1291
    %1901 = vmatpush1.bf16.msra.mxu0 %v1290
    %1902 = vmatprep.subr.bf16.mxu0 %v1295
    %1903 = vmatpush1.bf16.msra.mxu0 %v1294
    %1904 = vmatprep.subr.bf16.mxu0 %v1299
    %1905 = vmatpush1.bf16.msra.mxu0 %v1298
    %1906 = vmatprep.subr.bf16.mxu0 %v1303
    %1907 = vmatpush1.bf16.msra.mxu0 %v1302
    %1908 = vmatprep.subr.bf16.mxu0 %v1307
    %1909 = vmatpush1.bf16.msra.mxu0 %v1306
    %1910 = vmatprep.subr.bf16.mxu0 %v1311
    %1911 = vmatpush1.bf16.msra.mxu0 %v1310
    %1912 = vmatprep.subr.bf16.mxu0 %v1315
    %1913 = vmatpush1.bf16.msra.mxu0 %v1314
    %1914 = vmatprep.mubr.bf16.mxu0 %v75
    %1915 = vmatmul.mubr.bf16.gmra.mrb[0].mxu0 %v74
    %v1916 = vpop.f32.mrb[0].mxu0
    %v1917 = vadd.f32 %v1876, %v1916
    %v1918 = vpop.f32.mrb[0].mxu0
    %v1919 = vadd.f32 %v1878, %v1918
    %v1920 = vpop.f32.mrb[0].mxu0
    %v1921 = vpop.f32.mrb[0].mxu0
    %1922 = vdwg.mxu0
    %1923 = vmatprep.subr.bf16.mxu0 %v1319
    %1924 = vmatpush1.bf16.msra.mxu0 %v1318
    %1925 = vmatprep.subr.bf16.mxu0 %v1323
    %1926 = vmatpush1.bf16.msra.mxu0 %v1322
    %1927 = vmatprep.subr.bf16.mxu0 %v1327
    %1928 = vmatpush1.bf16.msra.mxu0 %v1326
    %1929 = vmatprep.subr.bf16.mxu0 %v1331
    %1930 = vmatpush1.bf16.msra.mxu0 %v1330
    %1931 = vmatprep.subr.bf16.mxu0 %v1335
    %1932 = vmatpush1.bf16.msra.mxu0 %v1334
    %1933 = vmatprep.subr.bf16.mxu0 %v1339
    %1934 = vmatpush1.bf16.msra.mxu0 %v1338
    %1935 = vmatprep.subr.bf16.mxu0 %v1343
    %1936 = vmatpush1.bf16.msra.mxu0 %v1342
    %1937 = vmatprep.subr.bf16.mxu0 %v1347
    %1938 = vmatpush1.bf16.msra.mxu0 %v1346
    %1939 = vmatprep.subr.bf16.mxu0 %v1351
    %1940 = vmatpush1.bf16.msra.mxu0 %v1350
    %1941 = vmatprep.subr.bf16.mxu0 %v1355
    %1942 = vmatpush1.bf16.msra.mxu0 %v1354
    %1943 = vmatprep.subr.bf16.mxu0 %v1359
    %1944 = vmatpush1.bf16.msra.mxu0 %v1358
    %1945 = vmatprep.subr.bf16.mxu0 %v1363
    %1946 = vmatpush1.bf16.msra.mxu0 %v1362
    %1947 = vmatprep.subr.bf16.mxu0 %v1367
    %1948 = vmatpush1.bf16.msra.mxu0 %v1366
    %1949 = vmatprep.subr.bf16.mxu0 %v1371
    %1950 = vmatpush1.bf16.msra.mxu0 %v1370
    %1951 = vmatprep.subr.bf16.mxu0 %v1375
    %1952 = vmatpush1.bf16.msra.mxu0 %v1374
    %1953 = vmatprep.subr.bf16.mxu0 %v1379
    %1954 = vmatpush1.bf16.msra.mxu0 %v1378
    %1955 = vmatprep.mubr.bf16.mxu0 %v77
    %1956 = vmatmul.mubr.bf16.gmra.mrb[0].mxu0 %v76
    %v1957 = vpop.f32.mrb[0].mxu0
    %v1958 = vadd.f32 %v1917, %v1957
    %v1959 = vpop.f32.mrb[0].mxu0
    %v1960 = vadd.f32 %v1919, %v1959
    %v1961 = vpop.f32.mrb[0].mxu0
    %v1962 = vpop.f32.mrb[0].mxu0
    %1963 = vdwg.mxu0
    %v1964 = vpack.c.bf16 %v1794, %v1794
    %v1965 = vpack.c.bf16 %v1796, %v1796
    %v1966 = vpack.c.bf16 %v1958, %v1958
    %v1967 = vpack.c.bf16 %v1960, %v1960
    %v1968 = vld [vmem:[%s3] sm:$0xf]
    %v1969 = vld [vmem:[%s3 + $0x4] sm:$0xf]
    %v1970 = vld [vmem:[%s3 + $0x8] sm:$0xf]
    %v1971 = vld [vmem:[%s3 + $0xc] sm:$0xf]
    %v1972 = vld [vmem:[%s3 + $0x10] sm:$0xf]
    %v1973 = vld [vmem:[%s3 + $0x14] sm:$0xf]
    %v1974 = vld [vmem:[%s3 + $0x18] sm:$0xf]
    %v1975 = vld [vmem:[%s3 + $0x1c] sm:$0xf]
    %v1976 = vld [vmem:[%s3 + $0x20] sm:$0xf]
    %v1977 = vld [vmem:[%s3 + $0x24] sm:$0xf]
    %v1978 = vld [vmem:[%s3 + $0x28] sm:$0xf]
    %v1979 = vld [vmem:[%s3 + $0x2c] sm:$0xf]
    %v1980 = vld [vmem:[%s3 + $0x30] sm:$0xf]
    %v1981 = vld [vmem:[%s3 + $0x34] sm:$0xf]
    %v1982 = vld [vmem:[%s3 + $0x38] sm:$0xf]
    %v1983 = vld [vmem:[%s3 + $0x3c] sm:$0xf]
    %v1984 = vld [vmem:[%s3 + $0x40] sm:$0xf]
    %v1985 = vld [vmem:[%s3 + $0x44] sm:$0xf]
    %v1986 = vld [vmem:[%s3 + $0x48] sm:$0xf]
    %v1987 = vld [vmem:[%s3 + $0x4c] sm:$0xf]
    %v1988 = vld [vmem:[%s3 + $0x50] sm:$0xf]
    %v1989 = vld [vmem:[%s3 + $0x54] sm:$0xf]
    %v1990 = vld [vmem:[%s3 + $0x58] sm:$0xf]
    %v1991 = vld [vmem:[%s3 + $0x5c] sm:$0xf]
    %v1992 = vld [vmem:[%s3 + $0x60] sm:$0xf]
    %v1993 = vld [vmem:[%s3 + $0x64] sm:$0xf]
    %v1994 = vld [vmem:[%s3 + $0x68] sm:$0xf]
    %v1995 = vld [vmem:[%s3 + $0x6c] sm:$0xf]
    %v1996 = vld [vmem:[%s3 + $0x70] sm:$0xf]
    %v1997 = vld [vmem:[%s3 + $0x74] sm:$0xf]
    %v1998 = vld [vmem:[%s3 + $0x78] sm:$0xf]
    %v1999 = vld [vmem:[%s3 + $0x7c] sm:$0xf]
    %v2000 = vld [vmem:[%s3 + $0x80] sm:$0xf]
    %v2001 = vld [vmem:[%s3 + $0x84] sm:$0xf]
    %v2002 = vld [vmem:[%s3 + $0x88] sm:$0xf]
    %v2003 = vld [vmem:[%s3 + $0x8c] sm:$0xf]
    %v2004 = vld [vmem:[%s3 + $0x90] sm:$0xf]
    %v2005 = vld [vmem:[%s3 + $0x94] sm:$0xf]
    %v2006 = vld [vmem:[%s3 + $0x98] sm:$0xf]
    %v2007 = vld [vmem:[%s3 + $0x9c] sm:$0xf]
    %v2008 = vld [vmem:[%s3 + $0xa0] sm:$0xf]
    %v2009 = vld [vmem:[%s3 + $0xa4] sm:$0xf]
    %v2010 = vld [vmem:[%s3 + $0xa8] sm:$0xf]
    %v2011 = vld [vmem:[%s3 + $0xac] sm:$0xf]
    %v2012 = vld [vmem:[%s3 + $0xb0] sm:$0xf]
    %v2013 = vld [vmem:[%s3 + $0xb4] sm:$0xf]
    %v2014 = vld [vmem:[%s3 + $0xb8] sm:$0xf]
    %v2015 = vld [vmem:[%s3 + $0xbc] sm:$0xf]
    %v2016 = vld [vmem:[%s3 + $0xc0] sm:$0xf]
    %v2017 = vld [vmem:[%s3 + $0xc4] sm:$0xf]
    %v2018 = vld [vmem:[%s3 + $0xc8] sm:$0xf]
    %v2019 = vld [vmem:[%s3 + $0xcc] sm:$0xf]
    %v2020 = vld [vmem:[%s3 + $0xd0] sm:$0xf]
    %v2021 = vld [vmem:[%s3 + $0xd4] sm:$0xf]
    %v2022 = vld [vmem:[%s3 + $0xd8] sm:$0xf]
    %v2023 = vld [vmem:[%s3 + $0xdc] sm:$0xf]
    %v2024 = vld [vmem:[%s3 + $0xe0] sm:$0xf]
    %v2025 = vld [vmem:[%s3 + $0xe4] sm:$0xf]
    %v2026 = vld [vmem:[%s3 + $0xe8] sm:$0xf]
    %v2027 = vld [vmem:[%s3 + $0xec] sm:$0xf]
    %v2028 = vld [vmem:[%s3 + $0xf0] sm:$0xf]
    %v2029 = vld [vmem:[%s3 + $0xf4] sm:$0xf]
    %v2030 = vld [vmem:[%s3 + $0xf8] sm:$0xf]
    %v2031 = vld [vmem:[%s3 + $0xfc] sm:$0xf]
    %v2032 = vld [vmem:[%s4] sm:$0x1]
    %v2034 = vlaneseq
    %v2035 = vshrl.u32 %v2034, 7
    %v2036 = vsub.s32 0, %v2035
    %v2037 = vrot.slane %v2032, %v2036
    %v2103 = vunpack.c.l.b16 %v1968
    %v2104 = vunpack.c.l.b16 %v1969
    %v2105 = vunpack.c.l.b16 %v1970
    %v2106 = vunpack.c.l.b16 %v1971
    %v2107 = vunpack.c.l.b16 %v1972
    %v2108 = vunpack.c.l.b16 %v1973
    %v2109 = vunpack.c.l.b16 %v1974
    %v2110 = vunpack.c.l.b16 %v1975
    %v2111 = vunpack.c.l.b16 %v1976
    %v2112 = vunpack.c.l.b16 %v1977
    %v2113 = vunpack.c.l.b16 %v1978
    %v2114 = vunpack.c.l.b16 %v1979
    %v2115 = vunpack.c.l.b16 %v1980
    %v2116 = vunpack.c.l.b16 %v1981
    %v2117 = vunpack.c.l.b16 %v1982
    %v2118 = vunpack.c.l.b16 %v1983
    %v2119 = vunpack.c.l.b16 %v1984
    %v2120 = vunpack.c.l.b16 %v1985
    %v2121 = vunpack.c.l.b16 %v1986
    %v2122 = vunpack.c.l.b16 %v1987
    %v2123 = vunpack.c.l.b16 %v1988
    %v2124 = vunpack.c.l.b16 %v1989
    %v2125 = vunpack.c.l.b16 %v1990
    %v2126 = vunpack.c.l.b16 %v1991
    %v2127 = vunpack.c.l.b16 %v1992
    %v2128 = vunpack.c.l.b16 %v1993
    %v2129 = vunpack.c.l.b16 %v1994
    %v2130 = vunpack.c.l.b16 %v1995
    %v2131 = vunpack.c.l.b16 %v1996
    %v2132 = vunpack.c.l.b16 %v1997
    %v2133 = vunpack.c.l.b16 %v1998
    %v2134 = vunpack.c.l.b16 %v1999
    %v2135 = vunpack.c.l.b16 %v2000
    %v2136 = vunpack.c.l.b16 %v2001
    %v2137 = vunpack.c.l.b16 %v2002
    %v2138 = vunpack.c.l.b16 %v2003
    %v2139 = vunpack.c.l.b16 %v2004
    %v2140 = vunpack.c.l.b16 %v2005
    %v2141 = vunpack.c.l.b16 %v2006
    %v2142 = vunpack.c.l.b16 %v2007
    %v2143 = vunpack.c.l.b16 %v2008
    %v2144 = vunpack.c.l.b16 %v2009
    %v2145 = vunpack.c.l.b16 %v2010
    %v2146 = vunpack.c.l.b16 %v2011
    %v2147 = vunpack.c.l.b16 %v2012
    %v2148 = vunpack.c.l.b16 %v2013
    %v2149 = vunpack.c.l.b16 %v2014
    %v2150 = vunpack.c.l.b16 %v2015
    %v2151 = vunpack.c.l.b16 %v2016
    %v2152 = vunpack.c.l.b16 %v2017
    %v2153 = vunpack.c.l.b16 %v2018
    %v2154 = vunpack.c.l.b16 %v2019
    %v2155 = vunpack.c.l.b16 %v2020
    %v2156 = vunpack.c.l.b16 %v2021
    %v2157 = vunpack.c.l.b16 %v2022
    %v2158 = vunpack.c.l.b16 %v2023
    %v2159 = vunpack.c.l.b16 %v2024
    %v2160 = vunpack.c.l.b16 %v2025
    %v2161 = vunpack.c.l.b16 %v2026
    %v2162 = vunpack.c.l.b16 %v2027
    %v2163 = vunpack.c.l.b16 %v2028
    %v2164 = vunpack.c.l.b16 %v2029
    %v2165 = vunpack.c.l.b16 %v2030
    %v2166 = vunpack.c.l.b16 %v2031
    %v2167 = vpack.c.b16 %v2104, %v2103
    %v2168 = vpack.c.b16 %v2106, %v2105
    %v2169 = vpack.c.b16 %v2108, %v2107
    %v2170 = vpack.c.b16 %v2110, %v2109
    %v2171 = vpack.c.b16 %v2112, %v2111
    %v2172 = vpack.c.b16 %v2114, %v2113
    %v2173 = vpack.c.b16 %v2116, %v2115
    %v2174 = vpack.c.b16 %v2118, %v2117
    %v2175 = vpack.c.b16 %v2120, %v2119
    %v2176 = vpack.c.b16 %v2122, %v2121
    %v2177 = vpack.c.b16 %v2124, %v2123
    %v2178 = vpack.c.b16 %v2126, %v2125
    %v2179 = vpack.c.b16 %v2128, %v2127
    %v2180 = vpack.c.b16 %v2130, %v2129
    %v2181 = vpack.c.b16 %v2132, %v2131
    %v2182 = vpack.c.b16 %v2134, %v2133
    %v2183 = vpack.c.b16 %v2136, %v2135
    %v2184 = vpack.c.b16 %v2138, %v2137
    %v2185 = vpack.c.b16 %v2140, %v2139
    %v2186 = vpack.c.b16 %v2142, %v2141
    %v2187 = vpack.c.b16 %v2144, %v2143
    %v2188 = vpack.c.b16 %v2146, %v2145
    %v2189 = vpack.c.b16 %v2148, %v2147
    %v2190 = vpack.c.b16 %v2150, %v2149
    %v2191 = vpack.c.b16 %v2152, %v2151
    %v2192 = vpack.c.b16 %v2154, %v2153
    %v2193 = vpack.c.b16 %v2156, %v2155
    %v2194 = vpack.c.b16 %v2158, %v2157
    %v2195 = vpack.c.b16 %v2160, %v2159
    %v2196 = vpack.c.b16 %v2162, %v2161
    %v2197 = vpack.c.b16 %v2164, %v2163
    %v2198 = vpack.c.b16 %v2166, %v2165
    %2231 = vmatprep.subr.bf16.mxu0 0
    %2232 = vmatpush1.bf16.msra.mxu0 %v2167
    %2233 = vmatprep.subr.bf16.mxu0 0
    %2234 = vmatpush1.bf16.msra.mxu0 %v2168
    %2235 = vmatprep.subr.bf16.mxu0 0
    %2236 = vmatpush1.bf16.msra.mxu0 %v2169
    %2237 = vmatprep.subr.bf16.mxu0 0
    %2238 = vmatpush1.bf16.msra.mxu0 %v2170
    %2239 = vmatprep.subr.bf16.mxu0 0
    %2240 = vmatpush1.bf16.msra.mxu0 %v2171
    %2241 = vmatprep.subr.bf16.mxu0 0
    %2242 = vmatpush1.bf16.msra.mxu0 %v2172
    %2243 = vmatprep.subr.bf16.mxu0 0
    %2244 = vmatpush1.bf16.msra.mxu0 %v2173
    %2245 = vmatprep.subr.bf16.mxu0 0
    %2246 = vmatpush1.bf16.msra.mxu0 %v2174
    %2247 = vmatprep.subr.bf16.mxu0 0
    %2248 = vmatpush1.bf16.msra.mxu0 %v2175
    %2249 = vmatprep.subr.bf16.mxu0 0
    %2250 = vmatpush1.bf16.msra.mxu0 %v2176
    %2251 = vmatprep.subr.bf16.mxu0 0
    %2252 = vmatpush1.bf16.msra.mxu0 %v2177
    %2253 = vmatprep.subr.bf16.mxu0 0
    %2254 = vmatpush1.bf16.msra.mxu0 %v2178
    %2255 = vmatprep.subr.bf16.mxu0 0
    %2256 = vmatpush1.bf16.msra.mxu0 %v2179
    %2257 = vmatprep.subr.bf16.mxu0 0
    %2258 = vmatpush1.bf16.msra.mxu0 %v2180
    %2259 = vmatprep.subr.bf16.mxu0 0
    %2260 = vmatpush1.bf16.msra.mxu0 %v2181
    %2261 = vmatprep.subr.bf16.mxu0 0
    %2262 = vmatpush1.bf16.msra.mxu0 %v2182
    %2263 = vmatprep.mubr.bf16.mxu0 %v1965
    %2264 = vmatmul.mubr.bf16.gmra.mrb[0].mxu0 %v1964
    %v2265 = vpop.f32.mrb[0].mxu0
    %v2266 = vadd.f32 %v2037, %v2265
    %v2267 = vpop.f32.mrb[0].mxu0
    %v2268 = vpop.f32.mrb[0].mxu0
    %v2269 = vpop.f32.mrb[0].mxu0
    %2270 = vdwg.mxu0
    %2271 = vmatprep.subr.bf16.mxu0 0
    %2272 = vmatpush1.bf16.msra.mxu0 %v2183
    %2273 = vmatprep.subr.bf16.mxu0 0
    %2274 = vmatpush1.bf16.msra.mxu0 %v2184
    %2275 = vmatprep.subr.bf16.mxu0 0
    %2276 = vmatpush1.bf16.msra.mxu0 %v2185
    %2277 = vmatprep.subr.bf16.mxu0 0
    %2278 = vmatpush1.bf16.msra.mxu0 %v2186
    %2279 = vmatprep.subr.bf16.mxu0 0
    %2280 = vmatpush1.bf16.msra.mxu0 %v2187
    %2281 = vmatprep.subr.bf16.mxu0 0
    %2282 = vmatpush1.bf16.msra.mxu0 %v2188
    %2283 = vmatprep.subr.bf16.mxu0 0
    %2284 = vmatpush1.bf16.msra.mxu0 %v2189
    %2285 = vmatprep.subr.bf16.mxu0 0
    %2286 = vmatpush1.bf16.msra.mxu0 %v2190
    %2287 = vmatprep.subr.bf16.mxu0 0
    %2288 = vmatpush1.bf16.msra.mxu0 %v2191
    %2289 = vmatprep.subr.bf16.mxu0 0
    %2290 = vmatpush1.bf16.msra.mxu0 %v2192
    %2291 = vmatprep.subr.bf16.mxu0 0
    %2292 = vmatpush1.bf16.msra.mxu0 %v2193
    %2293 = vmatprep.subr.bf16.mxu0 0
    %2294 = vmatpush1.bf16.msra.mxu0 %v2194
    %2295 = vmatprep.subr.bf16.mxu0 0
    %2296 = vmatpush1.bf16.msra.mxu0 %v2195
    %2297 = vmatprep.subr.bf16.mxu0 0
    %2298 = vmatpush1.bf16.msra.mxu0 %v2196
    %2299 = vmatprep.subr.bf16.mxu0 0
    %2300 = vmatpush1.bf16.msra.mxu0 %v2197
    %2301 = vmatprep.subr.bf16.mxu0 0
    %2302 = vmatpush1.bf16.msra.mxu0 %v2198
    %2303 = vmatprep.mubr.bf16.mxu0 %v1967
    %2304 = vmatmul.mubr.bf16.gmra.mrb[0].mxu0 %v1966
    %v2305 = vpop.f32.mrb[0].mxu0
    %v2306 = vadd.f32 %v2266, %v2305
    %v2307 = vpop.f32.mrb[0].mxu0
    %v2308 = vpop.f32.mrb[0].mxu0
    %v2309 = vpop.f32.mrb[0].mxu0
    %2310 = vdwg.mxu0
    %v2311 = vpack.c.bf16 %v2306, %v2306
    %v2312 = vld [vmem:[%s5] sm:$0xff]
    %v2313 = vld [vmem:[%s5 + $0x8] sm:$0xff]
    %v2314 = vld [vmem:[%s5 + $0x10] sm:$0xff]
    %v2315 = vld [vmem:[%s5 + $0x18] sm:$0xff]
    %v2316 = vld [vmem:[%s5 + $0x20] sm:$0xff]
    %v2317 = vld [vmem:[%s5 + $0x28] sm:$0xff]
    %v2318 = vld [vmem:[%s5 + $0x30] sm:$0xff]
    %v2319 = vld [vmem:[%s5 + $0x38] sm:$0xff]
    %v2320 = vld [vmem:[%s5 + $0x40] sm:$0xff]
    %v2321 = vld [vmem:[%s5 + $0x48] sm:$0xff]
    %v2322 = vld [vmem:[%s5 + $0x50] sm:$0xff]
    %v2323 = vld [vmem:[%s5 + $0x58] sm:$0xff]
    %v2324 = vld [vmem:[%s5 + $0x60] sm:$0xff]
    %v2325 = vld [vmem:[%s5 + $0x68] sm:$0xff]
    %v2326 = vld [vmem:[%s5 + $0x70] sm:$0xff]
    %v2327 = vld [vmem:[%s5 + $0x78] sm:$0xff]
    %v2328 = vld [vmem:[%s6] sm:$0xf]
    %v2330 = vlaneseq
    %v2331 = vshrl.u32 %v2330, 7
    %v2332 = vsub.s32 0, %v2331
    %v2333 = vrot.slane %v2328, %v2332
    %v2334 = vlaneseq
    %v2335 = vshrl.u32 %v2334, 7
    %v2336 = vsub.s32 1, %v2335
    %v2337 = vrot.slane %v2328, %v2336
    %v2338 = vlaneseq
    %v2339 = vshrl.u32 %v2338, 7
    %v2340 = vsub.s32 2, %v2339
    %v2341 = vrot.slane %v2328, %v2340
    %v2342 = vlaneseq
    %v2343 = vshrl.u32 %v2342, 7
    %v2344 = vsub.s32 3, %v2343
    %v2345 = vrot.slane %v2328, %v2344
    %v2366 = vunpack.c.l.b16 %v2312
    %v2367 = vunpack.c.h.b16 %v2312
    %v2368 = vunpack.c.l.b16 %v2313
    %v2369 = vunpack.c.h.b16 %v2313
    %v2370 = vunpack.c.l.b16 %v2314
    %v2371 = vunpack.c.h.b16 %v2314
    %v2372 = vunpack.c.l.b16 %v2315
    %v2373 = vunpack.c.h.b16 %v2315
    %v2374 = vunpack.c.l.b16 %v2316
    %v2375 = vunpack.c.h.b16 %v2316
    %v2376 = vunpack.c.l.b16 %v2317
    %v2377 = vunpack.c.h.b16 %v2317
    %v2378 = vunpack.c.l.b16 %v2318
    %v2379 = vunpack.c.h.b16 %v2318
    %v2380 = vunpack.c.l.b16 %v2319
    %v2381 = vunpack.c.h.b16 %v2319
    %v2382 = vunpack.c.l.b16 %v2320
    %v2383 = vunpack.c.h.b16 %v2320
    %v2384 = vunpack.c.l.b16 %v2321
    %v2385 = vunpack.c.h.b16 %v2321
    %v2386 = vunpack.c.l.b16 %v2322
    %v2387 = vunpack.c.h.b16 %v2322
    %v2388 = vunpack.c.l.b16 %v2323
    %v2389 = vunpack.c.h.b16 %v2323
    %v2390 = vunpack.c.l.b16 %v2324
    %v2391 = vunpack.c.h.b16 %v2324
    %v2392 = vunpack.c.l.b16 %v2325
    %v2393 = vunpack.c.h.b16 %v2325
    %v2394 = vunpack.c.l.b16 %v2326
    %v2395 = vunpack.c.h.b16 %v2326
    %v2396 = vunpack.c.l.b16 %v2327
    %v2397 = vunpack.c.h.b16 %v2327
    %v2398 = vpack.c.b16 %v2370, %v2366
    %v2399 = vpack.c.b16 %v2371, %v2367
    %v2400 = vpack.c.b16 %v2372, %v2368
    %v2401 = vpack.c.b16 %v2373, %v2369
    %v2402 = vpack.c.b16 %v2378, %v2374
    %v2403 = vpack.c.b16 %v2379, %v2375
    %v2404 = vpack.c.b16 %v2380, %v2376
    %v2405 = vpack.c.b16 %v2381, %v2377
    %v2406 = vpack.c.b16 %v2386, %v2382
    %v2407 = vpack.c.b16 %v2387, %v2383
    %v2408 = vpack.c.b16 %v2388, %v2384
    %v2409 = vpack.c.b16 %v2389, %v2385
    %v2410 = vpack.c.b16 %v2394, %v2390
    %v2411 = vpack.c.b16 %v2395, %v2391
    %v2412 = vpack.c.b16 %v2396, %v2392
    %v2413 = vpack.c.b16 %v2397, %v2393
    %vm2430 = vcmask 523264
    %v2432 = vsel %vm2430, %v2311, 0
    %2434 = vmatprep.subr.bf16.mxu0 %v2399
    %2435 = vmatpush1.bf16.msra.mxu0 %v2398
    %2436 = vmatprep.subr.bf16.mxu0 %v2403
    %2437 = vmatpush1.bf16.msra.mxu0 %v2402
    %2438 = vmatprep.subr.bf16.mxu0 %v2407
    %2439 = vmatpush1.bf16.msra.mxu0 %v2406
    %2440 = vmatprep.subr.bf16.mxu0 %v2411
    %2441 = vmatpush1.bf16.msra.mxu0 %v2410
    %2442 = vmatprep.subr.bf16.mxu0 0
    %2443 = vmatpush1.bf16.msra.mxu0 0
    %2444 = vmatprep.subr.bf16.mxu0 0
    %2445 = vmatpush1.bf16.msra.mxu0 0
    %2446 = vmatprep.subr.bf16.mxu0 0
    %2447 = vmatpush1.bf16.msra.mxu0 0
    %2448 = vmatprep.subr.bf16.mxu0 0
    %2449 = vmatpush1.bf16.msra.mxu0 0
    %2450 = vmatprep.subr.bf16.mxu0 0
    %2451 = vmatpush1.bf16.msra.mxu0 0
    %2452 = vmatprep.subr.bf16.mxu0 0
    %2453 = vmatpush1.bf16.msra.mxu0 0
    %2454 = vmatprep.subr.bf16.mxu0 0
    %2455 = vmatpush1.bf16.msra.mxu0 0
    %2456 = vmatprep.subr.bf16.mxu0 0
    %2457 = vmatpush1.bf16.msra.mxu0 0
    %2458 = vmatprep.subr.bf16.mxu0 0
    %2459 = vmatpush1.bf16.msra.mxu0 0
    %2460 = vmatprep.subr.bf16.mxu0 0
    %2461 = vmatpush1.bf16.msra.mxu0 0
    %2462 = vmatprep.subr.bf16.mxu0 0
    %2463 = vmatpush1.bf16.msra.mxu0 0
    %2464 = vmatprep.subr.bf16.mxu0 0
    %2465 = vmatpush1.bf16.msra.mxu0 0
    %2466 = vmatprep.mubr.bf16.mxu0 0
    %2467 = vmatmul.mubr.bf16.gmra.mrb[0].mxu0 %v2432
    %v2468 = vpop.f32.mrb[0].mxu0
    %v2469 = vadd.f32 %v2333, %v2468
    %v2470 = vpop.f32.mrb[0].mxu0
    %v2471 = vadd.f32 %v2337, %v2470
    %v2472 = vpop.f32.mrb[0].mxu0
    %v2473 = vpop.f32.mrb[0].mxu0
    %2474 = vdwg.mxu0
    %2475 = vmatprep.subr.bf16.mxu0 %v2401
    %2476 = vmatpush1.bf16.msra.mxu0 %v2400
    %2477 = vmatprep.subr.bf16.mxu0 %v2405
    %2478 = vmatpush1.bf16.msra.mxu0 %v2404
    %2479 = vmatprep.subr.bf16.mxu0 %v2409
    %2480 = vmatpush1.bf16.msra.mxu0 %v2408
    %2481 = vmatprep.subr.bf16.mxu0 %v2413
    %2482 = vmatpush1.bf16.msra.mxu0 %v2412
    %2483 = vmatprep.subr.bf16.mxu0 0
    %2484 = vmatpush1.bf16.msra.mxu0 0
    %2485 = vmatprep.subr.bf16.mxu0 0
    %2486 = vmatpush1.bf16.msra.mxu0 0
    %2487 = vmatprep.subr.bf16.mxu0 0
    %2488 = vmatpush1.bf16.msra.mxu0 0
    %2489 = vmatprep.subr.bf16.mxu0 0
    %2490 = vmatpush1.bf16.msra.mxu0 0
    %2491 = vmatprep.subr.bf16.mxu0 0
    %2492 = vmatpush1.bf16.msra.mxu0 0
    %2493 = vmatprep.subr.bf16.mxu0 0
    %2494 = vmatpush1.bf16.msra.mxu0 0
    %2495 = vmatprep.subr.bf16.mxu0 0
    %2496 = vmatpush1.bf16.msra.mxu0 0
    %2497 = vmatprep.subr.bf16.mxu0 0
    %2498 = vmatpush1.bf16.msra.mxu0 0
    %2499 = vmatprep.subr.bf16.mxu0 0
    %2500 = vmatpush1.bf16.msra.mxu0 0
    %2501 = vmatprep.subr.bf16.mxu0 0
    %2502 = vmatpush1.bf16.msra.mxu0 0
    %2503 = vmatprep.subr.bf16.mxu0 0
    %2504 = vmatpush1.bf16.msra.mxu0 0
    %2505 = vmatprep.subr.bf16.mxu0 0
    %2506 = vmatpush1.bf16.msra.mxu0 0
    %2507 = vmatprep.mubr.bf16.mxu0 0
    %2508 = vmatmul.mubr.bf16.gmra.mrb[0].mxu0 %v2432
    %v2509 = vpop.f32.mrb[0].mxu0
    %v2510 = vadd.f32 %v2341, %v2509
    %v2511 = vpop.f32.mrb[0].mxu0
    %v2512 = vadd.f32 %v2345, %v2511
    %v2513 = vpop.f32.mrb[0].mxu0
    %v2514 = vpop.f32.mrb[0].mxu0
    %2515 = vdwg.mxu0
    %v2516 = vpack.c.bf16 %v2469, %v2469
    %v2517 = vpack.c.bf16 %v2471, %v2471
    %v2518 = vpack.c.bf16 %v2510, %v2510
    %v2519 = vpack.c.bf16 %v2512, %v2512
    %v2520 = vld [vmem:[#allocation5] sm:$0xff]
    %v2521 = vld [vmem:[#allocation5 + $0x8] sm:$0xff]
    %v2522 = vld [vmem:[#allocation5 + $0x10] sm:$0xff]
    %v2523 = vld [vmem:[#allocation5 + $0x18] sm:$0xff]
    %v2524 = vld [vmem:[#allocation5 + $0x20] sm:$0xff]
    %v2525 = vld [vmem:[#allocation5 + $0x28] sm:$0xff]
    %v2526 = vld [vmem:[#allocation5 + $0x30] sm:$0xff]
    %v2527 = vld [vmem:[#allocation5 + $0x38] sm:$0xff]
    %v2528 = vld [vmem:[#allocation5 + $0x40] sm:$0xff]
    %v2529 = vld [vmem:[#allocation5 + $0x48] sm:$0xff]
    %v2530 = vld [vmem:[#allocation5 + $0x50] sm:$0xff]
    %v2531 = vld [vmem:[#allocation5 + $0x58] sm:$0xff]
    %v2532 = vld [vmem:[#allocation5 + $0x60] sm:$0xff]
    %v2533 = vld [vmem:[#allocation5 + $0x68] sm:$0xff]
    %v2534 = vld [vmem:[#allocation5 + $0x70] sm:$0xff]
    %v2535 = vld [vmem:[#allocation5 + $0x78] sm:$0xff]
    %v2536 = vld [vmem:[#allocation5 + $0x80] sm:$0xff]
    %v2537 = vld [vmem:[#allocation5 + $0x88] sm:$0xff]
    %v2538 = vld [vmem:[#allocation5 + $0x90] sm:$0xff]
    %v2539 = vld [vmem:[#allocation5 + $0x98] sm:$0xff]
    %v2540 = vld [vmem:[#allocation5 + $0xa0] sm:$0xff]
    %v2541 = vld [vmem:[#allocation5 + $0xa8] sm:$0xff]
    %v2542 = vld [vmem:[#allocation5 + $0xb0] sm:$0xff]
    %v2543 = vld [vmem:[#allocation5 + $0xb8] sm:$0xff]
    %v2544 = vld [vmem:[#allocation5 + $0xc0] sm:$0xff]
    %v2545 = vld [vmem:[#allocation5 + $0xc8] sm:$0xff]
    %v2546 = vld [vmem:[#allocation5 + $0xd0] sm:$0xff]
    %v2547 = vld [vmem:[#allocation5 + $0xd8] sm:$0xff]
    %v2548 = vld [vmem:[#allocation5 + $0xe0] sm:$0xff]
    %v2549 = vld [vmem:[#allocation5 + $0xe8] sm:$0xff]
    %v2550 = vld [vmem:[#allocation5 + $0xf0] sm:$0xff]
    %v2551 = vld [vmem:[#allocation5 + $0xf8] sm:$0xff]
    %v2552 = vld [vmem:[#allocation5 + $0x100] sm:$0xff]
    %v2553 = vld [vmem:[#allocation5 + $0x108] sm:$0xff]
    %v2554 = vld [vmem:[#allocation5 + $0x110] sm:$0xff]
    %v2555 = vld [vmem:[#allocation5 + $0x118] sm:$0xff]
    %v2556 = vld [vmem:[#allocation5 + $0x120] sm:$0xff]
    %v2557 = vld [vmem:[#allocation5 + $0x128] sm:$0xff]
    %v2558 = vld [vmem:[#allocation5 + $0x130] sm:$0xff]
    %v2559 = vld [vmem:[#allocation5 + $0x138] sm:$0xff]
    %v2560 = vld [vmem:[#allocation5 + $0x140] sm:$0xff]
    %v2561 = vld [vmem:[#allocation5 + $0x148] sm:$0xff]
    %v2562 = vld [vmem:[#allocation5 + $0x150] sm:$0xff]
    %v2563 = vld [vmem:[#allocation5 + $0x158] sm:$0xff]
    %v2564 = vld [vmem:[#allocation5 + $0x160] sm:$0xff]
    %v2565 = vld [vmem:[#allocation5 + $0x168] sm:$0xff]
    %v2566 = vld [vmem:[#allocation5 + $0x170] sm:$0xff]
    %v2567 = vld [vmem:[#allocation5 + $0x178] sm:$0xff]
    %v2568 = vld [vmem:[#allocation5 + $0x180] sm:$0xff]
    %v2569 = vld [vmem:[#allocation5 + $0x188] sm:$0xff]
    %v2570 = vld [vmem:[#allocation5 + $0x190] sm:$0xff]
    %v2571 = vld [vmem:[#allocation5 + $0x198] sm:$0xff]
    %v2572 = vld [vmem:[#allocation5 + $0x1a0] sm:$0xff]
    %v2573 = vld [vmem:[#allocation5 + $0x1a8] sm:$0xff]
    %v2574 = vld [vmem:[#allocation5 + $0x1b0] sm:$0xff]
    %v2575 = vld [vmem:[#allocation5 + $0x1b8] sm:$0xff]
    %v2576 = vld [vmem:[#allocation5 + $0x1c0] sm:$0xff]
    %v2577 = vld [vmem:[#allocation5 + $0x1c8] sm:$0xff]
    %v2578 = vld [vmem:[#allocation5 + $0x1d0] sm:$0xff]
    %v2579 = vld [vmem:[#allocation5 + $0x1d8] sm:$0xff]
    %v2580 = vld [vmem:[#allocation5 + $0x1e0] sm:$0xff]
    %v2581 = vld [vmem:[#allocation5 + $0x1e8] sm:$0xff]
    %v2582 = vld [vmem:[#allocation5 + $0x1f0] sm:$0xff]
    %v2583 = vld [vmem:[#allocation5 + $0x1f8] sm:$0xff]
    %v2584 = vld [vmem:[#allocation5 + $0x200] sm:$0xff]
    %v2585 = vld [vmem:[#allocation5 + $0x208] sm:$0xff]
    %v2586 = vld [vmem:[#allocation5 + $0x210] sm:$0xff]
    %v2587 = vld [vmem:[#allocation5 + $0x218] sm:$0xff]
    %v2588 = vld [vmem:[#allocation5 + $0x220] sm:$0xff]
    %v2589 = vld [vmem:[#allocation5 + $0x228] sm:$0xff]
    %v2590 = vld [vmem:[#allocation5 + $0x230] sm:$0xff]
    %v2591 = vld [vmem:[#allocation5 + $0x238] sm:$0xff]
    %v2592 = vld [vmem:[#allocation5 + $0x240] sm:$0xff]
    %v2593 = vld [vmem:[#allocation5 + $0x248] sm:$0xff]
    %v2594 = vld [vmem:[#allocation5 + $0x250] sm:$0xff]
    %v2595 = vld [vmem:[#allocation5 + $0x258] sm:$0xff]
    %v2596 = vld [vmem:[#allocation5 + $0x260] sm:$0xff]
    %v2597 = vld [vmem:[#allocation5 + $0x268] sm:$0xff]
    %v2598 = vld [vmem:[#allocation5 + $0x270] sm:$0xff]
    %v2599 = vld [vmem:[#allocation5 + $0x278] sm:$0xff]
    %v2600 = vld [vmem:[#allocation5 + $0x280] sm:$0xff]
    %v2601 = vld [vmem:[#allocation5 + $0x288] sm:$0xff]
    %v2602 = vld [vmem:[#allocation5 + $0x290] sm:$0xff]
    %v2603 = vld [vmem:[#allocation5 + $0x298] sm:$0xff]
    %v2604 = vld [vmem:[#allocation5 + $0x2a0] sm:$0xff]
    %v2605 = vld [vmem:[#allocation5 + $0x2a8] sm:$0xff]
    %v2606 = vld [vmem:[#allocation5 + $0x2b0] sm:$0xff]
    %v2607 = vld [vmem:[#allocation5 + $0x2b8] sm:$0xff]
    %v2608 = vld [vmem:[#allocation5 + $0x2c0] sm:$0xff]
    %v2609 = vld [vmem:[#allocation5 + $0x2c8] sm:$0xff]
    %v2610 = vld [vmem:[#allocation5 + $0x2d0] sm:$0xff]
    %v2611 = vld [vmem:[#allocation5 + $0x2d8] sm:$0xff]
    %v2612 = vld [vmem:[#allocation5 + $0x2e0] sm:$0xff]
    %v2613 = vld [vmem:[#allocation5 + $0x2e8] sm:$0xff]
    %v2614 = vld [vmem:[#allocation5 + $0x2f0] sm:$0xff]
    %v2615 = vld [vmem:[#allocation5 + $0x2f8] sm:$0xff]
    %v2616 = vld [vmem:[#allocation5 + $0x300] sm:$0xff]
    %v2617 = vld [vmem:[#allocation5 + $0x308] sm:$0xff]
    %v2618 = vld [vmem:[#allocation5 + $0x310] sm:$0xff]
    %v2619 = vld [vmem:[#allocation5 + $0x318] sm:$0xff]
    %v2620 = vld [vmem:[#allocation5 + $0x320] sm:$0xff]
    %v2621 = vld [vmem:[#allocation5 + $0x328] sm:$0xff]
    %v2622 = vld [vmem:[#allocation5 + $0x330] sm:$0xff]
    %v2623 = vld [vmem:[#allocation5 + $0x338] sm:$0xff]
    %v2624 = vld [vmem:[#allocation5 + $0x340] sm:$0xff]
    %v2625 = vld [vmem:[#allocation5 + $0x348] sm:$0xff]
    %v2626 = vld [vmem:[#allocation5 + $0x350] sm:$0xff]
    %v2627 = vld [vmem:[#allocation5 + $0x358] sm:$0xff]
    %v2628 = vld [vmem:[#allocation5 + $0x360] sm:$0xff]
    %v2629 = vld [vmem:[#allocation5 + $0x368] sm:$0xff]
    %v2630 = vld [vmem:[#allocation5 + $0x370] sm:$0xff]
    %v2631 = vld [vmem:[#allocation5 + $0x378] sm:$0xff]
    %v2632 = vld [vmem:[#allocation5 + $0x380] sm:$0xff]
    %v2633 = vld [vmem:[#allocation5 + $0x388] sm:$0xff]
    %v2634 = vld [vmem:[#allocation5 + $0x390] sm:$0xff]
    %v2635 = vld [vmem:[#allocation5 + $0x398] sm:$0xff]
    %v2636 = vld [vmem:[#allocation5 + $0x3a0] sm:$0xff]
    %v2637 = vld [vmem:[#allocation5 + $0x3a8] sm:$0xff]
    %v2638 = vld [vmem:[#allocation5 + $0x3b0] sm:$0xff]
    %v2639 = vld [vmem:[#allocation5 + $0x3b8] sm:$0xff]
    %v2640 = vld [vmem:[#allocation5 + $0x3c0] sm:$0xff]
    %v2641 = vld [vmem:[#allocation5 + $0x3c8] sm:$0xff]
    %v2642 = vld [vmem:[#allocation5 + $0x3d0] sm:$0xff]
    %v2643 = vld [vmem:[#allocation5 + $0x3d8] sm:$0xff]
    %v2644 = vld [vmem:[#allocation5 + $0x3e0] sm:$0xff]
    %v2645 = vld [vmem:[#allocation5 + $0x3e8] sm:$0xff]
    %v2646 = vld [vmem:[#allocation5 + $0x3f0] sm:$0xff]
    %v2647 = vld [vmem:[#allocation5 + $0x3f8] sm:$0xff]
    %v2648 = vld [vmem:[#allocation5 + $0x400] sm:$0xff]
    %v2649 = vld [vmem:[#allocation5 + $0x408] sm:$0xff]
    %v2650 = vld [vmem:[#allocation5 + $0x410] sm:$0xff]
    %v2651 = vld [vmem:[#allocation5 + $0x418] sm:$0xff]
    %v2652 = vld [vmem:[#allocation5 + $0x420] sm:$0xff]
    %v2653 = vld [vmem:[#allocation5 + $0x428] sm:$0xff]
    %v2654 = vld [vmem:[#allocation5 + $0x430] sm:$0xff]
    %v2655 = vld [vmem:[#allocation5 + $0x438] sm:$0xff]
    %v2656 = vld [vmem:[#allocation5 + $0x440] sm:$0xff]
    %v2657 = vld [vmem:[#allocation5 + $0x448] sm:$0xff]
    %v2658 = vld [vmem:[#allocation5 + $0x450] sm:$0xff]
    %v2659 = vld [vmem:[#allocation5 + $0x458] sm:$0xff]
    %v2660 = vld [vmem:[#allocation5 + $0x460] sm:$0xff]
    %v2661 = vld [vmem:[#allocation5 + $0x468] sm:$0xff]
    %v2662 = vld [vmem:[#allocation5 + $0x470] sm:$0xff]
    %v2663 = vld [vmem:[#allocation5 + $0x478] sm:$0xff]
    %v2664 = vld [vmem:[#allocation5 + $0x480] sm:$0xff]
    %v2665 = vld [vmem:[#allocation5 + $0x488] sm:$0xff]
    %v2666 = vld [vmem:[#allocation5 + $0x490] sm:$0xff]
    %v2667 = vld [vmem:[#allocation5 + $0x498] sm:$0xff]
    %v2668 = vld [vmem:[#allocation5 + $0x4a0] sm:$0xff]
    %v2669 = vld [vmem:[#allocation5 + $0x4a8] sm:$0xff]
    %v2670 = vld [vmem:[#allocation5 + $0x4b0] sm:$0xff]
    %v2671 = vld [vmem:[#allocation5 + $0x4b8] sm:$0xff]
    %v2672 = vld [vmem:[#allocation5 + $0x4c0] sm:$0xff]
    %v2673 = vld [vmem:[#allocation5 + $0x4c8] sm:$0xff]
    %v2674 = vld [vmem:[#allocation5 + $0x4d0] sm:$0xff]
    %v2675 = vld [vmem:[#allocation5 + $0x4d8] sm:$0xff]
    %v2676 = vld [vmem:[#allocation5 + $0x4e0] sm:$0xff]
    %v2677 = vld [vmem:[#allocation5 + $0x4e8] sm:$0xff]
    %v2678 = vld [vmem:[#allocation5 + $0x4f0] sm:$0xff]
    %v2679 = vld [vmem:[#allocation5 + $0x4f8] sm:$0xff]
    %v2680 = vld [vmem:[#allocation5 + $0x500] sm:$0xff]
    %v2681 = vld [vmem:[#allocation5 + $0x508] sm:$0xff]
    %v2682 = vld [vmem:[#allocation5 + $0x510] sm:$0xff]
    %v2683 = vld [vmem:[#allocation5 + $0x518] sm:$0xff]
    %v2684 = vld [vmem:[#allocation5 + $0x520] sm:$0xff]
    %v2685 = vld [vmem:[#allocation5 + $0x528] sm:$0xff]
    %v2686 = vld [vmem:[#allocation5 + $0x530] sm:$0xff]
    %v2687 = vld [vmem:[#allocation5 + $0x538] sm:$0xff]
    %v2688 = vld [vmem:[#allocation5 + $0x540] sm:$0xff]
    %v2689 = vld [vmem:[#allocation5 + $0x548] sm:$0xff]
    %v2690 = vld [vmem:[#allocation5 + $0x550] sm:$0xff]
    %v2691 = vld [vmem:[#allocation5 + $0x558] sm:$0xff]
    %v2692 = vld [vmem:[#allocation5 + $0x560] sm:$0xff]
    %v2693 = vld [vmem:[#allocation5 + $0x568] sm:$0xff]
    %v2694 = vld [vmem:[#allocation5 + $0x570] sm:$0xff]
    %v2695 = vld [vmem:[#allocation5 + $0x578] sm:$0xff]
    %v2696 = vld [vmem:[#allocation5 + $0x580] sm:$0xff]
    %v2697 = vld [vmem:[#allocation5 + $0x588] sm:$0xff]
    %v2698 = vld [vmem:[#allocation5 + $0x590] sm:$0xff]
    %v2699 = vld [vmem:[#allocation5 + $0x598] sm:$0xff]
    %v2700 = vld [vmem:[#allocation5 + $0x5a0] sm:$0xff]
    %v2701 = vld [vmem:[#allocation5 + $0x5a8] sm:$0xff]
    %v2702 = vld [vmem:[#allocation5 + $0x5b0] sm:$0xff]
    %v2703 = vld [vmem:[#allocation5 + $0x5b8] sm:$0xff]
    %v2704 = vld [vmem:[#allocation5 + $0x5c0] sm:$0xff]
    %v2705 = vld [vmem:[#allocation5 + $0x5c8] sm:$0xff]
    %v2706 = vld [vmem:[#allocation5 + $0x5d0] sm:$0xff]
    %v2707 = vld [vmem:[#allocation5 + $0x5d8] sm:$0xff]
    %v2708 = vld [vmem:[#allocation5 + $0x5e0] sm:$0xff]
    %v2709 = vld [vmem:[#allocation5 + $0x5e8] sm:$0xff]
    %v2710 = vld [vmem:[#allocation5 + $0x5f0] sm:$0xff]
    %v2711 = vld [vmem:[#allocation5 + $0x5f8] sm:$0xff]
    %v2712 = vld [vmem:[#allocation5 + $0x600] sm:$0xff]
    %v2713 = vld [vmem:[#allocation5 + $0x608] sm:$0xff]
    %v2714 = vld [vmem:[#allocation5 + $0x610] sm:$0xff]
    %v2715 = vld [vmem:[#allocation5 + $0x618] sm:$0xff]
    %v2716 = vld [vmem:[#allocation5 + $0x620] sm:$0xff]
    %v2717 = vld [vmem:[#allocation5 + $0x628] sm:$0xff]
    %v2718 = vld [vmem:[#allocation5 + $0x630] sm:$0xff]
    %v2719 = vld [vmem:[#allocation5 + $0x638] sm:$0xff]
    %v2720 = vld [vmem:[#allocation5 + $0x640] sm:$0xff]
    %v2721 = vld [vmem:[#allocation5 + $0x648] sm:$0xff]
    %v2722 = vld [vmem:[#allocation5 + $0x650] sm:$0xff]
    %v2723 = vld [vmem:[#allocation5 + $0x658] sm:$0xff]
    %v2724 = vld [vmem:[#allocation5 + $0x660] sm:$0xff]
    %v2725 = vld [vmem:[#allocation5 + $0x668] sm:$0xff]
    %v2726 = vld [vmem:[#allocation5 + $0x670] sm:$0xff]
    %v2727 = vld [vmem:[#allocation5 + $0x678] sm:$0xff]
    %v2728 = vld [vmem:[#allocation5 + $0x680] sm:$0xff]
    %v2729 = vld [vmem:[#allocation5 + $0x688] sm:$0xff]
    %v2730 = vld [vmem:[#allocation5 + $0x690] sm:$0xff]
    %v2731 = vld [vmem:[#allocation5 + $0x698] sm:$0xff]
    %v2732 = vld [vmem:[#allocation5 + $0x6a0] sm:$0xff]
    %v2733 = vld [vmem:[#allocation5 + $0x6a8] sm:$0xff]
    %v2734 = vld [vmem:[#allocation5 + $0x6b0] sm:$0xff]
    %v2735 = vld [vmem:[#allocation5 + $0x6b8] sm:$0xff]
    %v2736 = vld [vmem:[#allocation5 + $0x6c0] sm:$0xff]
    %v2737 = vld [vmem:[#allocation5 + $0x6c8] sm:$0xff]
    %v2738 = vld [vmem:[#allocation5 + $0x6d0] sm:$0xff]
    %v2739 = vld [vmem:[#allocation5 + $0x6d8] sm:$0xff]
    %v2740 = vld [vmem:[#allocation5 + $0x6e0] sm:$0xff]
    %v2741 = vld [vmem:[#allocation5 + $0x6e8] sm:$0xff]
    %v2742 = vld [vmem:[#allocation5 + $0x6f0] sm:$0xff]
    %v2743 = vld [vmem:[#allocation5 + $0x6f8] sm:$0xff]
    %v2744 = vld [vmem:[#allocation5 + $0x700] sm:$0xff]
    %v2745 = vld [vmem:[#allocation5 + $0x708] sm:$0xff]
    %v2746 = vld [vmem:[#allocation5 + $0x710] sm:$0xff]
    %v2747 = vld [vmem:[#allocation5 + $0x718] sm:$0xff]
    %v2748 = vld [vmem:[#allocation5 + $0x720] sm:$0xff]
    %v2749 = vld [vmem:[#allocation5 + $0x728] sm:$0xff]
    %v2750 = vld [vmem:[#allocation5 + $0x730] sm:$0xff]
    %v2751 = vld [vmem:[#allocation5 + $0x738] sm:$0xff]
    %v2752 = vld [vmem:[#allocation5 + $0x740] sm:$0xff]
    %v2753 = vld [vmem:[#allocation5 + $0x748] sm:$0xff]
    %v2754 = vld [vmem:[#allocation5 + $0x750] sm:$0xff]
    %v2755 = vld [vmem:[#allocation5 + $0x758] sm:$0xff]
    %v2756 = vld [vmem:[#allocation5 + $0x760] sm:$0xff]
    %v2757 = vld [vmem:[#allocation5 + $0x768] sm:$0xff]
    %v2758 = vld [vmem:[#allocation5 + $0x770] sm:$0xff]
    %v2759 = vld [vmem:[#allocation5 + $0x778] sm:$0xff]
    %v2760 = vld [vmem:[#allocation5 + $0x780] sm:$0xff]
    %v2761 = vld [vmem:[#allocation5 + $0x788] sm:$0xff]
    %v2762 = vld [vmem:[#allocation5 + $0x790] sm:$0xff]
    %v2763 = vld [vmem:[#allocation5 + $0x798] sm:$0xff]
    %v2764 = vld [vmem:[#allocation5 + $0x7a0] sm:$0xff]
    %v2765 = vld [vmem:[#allocation5 + $0x7a8] sm:$0xff]
    %v2766 = vld [vmem:[#allocation5 + $0x7b0] sm:$0xff]
    %v2767 = vld [vmem:[#allocation5 + $0x7b8] sm:$0xff]
    %v2768 = vld [vmem:[#allocation5 + $0x7c0] sm:$0xff]
    %v2769 = vld [vmem:[#allocation5 + $0x7c8] sm:$0xff]
    %v2770 = vld [vmem:[#allocation5 + $0x7d0] sm:$0xff]
    %v2771 = vld [vmem:[#allocation5 + $0x7d8] sm:$0xff]
    %v2772 = vld [vmem:[#allocation5 + $0x7e0] sm:$0xff]
    %v2773 = vld [vmem:[#allocation5 + $0x7e8] sm:$0xff]
    %v2774 = vld [vmem:[#allocation5 + $0x7f0] sm:$0xff]
    %v2775 = vld [vmem:[#allocation5 + $0x7f8] sm:$0xff]
    %v2776 = vld [vmem:[%s8] sm:$0xff]
    %v2778 = vlaneseq
    %v2779 = vshrl.u32 %v2778, 7
    %v2780 = vsub.s32 0, %v2779
    %v2781 = vrot.slane %v2776, %v2780
    %v2782 = vlaneseq
    %v2783 = vshrl.u32 %v2782, 7
    %v2784 = vsub.s32 1, %v2783
    %v2785 = vrot.slane %v2776, %v2784
    %v2786 = vlaneseq
    %v2787 = vshrl.u32 %v2786, 7
    %v2788 = vsub.s32 2, %v2787
    %v2789 = vrot.slane %v2776, %v2788
    %v2790 = vlaneseq
    %v2791 = vshrl.u32 %v2790, 7
    %v2792 = vsub.s32 3, %v2791
    %v2793 = vrot.slane %v2776, %v2792
    %v2794 = vlaneseq
    %v2795 = vshrl.u32 %v2794, 7
    %v2796 = vsub.s32 4, %v2795
    %v2797 = vrot.slane %v2776, %v2796
    %v2798 = vlaneseq
    %v2799 = vshrl.u32 %v2798, 7
    %v2800 = vsub.s32 5, %v2799
    %v2801 = vrot.slane %v2776, %v2800
    %v2802 = vlaneseq
    %v2803 = vshrl.u32 %v2802, 7
    %v2804 = vsub.s32 6, %v2803
    %v2805 = vrot.slane %v2776, %v2804
    %v2806 = vlaneseq
    %v2807 = vshrl.u32 %v2806, 7
    %v2808 = vsub.s32 7, %v2807
    %v2809 = vrot.slane %v2776, %v2808
    %v3074 = vunpack.c.l.b16 %v2520
    %v3075 = vunpack.c.h.b16 %v2520
    %v3076 = vunpack.c.l.b16 %v2521
    %v3077 = vunpack.c.h.b16 %v2521
    %v3078 = vunpack.c.l.b16 %v2522
    %v3079 = vunpack.c.h.b16 %v2522
    %v3080 = vunpack.c.l.b16 %v2523
    %v3081 = vunpack.c.h.b16 %v2523
    %v3082 = vunpack.c.l.b16 %v2524
    %v3083 = vunpack.c.h.b16 %v2524
    %v3084 = vunpack.c.l.b16 %v2525
    %v3085 = vunpack.c.h.b16 %v2525
    %v3086 = vunpack.c.l.b16 %v2526
    %v3087 = vunpack.c.h.b16 %v2526
    %v3088 = vunpack.c.l.b16 %v2527
    %v3089 = vunpack.c.h.b16 %v2527
    %v3090 = vunpack.c.l.b16 %v2528
    %v3091 = vunpack.c.h.b16 %v2528
    %v3092 = vunpack.c.l.b16 %v2529
    %v3093 = vunpack.c.h.b16 %v2529
    %v3094 = vunpack.c.l.b16 %v2530
    %v3095 = vunpack.c.h.b16 %v2530
    %v3096 = vunpack.c.l.b16 %v2531
    %v3097 = vunpack.c.h.b16 %v2531
    %v3098 = vunpack.c.l.b16 %v2532
    %v3099 = vunpack.c.h.b16 %v2532
    %v3100 = vunpack.c.l.b16 %v2533
    %v3101 = vunpack.c.h.b16 %v2533
    %v3102 = vunpack.c.l.b16 %v2534
    %v3103 = vunpack.c.h.b16 %v2534
    %v3104 = vunpack.c.l.b16 %v2535
    %v3105 = vunpack.c.h.b16 %v2535
    %v3106 = vunpack.c.l.b16 %v2536
    %v3107 = vunpack.c.h.b16 %v2536
    %v3108 = vunpack.c.l.b16 %v2537
    %v3109 = vunpack.c.h.b16 %v2537
    %v3110 = vunpack.c.l.b16 %v2538
    %v3111 = vunpack.c.h.b16 %v2538
    %v3112 = vunpack.c.l.b16 %v2539
    %v3113 = vunpack.c.h.b16 %v2539
    %v3114 = vunpack.c.l.b16 %v2540
    %v3115 = vunpack.c.h.b16 %v2540
    %v3116 = vunpack.c.l.b16 %v2541
    %v3117 = vunpack.c.h.b16 %v2541
    %v3118 = vunpack.c.l.b16 %v2542
    %v3119 = vunpack.c.h.b16 %v2542
    %v3120 = vunpack.c.l.b16 %v2543
    %v3121 = vunpack.c.h.b16 %v2543
    %v3122 = vunpack.c.l.b16 %v2544
    %v3123 = vunpack.c.h.b16 %v2544
    %v3124 = vunpack.c.l.b16 %v2545
    %v3125 = vunpack.c.h.b16 %v2545
    %v3126 = vunpack.c.l.b16 %v2546
    %v3127 = vunpack.c.h.b16 %v2546
    %v3128 = vunpack.c.l.b16 %v2547
    %v3129 = vunpack.c.h.b16 %v2547
    %v3130 = vunpack.c.l.b16 %v2548
    %v3131 = vunpack.c.h.b16 %v2548
    %v3132 = vunpack.c.l.b16 %v2549
    %v3133 = vunpack.c.h.b16 %v2549
    %v3134 = vunpack.c.l.b16 %v2550
    %v3135 = vunpack.c.h.b16 %v2550
    %v3136 = vunpack.c.l.b16 %v2551
    %v3137 = vunpack.c.h.b16 %v2551
    %v3138 = vunpack.c.l.b16 %v2552
    %v3139 = vunpack.c.h.b16 %v2552
    %v3140 = vunpack.c.l.b16 %v2553
    %v3141 = vunpack.c.h.b16 %v2553
    %v3142 = vunpack.c.l.b16 %v2554
    %v3143 = vunpack.c.h.b16 %v2554
    %v3144 = vunpack.c.l.b16 %v2555
    %v3145 = vunpack.c.h.b16 %v2555
    %v3146 = vunpack.c.l.b16 %v2556
    %v3147 = vunpack.c.h.b16 %v2556
    %v3148 = vunpack.c.l.b16 %v2557
    %v3149 = vunpack.c.h.b16 %v2557
    %v3150 = vunpack.c.l.b16 %v2558
    %v3151 = vunpack.c.h.b16 %v2558
    %v3152 = vunpack.c.l.b16 %v2559
    %v3153 = vunpack.c.h.b16 %v2559
    %v3154 = vunpack.c.l.b16 %v2560
    %v3155 = vunpack.c.h.b16 %v2560
    %v3156 = vunpack.c.l.b16 %v2561
    %v3157 = vunpack.c.h.b16 %v2561
    %v3158 = vunpack.c.l.b16 %v2562
    %v3159 = vunpack.c.h.b16 %v2562
    %v3160 = vunpack.c.l.b16 %v2563
    %v3161 = vunpack.c.h.b16 %v2563
    %v3162 = vunpack.c.l.b16 %v2564
    %v3163 = vunpack.c.h.b16 %v2564
    %v3164 = vunpack.c.l.b16 %v2565
    %v3165 = vunpack.c.h.b16 %v2565
    %v3166 = vunpack.c.l.b16 %v2566
    %v3167 = vunpack.c.h.b16 %v2566
    %v3168 = vunpack.c.l.b16 %v2567
    %v3169 = vunpack.c.h.b16 %v2567
    %v3170 = vunpack.c.l.b16 %v2568
    %v3171 = vunpack.c.h.b16 %v2568
    %v3172 = vunpack.c.l.b16 %v2569
    %v3173 = vunpack.c.h.b16 %v2569
    %v3174 = vunpack.c.l.b16 %v2570
    %v3175 = vunpack.c.h.b16 %v2570
    %v3176 = vunpack.c.l.b16 %v2571
    %v3177 = vunpack.c.h.b16 %v2571
    %v3178 = vunpack.c.l.b16 %v2572
    %v3179 = vunpack.c.h.b16 %v2572
    %v3180 = vunpack.c.l.b16 %v2573
    %v3181 = vunpack.c.h.b16 %v2573
    %v3182 = vunpack.c.l.b16 %v2574
    %v3183 = vunpack.c.h.b16 %v2574
    %v3184 = vunpack.c.l.b16 %v2575
    %v3185 = vunpack.c.h.b16 %v2575
    %v3186 = vunpack.c.l.b16 %v2576
    %v3187 = vunpack.c.h.b16 %v2576
    %v3188 = vunpack.c.l.b16 %v2577
    %v3189 = vunpack.c.h.b16 %v2577
    %v3190 = vunpack.c.l.b16 %v2578
    %v3191 = vunpack.c.h.b16 %v2578
    %v3192 = vunpack.c.l.b16 %v2579
    %v3193 = vunpack.c.h.b16 %v2579
    %v3194 = vunpack.c.l.b16 %v2580
    %v3195 = vunpack.c.h.b16 %v2580
    %v3196 = vunpack.c.l.b16 %v2581
    %v3197 = vunpack.c.h.b16 %v2581
    %v3198 = vunpack.c.l.b16 %v2582
    %v3199 = vunpack.c.h.b16 %v2582
    %v3200 = vunpack.c.l.b16 %v2583
    %v3201 = vunpack.c.h.b16 %v2583
    %v3202 = vunpack.c.l.b16 %v2584
    %v3203 = vunpack.c.h.b16 %v2584
    %v3204 = vunpack.c.l.b16 %v2585
    %v3205 = vunpack.c.h.b16 %v2585
    %v3206 = vunpack.c.l.b16 %v2586
    %v3207 = vunpack.c.h.b16 %v2586
    %v3208 = vunpack.c.l.b16 %v2587
    %v3209 = vunpack.c.h.b16 %v2587
    %v3210 = vunpack.c.l.b16 %v2588
    %v3211 = vunpack.c.h.b16 %v2588
    %v3212 = vunpack.c.l.b16 %v2589
    %v3213 = vunpack.c.h.b16 %v2589
    %v3214 = vunpack.c.l.b16 %v2590
    %v3215 = vunpack.c.h.b16 %v2590
    %v3216 = vunpack.c.l.b16 %v2591
    %v3217 = vunpack.c.h.b16 %v2591
    %v3218 = vunpack.c.l.b16 %v2592
    %v3219 = vunpack.c.h.b16 %v2592
    %v3220 = vunpack.c.l.b16 %v2593
    %v3221 = vunpack.c.h.b16 %v2593
    %v3222 = vunpack.c.l.b16 %v2594
    %v3223 = vunpack.c.h.b16 %v2594
    %v3224 = vunpack.c.l.b16 %v2595
    %v3225 = vunpack.c.h.b16 %v2595
    %v3226 = vunpack.c.l.b16 %v2596
    %v3227 = vunpack.c.h.b16 %v2596
    %v3228 = vunpack.c.l.b16 %v2597
    %v3229 = vunpack.c.h.b16 %v2597
    %v3230 = vunpack.c.l.b16 %v2598
    %v3231 = vunpack.c.h.b16 %v2598
    %v3232 = vunpack.c.l.b16 %v2599
    %v3233 = vunpack.c.h.b16 %v2599
    %v3234 = vunpack.c.l.b16 %v2600
    %v3235 = vunpack.c.h.b16 %v2600
    %v3236 = vunpack.c.l.b16 %v2601
    %v3237 = vunpack.c.h.b16 %v2601
    %v3238 = vunpack.c.l.b16 %v2602
    %v3239 = vunpack.c.h.b16 %v2602
    %v3240 = vunpack.c.l.b16 %v2603
    %v3241 = vunpack.c.h.b16 %v2603
    %v3242 = vunpack.c.l.b16 %v2604
    %v3243 = vunpack.c.h.b16 %v2604
    %v3244 = vunpack.c.l.b16 %v2605
    %v3245 = vunpack.c.h.b16 %v2605
    %v3246 = vunpack.c.l.b16 %v2606
    %v3247 = vunpack.c.h.b16 %v2606
    %v3248 = vunpack.c.l.b16 %v2607
    %v3249 = vunpack.c.h.b16 %v2607
    %v3250 = vunpack.c.l.b16 %v2608
    %v3251 = vunpack.c.h.b16 %v2608
    %v3252 = vunpack.c.l.b16 %v2609
    %v3253 = vunpack.c.h.b16 %v2609
    %v3254 = vunpack.c.l.b16 %v2610
    %v3255 = vunpack.c.h.b16 %v2610
    %v3256 = vunpack.c.l.b16 %v2611
    %v3257 = vunpack.c.h.b16 %v2611
    %v3258 = vunpack.c.l.b16 %v2612
    %v3259 = vunpack.c.h.b16 %v2612
    %v3260 = vunpack.c.l.b16 %v2613
    %v3261 = vunpack.c.h.b16 %v2613
    %v3262 = vunpack.c.l.b16 %v2614
    %v3263 = vunpack.c.h.b16 %v2614
    %v3264 = vunpack.c.l.b16 %v2615
    %v3265 = vunpack.c.h.b16 %v2615
    %v3266 = vunpack.c.l.b16 %v2616
    %v3267 = vunpack.c.h.b16 %v2616
    %v3268 = vunpack.c.l.b16 %v2617
    %v3269 = vunpack.c.h.b16 %v2617
    %v3270 = vunpack.c.l.b16 %v2618
    %v3271 = vunpack.c.h.b16 %v2618
    %v3272 = vunpack.c.l.b16 %v2619
    %v3273 = vunpack.c.h.b16 %v2619
    %v3274 = vunpack.c.l.b16 %v2620
    %v3275 = vunpack.c.h.b16 %v2620
    %v3276 = vunpack.c.l.b16 %v2621
    %v3277 = vunpack.c.h.b16 %v2621
    %v3278 = vunpack.c.l.b16 %v2622
    %v3279 = vunpack.c.h.b16 %v2622
    %v3280 = vunpack.c.l.b16 %v2623
    %v3281 = vunpack.c.h.b16 %v2623
    %v3282 = vunpack.c.l.b16 %v2624
    %v3283 = vunpack.c.h.b16 %v2624
    %v3284 = vunpack.c.l.b16 %v2625
    %v3285 = vunpack.c.h.b16 %v2625
    %v3286 = vunpack.c.l.b16 %v2626
    %v3287 = vunpack.c.h.b16 %v2626
    %v3288 = vunpack.c.l.b16 %v2627
    %v3289 = vunpack.c.h.b16 %v2627
    %v3290 = vunpack.c.l.b16 %v2628
    %v3291 = vunpack.c.h.b16 %v2628
    %v3292 = vunpack.c.l.b16 %v2629
    %v3293 = vunpack.c.h.b16 %v2629
    %v3294 = vunpack.c.l.b16 %v2630
    %v3295 = vunpack.c.h.b16 %v2630
    %v3296 = vunpack.c.l.b16 %v2631
    %v3297 = vunpack.c.h.b16 %v2631
    %v3298 = vunpack.c.l.b16 %v2632
    %v3299 = vunpack.c.h.b16 %v2632
    %v3300 = vunpack.c.l.b16 %v2633
    %v3301 = vunpack.c.h.b16 %v2633
    %v3302 = vunpack.c.l.b16 %v2634
    %v3303 = vunpack.c.h.b16 %v2634
    %v3304 = vunpack.c.l.b16 %v2635
    %v3305 = vunpack.c.h.b16 %v2635
    %v3306 = vunpack.c.l.b16 %v2636
    %v3307 = vunpack.c.h.b16 %v2636
    %v3308 = vunpack.c.l.b16 %v2637
    %v3309 = vunpack.c.h.b16 %v2637
    %v3310 = vunpack.c.l.b16 %v2638
    %v3311 = vunpack.c.h.b16 %v2638
    %v3312 = vunpack.c.l.b16 %v2639
    %v3313 = vunpack.c.h.b16 %v2639
    %v3314 = vunpack.c.l.b16 %v2640
    %v3315 = vunpack.c.h.b16 %v2640
    %v3316 = vunpack.c.l.b16 %v2641
    %v3317 = vunpack.c.h.b16 %v2641
    %v3318 = vunpack.c.l.b16 %v2642
    %v3319 = vunpack.c.h.b16 %v2642
    %v3320 = vunpack.c.l.b16 %v2643
    %v3321 = vunpack.c.h.b16 %v2643
    %v3322 = vunpack.c.l.b16 %v2644
    %v3323 = vunpack.c.h.b16 %v2644
    %v3324 = vunpack.c.l.b16 %v2645
    %v3325 = vunpack.c.h.b16 %v2645
    %v3326 = vunpack.c.l.b16 %v2646
    %v3327 = vunpack.c.h.b16 %v2646
    %v3328 = vunpack.c.l.b16 %v2647
    %v3329 = vunpack.c.h.b16 %v2647
    %v3330 = vunpack.c.l.b16 %v2648
    %v3331 = vunpack.c.h.b16 %v2648
    %v3332 = vunpack.c.l.b16 %v2649
    %v3333 = vunpack.c.h.b16 %v2649
    %v3334 = vunpack.c.l.b16 %v2650
    %v3335 = vunpack.c.h.b16 %v2650
    %v3336 = vunpack.c.l.b16 %v2651
    %v3337 = vunpack.c.h.b16 %v2651
    %v3338 = vunpack.c.l.b16 %v2652
    %v3339 = vunpack.c.h.b16 %v2652
    %v3340 = vunpack.c.l.b16 %v2653
    %v3341 = vunpack.c.h.b16 %v2653
    %v3342 = vunpack.c.l.b16 %v2654
    %v3343 = vunpack.c.h.b16 %v2654
    %v3344 = vunpack.c.l.b16 %v2655
    %v3345 = vunpack.c.h.b16 %v2655
    %v3346 = vunpack.c.l.b16 %v2656
    %v3347 = vunpack.c.h.b16 %v2656
    %v3348 = vunpack.c.l.b16 %v2657
    %v3349 = vunpack.c.h.b16 %v2657
    %v3350 = vunpack.c.l.b16 %v2658
    %v3351 = vunpack.c.h.b16 %v2658
    %v3352 = vunpack.c.l.b16 %v2659
    %v3353 = vunpack.c.h.b16 %v2659
    %v3354 = vunpack.c.l.b16 %v2660
    %v3355 = vunpack.c.h.b16 %v2660
    %v3356 = vunpack.c.l.b16 %v2661
    %v3357 = vunpack.c.h.b16 %v2661
    %v3358 = vunpack.c.l.b16 %v2662
    %v3359 = vunpack.c.h.b16 %v2662
    %v3360 = vunpack.c.l.b16 %v2663
    %v3361 = vunpack.c.h.b16 %v2663
    %v3362 = vunpack.c.l.b16 %v2664
    %v3363 = vunpack.c.h.b16 %v2664
    %v3364 = vunpack.c.l.b16 %v2665
    %v3365 = vunpack.c.h.b16 %v2665
    %v3366 = vunpack.c.l.b16 %v2666
    %v3367 = vunpack.c.h.b16 %v2666
    %v3368 = vunpack.c.l.b16 %v2667
    %v3369 = vunpack.c.h.b16 %v2667
    %v3370 = vunpack.c.l.b16 %v2668
    %v3371 = vunpack.c.h.b16 %v2668
    %v3372 = vunpack.c.l.b16 %v2669
    %v3373 = vunpack.c.h.b16 %v2669
    %v3374 = vunpack.c.l.b16 %v2670
    %v3375 = vunpack.c.h.b16 %v2670
    %v3376 = vunpack.c.l.b16 %v2671
    %v3377 = vunpack.c.h.b16 %v2671
    %v3378 = vunpack.c.l.b16 %v2672
    %v3379 = vunpack.c.h.b16 %v2672
    %v3380 = vunpack.c.l.b16 %v2673
    %v3381 = vunpack.c.h.b16 %v2673
    %v3382 = vunpack.c.l.b16 %v2674
    %v3383 = vunpack.c.h.b16 %v2674
    %v3384 = vunpack.c.l.b16 %v2675
    %v3385 = vunpack.c.h.b16 %v2675
    %v3386 = vunpack.c.l.b16 %v2676
    %v3387 = vunpack.c.h.b16 %v2676
    %v3388 = vunpack.c.l.b16 %v2677
    %v3389 = vunpack.c.h.b16 %v2677
    %v3390 = vunpack.c.l.b16 %v2678
    %v3391 = vunpack.c.h.b16 %v2678
    %v3392 = vunpack.c.l.b16 %v2679
    %v3393 = vunpack.c.h.b16 %v2679
    %v3394 = vunpack.c.l.b16 %v2680
    %v3395 = vunpack.c.h.b16 %v2680
    %v3396 = vunpack.c.l.b16 %v2681
    %v3397 = vunpack.c.h.b16 %v2681
    %v3398 = vunpack.c.l.b16 %v2682
    %v3399 = vunpack.c.h.b16 %v2682
    %v3400 = vunpack.c.l.b16 %v2683
    %v3401 = vunpack.c.h.b16 %v2683
    %v3402 = vunpack.c.l.b16 %v2684
    %v3403 = vunpack.c.h.b16 %v2684
    %v3404 = vunpack.c.l.b16 %v2685
    %v3405 = vunpack.c.h.b16 %v2685
    %v3406 = vunpack.c.l.b16 %v2686
    %v3407 = vunpack.c.h.b16 %v2686
    %v3408 = vunpack.c.l.b16 %v2687
    %v3409 = vunpack.c.h.b16 %v2687
    %v3410 = vunpack.c.l.b16 %v2688
    %v3411 = vunpack.c.h.b16 %v2688
    %v3412 = vunpack.c.l.b16 %v2689
    %v3413 = vunpack.c.h.b16 %v2689
    %v3414 = vunpack.c.l.b16 %v2690
    %v3415 = vunpack.c.h.b16 %v2690
    %v3416 = vunpack.c.l.b16 %v2691
    %v3417 = vunpack.c.h.b16 %v2691
    %v3418 = vunpack.c.l.b16 %v2692
    %v3419 = vunpack.c.h.b16 %v2692
    %v3420 = vunpack.c.l.b16 %v2693
    %v3421 = vunpack.c.h.b16 %v2693
    %v3422 = vunpack.c.l.b16 %v2694
    %v3423 = vunpack.c.h.b16 %v2694
    %v3424 = vunpack.c.l.b16 %v2695
    %v3425 = vunpack.c.h.b16 %v2695
    %v3426 = vunpack.c.l.b16 %v2696
    %v3427 = vunpack.c.h.b16 %v2696
    %v3428 = vunpack.c.l.b16 %v2697
    %v3429 = vunpack.c.h.b16 %v2697
    %v3430 = vunpack.c.l.b16 %v2698
    %v3431 = vunpack.c.h.b16 %v2698
    %v3432 = vunpack.c.l.b16 %v2699
    %v3433 = vunpack.c.h.b16 %v2699
    %v3434 = vunpack.c.l.b16 %v2700
    %v3435 = vunpack.c.h.b16 %v2700
    %v3436 = vunpack.c.l.b16 %v2701
    %v3437 = vunpack.c.h.b16 %v2701
    %v3438 = vunpack.c.l.b16 %v2702
    %v3439 = vunpack.c.h.b16 %v2702
    %v3440 = vunpack.c.l.b16 %v2703
    %v3441 = vunpack.c.h.b16 %v2703
    %v3442 = vunpack.c.l.b16 %v2704
    %v3443 = vunpack.c.h.b16 %v2704
    %v3444 = vunpack.c.l.b16 %v2705
    %v3445 = vunpack.c.h.b16 %v2705
    %v3446 = vunpack.c.l.b16 %v2706
    %v3447 = vunpack.c.h.b16 %v2706
    %v3448 = vunpack.c.l.b16 %v2707
    %v3449 = vunpack.c.h.b16 %v2707
    %v3450 = vunpack.c.l.b16 %v2708
    %v3451 = vunpack.c.h.b16 %v2708
    %v3452 = vunpack.c.l.b16 %v2709
    %v3453 = vunpack.c.h.b16 %v2709
    %v3454 = vunpack.c.l.b16 %v2710
    %v3455 = vunpack.c.h.b16 %v2710
    %v3456 = vunpack.c.l.b16 %v2711
    %v3457 = vunpack.c.h.b16 %v2711
    %v3458 = vunpack.c.l.b16 %v2712
    %v3459 = vunpack.c.h.b16 %v2712
    %v3460 = vunpack.c.l.b16 %v2713
    %v3461 = vunpack.c.h.b16 %v2713
    %v3462 = vunpack.c.l.b16 %v2714
    %v3463 = vunpack.c.h.b16 %v2714
    %v3464 = vunpack.c.l.b16 %v2715
    %v3465 = vunpack.c.h.b16 %v2715
    %v3466 = vunpack.c.l.b16 %v2716
    %v3467 = vunpack.c.h.b16 %v2716
    %v3468 = vunpack.c.l.b16 %v2717
    %v3469 = vunpack.c.h.b16 %v2717
    %v3470 = vunpack.c.l.b16 %v2718
    %v3471 = vunpack.c.h.b16 %v2718
    %v3472 = vunpack.c.l.b16 %v2719
    %v3473 = vunpack.c.h.b16 %v2719
    %v3474 = vunpack.c.l.b16 %v2720
    %v3475 = vunpack.c.h.b16 %v2720
    %v3476 = vunpack.c.l.b16 %v2721
    %v3477 = vunpack.c.h.b16 %v2721
    %v3478 = vunpack.c.l.b16 %v2722
    %v3479 = vunpack.c.h.b16 %v2722
    %v3480 = vunpack.c.l.b16 %v2723
    %v3481 = vunpack.c.h.b16 %v2723
    %v3482 = vunpack.c.l.b16 %v2724
    %v3483 = vunpack.c.h.b16 %v2724
    %v3484 = vunpack.c.l.b16 %v2725
    %v3485 = vunpack.c.h.b16 %v2725
    %v3486 = vunpack.c.l.b16 %v2726
    %v3487 = vunpack.c.h.b16 %v2726
    %v3488 = vunpack.c.l.b16 %v2727
    %v3489 = vunpack.c.h.b16 %v2727
    %v3490 = vunpack.c.l.b16 %v2728
    %v3491 = vunpack.c.h.b16 %v2728
    %v3492 = vunpack.c.l.b16 %v2729
    %v3493 = vunpack.c.h.b16 %v2729
    %v3494 = vunpack.c.l.b16 %v2730
    %v3495 = vunpack.c.h.b16 %v2730
    %v3496 = vunpack.c.l.b16 %v2731
    %v3497 = vunpack.c.h.b16 %v2731
    %v3498 = vunpack.c.l.b16 %v2732
    %v3499 = vunpack.c.h.b16 %v2732
    %v3500 = vunpack.c.l.b16 %v2733
    %v3501 = vunpack.c.h.b16 %v2733
    %v3502 = vunpack.c.l.b16 %v2734
    %v3503 = vunpack.c.h.b16 %v2734
    %v3504 = vunpack.c.l.b16 %v2735
    %v3505 = vunpack.c.h.b16 %v2735
    %v3506 = vunpack.c.l.b16 %v2736
    %v3507 = vunpack.c.h.b16 %v2736
    %v3508 = vunpack.c.l.b16 %v2737
    %v3509 = vunpack.c.h.b16 %v2737
    %v3510 = vunpack.c.l.b16 %v2738
    %v3511 = vunpack.c.h.b16 %v2738
    %v3512 = vunpack.c.l.b16 %v2739
    %v3513 = vunpack.c.h.b16 %v2739
    %v3514 = vunpack.c.l.b16 %v2740
    %v3515 = vunpack.c.h.b16 %v2740
    %v3516 = vunpack.c.l.b16 %v2741
    %v3517 = vunpack.c.h.b16 %v2741
    %v3518 = vunpack.c.l.b16 %v2742
    %v3519 = vunpack.c.h.b16 %v2742
    %v3520 = vunpack.c.l.b16 %v2743
    %v3521 = vunpack.c.h.b16 %v2743
    %v3522 = vunpack.c.l.b16 %v2744
    %v3523 = vunpack.c.h.b16 %v2744
    %v3524 = vunpack.c.l.b16 %v2745
    %v3525 = vunpack.c.h.b16 %v2745
    %v3526 = vunpack.c.l.b16 %v2746
    %v3527 = vunpack.c.h.b16 %v2746
    %v3528 = vunpack.c.l.b16 %v2747
    %v3529 = vunpack.c.h.b16 %v2747
    %v3530 = vunpack.c.l.b16 %v2748
    %v3531 = vunpack.c.h.b16 %v2748
    %v3532 = vunpack.c.l.b16 %v2749
    %v3533 = vunpack.c.h.b16 %v2749
    %v3534 = vunpack.c.l.b16 %v2750
    %v3535 = vunpack.c.h.b16 %v2750
    %v3536 = vunpack.c.l.b16 %v2751
    %v3537 = vunpack.c.h.b16 %v2751
    %v3538 = vunpack.c.l.b16 %v2752
    %v3539 = vunpack.c.h.b16 %v2752
    %v3540 = vunpack.c.l.b16 %v2753
    %v3541 = vunpack.c.h.b16 %v2753
    %v3542 = vunpack.c.l.b16 %v2754
    %v3543 = vunpack.c.h.b16 %v2754
    %v3544 = vunpack.c.l.b16 %v2755
    %v3545 = vunpack.c.h.b16 %v2755
    %v3546 = vunpack.c.l.b16 %v2756
    %v3547 = vunpack.c.h.b16 %v2756
    %v3548 = vunpack.c.l.b16 %v2757
    %v3549 = vunpack.c.h.b16 %v2757
    %v3550 = vunpack.c.l.b16 %v2758
    %v3551 = vunpack.c.h.b16 %v2758
    %v3552 = vunpack.c.l.b16 %v2759
    %v3553 = vunpack.c.h.b16 %v2759
    %v3554 = vunpack.c.l.b16 %v2760
    %v3555 = vunpack.c.h.b16 %v2760
    %v3556 = vunpack.c.l.b16 %v2761
    %v3557 = vunpack.c.h.b16 %v2761
    %v3558 = vunpack.c.l.b16 %v2762
    %v3559 = vunpack.c.h.b16 %v2762
    %v3560 = vunpack.c.l.b16 %v2763
    %v3561 = vunpack.c.h.b16 %v2763
    %v3562 = vunpack.c.l.b16 %v2764
    %v3563 = vunpack.c.h.b16 %v2764
    %v3564 = vunpack.c.l.b16 %v2765
    %v3565 = vunpack.c.h.b16 %v2765
    %v3566 = vunpack.c.l.b16 %v2766
    %v3567 = vunpack.c.h.b16 %v2766
    %v3568 = vunpack.c.l.b16 %v2767
    %v3569 = vunpack.c.h.b16 %v2767
    %v3570 = vunpack.c.l.b16 %v2768
    %v3571 = vunpack.c.h.b16 %v2768
    %v3572 = vunpack.c.l.b16 %v2769
    %v3573 = vunpack.c.h.b16 %v2769
    %v3574 = vunpack.c.l.b16 %v2770
    %v3575 = vunpack.c.h.b16 %v2770
    %v3576 = vunpack.c.l.b16 %v2771
    %v3577 = vunpack.c.h.b16 %v2771
    %v3578 = vunpack.c.l.b16 %v2772
    %v3579 = vunpack.c.h.b16 %v2772
    %v3580 = vunpack.c.l.b16 %v2773
    %v3581 = vunpack.c.h.b16 %v2773
    %v3582 = vunpack.c.l.b16 %v2774
    %v3583 = vunpack.c.h.b16 %v2774
    %v3584 = vunpack.c.l.b16 %v2775
    %v3585 = vunpack.c.h.b16 %v2775
    %v3586 = vpack.c.b16 %v3082, %v3074
    %v3587 = vpack.c.b16 %v3083, %v3075
    %v3588 = vpack.c.b16 %v3084, %v3076
    %v3589 = vpack.c.b16 %v3085, %v3077
    %v3590 = vpack.c.b16 %v3086, %v3078
    %v3591 = vpack.c.b16 %v3087, %v3079
    %v3592 = vpack.c.b16 %v3088, %v3080
    %v3593 = vpack.c.b16 %v3089, %v3081
    %v3594 = vpack.c.b16 %v3098, %v3090
    %v3595 = vpack.c.b16 %v3099, %v3091
    %v3596 = vpack.c.b16 %v3100, %v3092
    %v3597 = vpack.c.b16 %v3101, %v3093
    %v3598 = vpack.c.b16 %v3102, %v3094
    %v3599 = vpack.c.b16 %v3103, %v3095
    %v3600 = vpack.c.b16 %v3104, %v3096
    %v3601 = vpack.c.b16 %v3105, %v3097
    %v3602 = vpack.c.b16 %v3114, %v3106
    %v3603 = vpack.c.b16 %v3115, %v3107
    %v3604 = vpack.c.b16 %v3116, %v3108
    %v3605 = vpack.c.b16 %v3117, %v3109
    %v3606 = vpack.c.b16 %v3118, %v3110
    %v3607 = vpack.c.b16 %v3119, %v3111
    %v3608 = vpack.c.b16 %v3120, %v3112
    %v3609 = vpack.c.b16 %v3121, %v3113
    %v3610 = vpack.c.b16 %v3130, %v3122
    %v3611 = vpack.c.b16 %v3131, %v3123
    %v3612 = vpack.c.b16 %v3132, %v3124
    %v3613 = vpack.c.b16 %v3133, %v3125
    %v3614 = vpack.c.b16 %v3134, %v3126
    %v3615 = vpack.c.b16 %v3135, %v3127
    %v3616 = vpack.c.b16 %v3136, %v3128
    %v3617 = vpack.c.b16 %v3137, %v3129
    %v3618 = vpack.c.b16 %v3146, %v3138
    %v3619 = vpack.c.b16 %v3147, %v3139
    %v3620 = vpack.c.b16 %v3148, %v3140
    %v3621 = vpack.c.b16 %v3149, %v3141
    %v3622 = vpack.c.b16 %v3150, %v3142
    %v3623 = vpack.c.b16 %v3151, %v3143
    %v3624 = vpack.c.b16 %v3152, %v3144
    %v3625 = vpack.c.b16 %v3153, %v3145
    %v3626 = vpack.c.b16 %v3162, %v3154
    %v3627 = vpack.c.b16 %v3163, %v3155
    %v3628 = vpack.c.b16 %v3164, %v3156
    %v3629 = vpack.c.b16 %v3165, %v3157
    %v3630 = vpack.c.b16 %v3166, %v3158
    %v3631 = vpack.c.b16 %v3167, %v3159
    %v3632 = vpack.c.b16 %v3168, %v3160
    %v3633 = vpack.c.b16 %v3169, %v3161
    %v3634 = vpack.c.b16 %v3178, %v3170
    %v3635 = vpack.c.b16 %v3179, %v3171
    %v3636 = vpack.c.b16 %v3180, %v3172
    %v3637 = vpack.c.b16 %v3181, %v3173
    %v3638 = vpack.c.b16 %v3182, %v3174
    %v3639 = vpack.c.b16 %v3183, %v3175
    %v3640 = vpack.c.b16 %v3184, %v3176
    %v3641 = vpack.c.b16 %v3185, %v3177
    %v3642 = vpack.c.b16 %v3194, %v3186
    %v3643 = vpack.c.b16 %v3195, %v3187
    %v3644 = vpack.c.b16 %v3196, %v3188
    %v3645 = vpack.c.b16 %v3197, %v3189
    %v3646 = vpack.c.b16 %v3198, %v3190
    %v3647 = vpack.c.b16 %v3199, %v3191
    %v3648 = vpack.c.b16 %v3200, %v3192
    %v3649 = vpack.c.b16 %v3201, %v3193
    %v3650 = vpack.c.b16 %v3210, %v3202
    %v3651 = vpack.c.b16 %v3211, %v3203
    %v3652 = vpack.c.b16 %v3212, %v3204
    %v3653 = vpack.c.b16 %v3213, %v3205
    %v3654 = vpack.c.b16 %v3214, %v3206
    %v3655 = vpack.c.b16 %v3215, %v3207
    %v3656 = vpack.c.b16 %v3216, %v3208
    %v3657 = vpack.c.b16 %v3217, %v3209
    %v3658 = vpack.c.b16 %v3226, %v3218
    %v3659 = vpack.c.b16 %v3227, %v3219
    %v3660 = vpack.c.b16 %v3228, %v3220
    %v3661 = vpack.c.b16 %v3229, %v3221
    %v3662 = vpack.c.b16 %v3230, %v3222
    %v3663 = vpack.c.b16 %v3231, %v3223
    %v3664 = vpack.c.b16 %v3232, %v3224
    %v3665 = vpack.c.b16 %v3233, %v3225
    %v3666 = vpack.c.b16 %v3242, %v3234
    %v3667 = vpack.c.b16 %v3243, %v3235
    %v3668 = vpack.c.b16 %v3244, %v3236
    %v3669 = vpack.c.b16 %v3245, %v3237
    %v3670 = vpack.c.b16 %v3246, %v3238
    %v3671 = vpack.c.b16 %v3247, %v3239
    %v3672 = vpack.c.b16 %v3248, %v3240
    %v3673 = vpack.c.b16 %v3249, %v3241
    %v3674 = vpack.c.b16 %v3258, %v3250
    %v3675 = vpack.c.b16 %v3259, %v3251
    %v3676 = vpack.c.b16 %v3260, %v3252
    %v3677 = vpack.c.b16 %v3261, %v3253
    %v3678 = vpack.c.b16 %v3262, %v3254
    %v3679 = vpack.c.b16 %v3263, %v3255
    %v3680 = vpack.c.b16 %v3264, %v3256
    %v3681 = vpack.c.b16 %v3265, %v3257
    %v3682 = vpack.c.b16 %v3274, %v3266
    %v3683 = vpack.c.b16 %v3275, %v3267
    %v3684 = vpack.c.b16 %v3276, %v3268
    %v3685 = vpack.c.b16 %v3277, %v3269
    %v3686 = vpack.c.b16 %v3278, %v3270
    %v3687 = vpack.c.b16 %v3279, %v3271
    %v3688 = vpack.c.b16 %v3280, %v3272
    %v3689 = vpack.c.b16 %v3281, %v3273
    %v3690 = vpack.c.b16 %v3290, %v3282
    %v3691 = vpack.c.b16 %v3291, %v3283
    %v3692 = vpack.c.b16 %v3292, %v3284
    %v3693 = vpack.c.b16 %v3293, %v3285
    %v3694 = vpack.c.b16 %v3294, %v3286
    %v3695 = vpack.c.b16 %v3295, %v3287
    %v3696 = vpack.c.b16 %v3296, %v3288
    %v3697 = vpack.c.b16 %v3297, %v3289
    %v3698 = vpack.c.b16 %v3306, %v3298
    %v3699 = vpack.c.b16 %v3307, %v3299
    %v3700 = vpack.c.b16 %v3308, %v3300
    %v3701 = vpack.c.b16 %v3309, %v3301
    %v3702 = vpack.c.b16 %v3310, %v3302
    %v3703 = vpack.c.b16 %v3311, %v3303
    %v3704 = vpack.c.b16 %v3312, %v3304
    %v3705 = vpack.c.b16 %v3313, %v3305
    %v3706 = vpack.c.b16 %v3322, %v3314
    %v3707 = vpack.c.b16 %v3323, %v3315
    %v3708 = vpack.c.b16 %v3324, %v3316
    %v3709 = vpack.c.b16 %v3325, %v3317
    %v3710 = vpack.c.b16 %v3326, %v3318
    %v3711 = vpack.c.b16 %v3327, %v3319
    %v3712 = vpack.c.b16 %v3328, %v3320
    %v3713 = vpack.c.b16 %v3329, %v3321
    %v3714 = vpack.c.b16 %v3338, %v3330
    %v3715 = vpack.c.b16 %v3339, %v3331
    %v3716 = vpack.c.b16 %v3340, %v3332
    %v3717 = vpack.c.b16 %v3341, %v3333
    %v3718 = vpack.c.b16 %v3342, %v3334
    %v3719 = vpack.c.b16 %v3343, %v3335
    %v3720 = vpack.c.b16 %v3344, %v3336
    %v3721 = vpack.c.b16 %v3345, %v3337
    %v3722 = vpack.c.b16 %v3354, %v3346
    %v3723 = vpack.c.b16 %v3355, %v3347
    %v3724 = vpack.c.b16 %v3356, %v3348
    %v3725 = vpack.c.b16 %v3357, %v3349
    %v3726 = vpack.c.b16 %v3358, %v3350
    %v3727 = vpack.c.b16 %v3359, %v3351
    %v3728 = vpack.c.b16 %v3360, %v3352
    %v3729 = vpack.c.b16 %v3361, %v3353
    %v3730 = vpack.c.b16 %v3370, %v3362
    %v3731 = vpack.c.b16 %v3371, %v3363
    %v3732 = vpack.c.b16 %v3372, %v3364
    %v3733 = vpack.c.b16 %v3373, %v3365
    %v3734 = vpack.c.b16 %v3374, %v3366
    %v3735 = vpack.c.b16 %v3375, %v3367
    %v3736 = vpack.c.b16 %v3376, %v3368
    %v3737 = vpack.c.b16 %v3377, %v3369
    %v3738 = vpack.c.b16 %v3386, %v3378
    %v3739 = vpack.c.b16 %v3387, %v3379
    %v3740 = vpack.c.b16 %v3388, %v3380
    %v3741 = vpack.c.b16 %v3389, %v3381
    %v3742 = vpack.c.b16 %v3390, %v3382
    %v3743 = vpack.c.b16 %v3391, %v3383
    %v3744 = vpack.c.b16 %v3392, %v3384
    %v3745 = vpack.c.b16 %v3393, %v3385
    %v3746 = vpack.c.b16 %v3402, %v3394
    %v3747 = vpack.c.b16 %v3403, %v3395
    %v3748 = vpack.c.b16 %v3404, %v3396
    %v3749 = vpack.c.b16 %v3405, %v3397
    %v3750 = vpack.c.b16 %v3406, %v3398
    %v3751 = vpack.c.b16 %v3407, %v3399
    %v3752 = vpack.c.b16 %v3408, %v3400
    %v3753 = vpack.c.b16 %v3409, %v3401
    %v3754 = vpack.c.b16 %v3418, %v3410
    %v3755 = vpack.c.b16 %v3419, %v3411
    %v3756 = vpack.c.b16 %v3420, %v3412
    %v3757 = vpack.c.b16 %v3421, %v3413
    %v3758 = vpack.c.b16 %v3422, %v3414
    %v3759 = vpack.c.b16 %v3423, %v3415
    %v3760 = vpack.c.b16 %v3424, %v3416
    %v3761 = vpack.c.b16 %v3425, %v3417
    %v3762 = vpack.c.b16 %v3434, %v3426
    %v3763 = vpack.c.b16 %v3435, %v3427
    %v3764 = vpack.c.b16 %v3436, %v3428
    %v3765 = vpack.c.b16 %v3437, %v3429
    %v3766 = vpack.c.b16 %v3438, %v3430
    %v3767 = vpack.c.b16 %v3439, %v3431
    %v3768 = vpack.c.b16 %v3440, %v3432
    %v3769 = vpack.c.b16 %v3441, %v3433
    %v3770 = vpack.c.b16 %v3450, %v3442
    %v3771 = vpack.c.b16 %v3451, %v3443
    %v3772 = vpack.c.b16 %v3452, %v3444
    %v3773 = vpack.c.b16 %v3453, %v3445
    %v3774 = vpack.c.b16 %v3454, %v3446
    %v3775 = vpack.c.b16 %v3455, %v3447
    %v3776 = vpack.c.b16 %v3456, %v3448
    %v3777 = vpack.c.b16 %v3457, %v3449
    %v3778 = vpack.c.b16 %v3466, %v3458
    %v3779 = vpack.c.b16 %v3467, %v3459
    %v3780 = vpack.c.b16 %v3468, %v3460
    %v3781 = vpack.c.b16 %v3469, %v3461
    %v3782 = vpack.c.b16 %v3470, %v3462
    %v3783 = vpack.c.b16 %v3471, %v3463
    %v3784 = vpack.c.b16 %v3472, %v3464
    %v3785 = vpack.c.b16 %v3473, %v3465
    %v3786 = vpack.c.b16 %v3482, %v3474
    %v3787 = vpack.c.b16 %v3483, %v3475
    %v3788 = vpack.c.b16 %v3484, %v3476
    %v3789 = vpack.c.b16 %v3485, %v3477
    %v3790 = vpack.c.b16 %v3486, %v3478
    %v3791 = vpack.c.b16 %v3487, %v3479
    %v3792 = vpack.c.b16 %v3488, %v3480
    %v3793 = vpack.c.b16 %v3489, %v3481
    %v3794 = vpack.c.b16 %v3498, %v3490
    %v3795 = vpack.c.b16 %v3499, %v3491
    %v3796 = vpack.c.b16 %v3500, %v3492
    %v3797 = vpack.c.b16 %v3501, %v3493
    %v3798 = vpack.c.b16 %v3502, %v3494
    %v3799 = vpack.c.b16 %v3503, %v3495
    %v3800 = vpack.c.b16 %v3504, %v3496
    %v3801 = vpack.c.b16 %v3505, %v3497
    %v3802 = vpack.c.b16 %v3514, %v3506
    %v3803 = vpack.c.b16 %v3515, %v3507
    %v3804 = vpack.c.b16 %v3516, %v3508
    %v3805 = vpack.c.b16 %v3517, %v3509
    %v3806 = vpack.c.b16 %v3518, %v3510
    %v3807 = vpack.c.b16 %v3519, %v3511
    %v3808 = vpack.c.b16 %v3520, %v3512
    %v3809 = vpack.c.b16 %v3521, %v3513
    %v3810 = vpack.c.b16 %v3530, %v3522
    %v3811 = vpack.c.b16 %v3531, %v3523
    %v3812 = vpack.c.b16 %v3532, %v3524
    %v3813 = vpack.c.b16 %v3533, %v3525
    %v3814 = vpack.c.b16 %v3534, %v3526
    %v3815 = vpack.c.b16 %v3535, %v3527
    %v3816 = vpack.c.b16 %v3536, %v3528
    %v3817 = vpack.c.b16 %v3537, %v3529
    %v3818 = vpack.c.b16 %v3546, %v3538
    %v3819 = vpack.c.b16 %v3547, %v3539
    %v3820 = vpack.c.b16 %v3548, %v3540
    %v3821 = vpack.c.b16 %v3549, %v3541
    %v3822 = vpack.c.b16 %v3550, %v3542
    %v3823 = vpack.c.b16 %v3551, %v3543
    %v3824 = vpack.c.b16 %v3552, %v3544
    %v3825 = vpack.c.b16 %v3553, %v3545
    %v3826 = vpack.c.b16 %v3562, %v3554
    %v3827 = vpack.c.b16 %v3563, %v3555
    %v3828 = vpack.c.b16 %v3564, %v3556
    %v3829 = vpack.c.b16 %v3565, %v3557
    %v3830 = vpack.c.b16 %v3566, %v3558
    %v3831 = vpack.c.b16 %v3567, %v3559
    %v3832 = vpack.c.b16 %v3568, %v3560
    %v3833 = vpack.c.b16 %v3569, %v3561
    %v3834 = vpack.c.b16 %v3578, %v3570
    %v3835 = vpack.c.b16 %v3579, %v3571
    %v3836 = vpack.c.b16 %v3580, %v3572
    %v3837 = vpack.c.b16 %v3581, %v3573
    %v3838 = vpack.c.b16 %v3582, %v3574
    %v3839 = vpack.c.b16 %v3583, %v3575
    %v3840 = vpack.c.b16 %v3584, %v3576
    %v3841 = vpack.c.b16 %v3585, %v3577
    %4098 = vmatprep.subr.bf16.mxu0 %v3587
    %4099 = vmatpush1.bf16.msra.mxu0 %v3586
    %4100 = vmatprep.subr.bf16.mxu0 %v3595
    %4101 = vmatpush1.bf16.msra.mxu0 %v3594
    %4102 = vmatprep.subr.bf16.mxu0 %v3603
    %4103 = vmatpush1.bf16.msra.mxu0 %v3602
    %4104 = vmatprep.subr.bf16.mxu0 %v3611
    %4105 = vmatpush1.bf16.msra.mxu0 %v3610
    %4106 = vmatprep.subr.bf16.mxu0 %v3619
    %4107 = vmatpush1.bf16.msra.mxu0 %v3618
    %4108 = vmatprep.subr.bf16.mxu0 %v3627
    %4109 = vmatpush1.bf16.msra.mxu0 %v3626
    %4110 = vmatprep.subr.bf16.mxu0 %v3635
    %4111 = vmatpush1.bf16.msra.mxu0 %v3634
    %4112 = vmatprep.subr.bf16.mxu0 %v3643
    %4113 = vmatpush1.bf16.msra.mxu0 %v3642
    %4114 = vmatprep.subr.bf16.mxu0 %v3651
    %4115 = vmatpush1.bf16.msra.mxu0 %v3650
    %4116 = vmatprep.subr.bf16.mxu0 %v3659
    %4117 = vmatpush1.bf16.msra.mxu0 %v3658
    %4118 = vmatprep.subr.bf16.mxu0 %v3667
    %4119 = vmatpush1.bf16.msra.mxu0 %v3666
    %4120 = vmatprep.subr.bf16.mxu0 %v3675
    %4121 = vmatpush1.bf16.msra.mxu0 %v3674
    %4122 = vmatprep.subr.bf16.mxu0 %v3683
    %4123 = vmatpush1.bf16.msra.mxu0 %v3682
    %4124 = vmatprep.subr.bf16.mxu0 %v3691
    %4125 = vmatpush1.bf16.msra.mxu0 %v3690
    %4126 = vmatprep.subr.bf16.mxu0 %v3699
    %4127 = vmatpush1.bf16.msra.mxu0 %v3698
    %4128 = vmatprep.subr.bf16.mxu0 %v3707
    %4129 = vmatpush1.bf16.msra.mxu0 %v3706
    %4130 = vmatprep.mubr.bf16.mxu0 %v2517
    %4131 = vmatmul.mubr.bf16.gmra.mrb[0].mxu0 %v2516
    %v4132 = vpop.f32.mrb[0].mxu0
    %v4133 = vadd.f32 %v2781, %v4132
    %v4134 = vpop.f32.mrb[0].mxu0
    %v4135 = vadd.f32 %v2785, %v4134
    %v4136 = vpop.f32.mrb[0].mxu0
    %v4137 = vpop.f32.mrb[0].mxu0
    %4138 = vdwg.mxu0
    %4139 = vmatprep.subr.bf16.mxu0 %v3715
    %4140 = vmatpush1.bf16.msra.mxu0 %v3714
    %4141 = vmatprep.subr.bf16.mxu0 %v3723
    %4142 = vmatpush1.bf16.msra.mxu0 %v3722
    %4143 = vmatprep.subr.bf16.mxu0 %v3731
    %4144 = vmatpush1.bf16.msra.mxu0 %v3730
    %4145 = vmatprep.subr.bf16.mxu0 %v3739
    %4146 = vmatpush1.bf16.msra.mxu0 %v3738
    %4147 = vmatprep.subr.bf16.mxu0 %v3747
    %4148 = vmatpush1.bf16.msra.mxu0 %v3746
    %4149 = vmatprep.subr.bf16.mxu0 %v3755
    %4150 = vmatpush1.bf16.msra.mxu0 %v3754
    %4151 = vmatprep.subr.bf16.mxu0 %v3763
    %4152 = vmatpush1.bf16.msra.mxu0 %v3762
    %4153 = vmatprep.subr.bf16.mxu0 %v3771
    %4154 = vmatpush1.bf16.msra.mxu0 %v3770
    %4155 = vmatprep.subr.bf16.mxu0 %v3779
    %4156 = vmatpush1.bf16.msra.mxu0 %v3778
    %4157 = vmatprep.subr.bf16.mxu0 %v3787
    %4158 = vmatpush1.bf16.msra.mxu0 %v3786
    %4159 = vmatprep.subr.bf16.mxu0 %v3795
    %4160 = vmatpush1.bf16.msra.mxu0 %v3794
    %4161 = vmatprep.subr.bf16.mxu0 %v3803
    %4162 = vmatpush1.bf16.msra.mxu0 %v3802
    %4163 = vmatprep.subr.bf16.mxu0 %v3811
    %4164 = vmatpush1.bf16.msra.mxu0 %v3810
    %4165 = vmatprep.subr.bf16.mxu0 %v3819
    %4166 = vmatpush1.bf16.msra.mxu0 %v3818
    %4167 = vmatprep.subr.bf16.mxu0 %v3827
    %4168 = vmatpush1.bf16.msra.mxu0 %v3826
    %4169 = vmatprep.subr.bf16.mxu0 %v3835
    %4170 = vmatpush1.bf16.msra.mxu0 %v3834
    %4171 = vmatprep.mubr.bf16.mxu0 %v2519
    %4172 = vmatmul.mubr.bf16.gmra.mrb[0].mxu0 %v2518
    %v4173 = vpop.f32.mrb[0].mxu0
    %v4174 = vadd.f32 %v4133, %v4173
    %v4175 = vpop.f32.mrb[0].mxu0
    %v4176 = vadd.f32 %v4135, %v4175
    %v4177 = vpop.f32.mrb[0].mxu0
    %v4178 = vpop.f32.mrb[0].mxu0
    %4179 = vdwg.mxu0
    %4180 = vmatprep.subr.bf16.mxu0 %v3589
    %4181 = vmatpush1.bf16.msra.mxu0 %v3588
    %4182 = vmatprep.subr.bf16.mxu0 %v3597
    %4183 = vmatpush1.bf16.msra.mxu0 %v3596
    %4184 = vmatprep.subr.bf16.mxu0 %v3605
    %4185 = vmatpush1.bf16.msra.mxu0 %v3604
    %4186 = vmatprep.subr.bf16.mxu0 %v3613
    %4187 = vmatpush1.bf16.msra.mxu0 %v3612
    %4188 = vmatprep.subr.bf16.mxu0 %v3621
    %4189 = vmatpush1.bf16.msra.mxu0 %v3620
    %4190 = vmatprep.subr.bf16.mxu0 %v3629
    %4191 = vmatpush1.bf16.msra.mxu0 %v3628
    %4192 = vmatprep.subr.bf16.mxu0 %v3637
    %4193 = vmatpush1.bf16.msra.mxu0 %v3636
    %4194 = vmatprep.subr.bf16.mxu0 %v3645
    %4195 = vmatpush1.bf16.msra.mxu0 %v3644
    %4196 = vmatprep.subr.bf16.mxu0 %v3653
    %4197 = vmatpush1.bf16.msra.mxu0 %v3652
    %4198 = vmatprep.subr.bf16.mxu0 %v3661
    %4199 = vmatpush1.bf16.msra.mxu0 %v3660
    %4200 = vmatprep.subr.bf16.mxu0 %v3669
    %4201 = vmatpush1.bf16.msra.mxu0 %v3668
    %4202 = vmatprep.subr.bf16.mxu0 %v3677
    %4203 = vmatpush1.bf16.msra.mxu0 %v3676
    %4204 = vmatprep.subr.bf16.mxu0 %v3685
    %4205 = vmatpush1.bf16.msra.mxu0 %v3684
    %4206 = vmatprep.subr.bf16.mxu0 %v3693
    %4207 = vmatpush1.bf16.msra.mxu0 %v3692
    %4208 = vmatprep.subr.bf16.mxu0 %v3701
    %4209 = vmatpush1.bf16.msra.mxu0 %v3700
    %4210 = vmatprep.subr.bf16.mxu0 %v3709
    %4211 = vmatpush1.bf16.msra.mxu0 %v3708
    %4212 = vmatprep.mubr.bf16.mxu0 %v2517
    %4213 = vmatmul.mubr.bf16.gmra.mrb[0].mxu0 %v2516
    %v4214 = vpop.f32.mrb[0].mxu0
    %v4215 = vadd.f32 %v2789, %v4214
    %v4216 = vpop.f32.mrb[0].mxu0
    %v4217 = vadd.f32 %v2793, %v4216
    %v4218 = vpop.f32.mrb[0].mxu0
    %v4219 = vpop.f32.mrb[0].mxu0
    %4220 = vdwg.mxu0
    %4221 = vmatprep.subr.bf16.mxu0 %v3717
    %4222 = vmatpush1.bf16.msra.mxu0 %v3716
    %4223 = vmatprep.subr.bf16.mxu0 %v3725
    %4224 = vmatpush1.bf16.msra.mxu0 %v3724
    %4225 = vmatprep.subr.bf16.mxu0 %v3733
    %4226 = vmatpush1.bf16.msra.mxu0 %v3732
    %4227 = vmatprep.subr.bf16.mxu0 %v3741
    %4228 = vmatpush1.bf16.msra.mxu0 %v3740
    %4229 = vmatprep.subr.bf16.mxu0 %v3749
    %4230 = vmatpush1.bf16.msra.mxu0 %v3748
    %4231 = vmatprep.subr.bf16.mxu0 %v3757
    %4232 = vmatpush1.bf16.msra.mxu0 %v3756
    %4233 = vmatprep.subr.bf16.mxu0 %v3765
    %4234 = vmatpush1.bf16.msra.mxu0 %v3764
    %4235 = vmatprep.subr.bf16.mxu0 %v3773
    %4236 = vmatpush1.bf16.msra.mxu0 %v3772
    %4237 = vmatprep.subr.bf16.mxu0 %v3781
    %4238 = vmatpush1.bf16.msra.mxu0 %v3780
    %4239 = vmatprep.subr.bf16.mxu0 %v3789
    %4240 = vmatpush1.bf16.msra.mxu0 %v3788
    %4241 = vmatprep.subr.bf16.mxu0 %v3797
    %4242 = vmatpush1.bf16.msra.mxu0 %v3796
    %4243 = vmatprep.subr.bf16.mxu0 %v3805
    %4244 = vmatpush1.bf16.msra.mxu0 %v3804
    %4245 = vmatprep.subr.bf16.mxu0 %v3813
    %4246 = vmatpush1.bf16.msra.mxu0 %v3812
    %4247 = vmatprep.subr.bf16.mxu0 %v3821
    %4248 = vmatpush1.bf16.msra.mxu0 %v3820
    %4249 = vmatprep.subr.bf16.mxu0 %v3829
    %4250 = vmatpush1.bf16.msra.mxu0 %v3828
    %4251 = vmatprep.subr.bf16.mxu0 %v3837
    %4252 = vmatpush1.bf16.msra.mxu0 %v3836
    %4253 = vmatprep.mubr.bf16.mxu0 %v2519
    %4254 = vmatmul.mubr.bf16.gmra.mrb[0].mxu0 %v2518
    %v4255 = vpop.f32.mrb[0].mxu0
    %v4256 = vadd.f32 %v4215, %v4255
    %v4257 = vpop.f32.mrb[0].mxu0
    %v4258 = vadd.f32 %v4217, %v4257
    %v4259 = vpop.f32.mrb[0].mxu0
    %v4260 = vpop.f32.mrb[0].mxu0
    %4261 = vdwg.mxu0
    %4262 = vmatprep.subr.bf16.mxu0 %v3591
    %4263 = vmatpush1.bf16.msra.mxu0 %v3590
    %4264 = vmatprep.subr.bf16.mxu0 %v3599
    %4265 = vmatpush1.bf16.msra.mxu0 %v3598
    %4266 = vmatprep.subr.bf16.mxu0 %v3607
    %4267 = vmatpush1.bf16.msra.mxu0 %v3606
    %4268 = vmatprep.subr.bf16.mxu0 %v3615
    %4269 = vmatpush1.bf16.msra.mxu0 %v3614
    %4270 = vmatprep.subr.bf16.mxu0 %v3623
    %4271 = vmatpush1.bf16.msra.mxu0 %v3622
    %4272 = vmatprep.subr.bf16.mxu0 %v3631
    %4273 = vmatpush1.bf16.msra.mxu0 %v3630
    %4274 = vmatprep.subr.bf16.mxu0 %v3639
    %4275 = vmatpush1.bf16.msra.mxu0 %v3638
    %4276 = vmatprep.subr.bf16.mxu0 %v3647
    %4277 = vmatpush1.bf16.msra.mxu0 %v3646
    %4278 = vmatprep.subr.bf16.mxu0 %v3655
    %4279 = vmatpush1.bf16.msra.mxu0 %v3654
    %4280 = vmatprep.subr.bf16.mxu0 %v3663
    %4281 = vmatpush1.bf16.msra.mxu0 %v3662
    %4282 = vmatprep.subr.bf16.mxu0 %v3671
    %4283 = vmatpush1.bf16.msra.mxu0 %v3670
    %4284 = vmatprep.subr.bf16.mxu0 %v3679
    %4285 = vmatpush1.bf16.msra.mxu0 %v3678
    %4286 = vmatprep.subr.bf16.mxu0 %v3687
    %4287 = vmatpush1.bf16.msra.mxu0 %v3686
    %4288 = vmatprep.subr.bf16.mxu0 %v3695
    %4289 = vmatpush1.bf16.msra.mxu0 %v3694
    %4290 = vmatprep.subr.bf16.mxu0 %v3703
    %4291 = vmatpush1.bf16.msra.mxu0 %v3702
    %4292 = vmatprep.subr.bf16.mxu0 %v3711
    %4293 = vmatpush1.bf16.msra.mxu0 %v3710
    %4294 = vmatprep.mubr.bf16.mxu0 %v2517
    %4295 = vmatmul.mubr.bf16.gmra.mrb[0].mxu0 %v2516
    %v4296 = vpop.f32.mrb[0].mxu0
    %v4297 = vadd.f32 %v2797, %v4296
    %v4298 = vpop.f32.mrb[0].mxu0
    %v4299 = vadd.f32 %v2801, %v4298
    %v4300 = vpop.f32.mrb[0].mxu0
    %v4301 = vpop.f32.mrb[0].mxu0
    %4302 = vdwg.mxu0
    %4303 = vmatprep.subr.bf16.mxu0 %v3719
    %4304 = vmatpush1.bf16.msra.mxu0 %v3718
    %4305 = vmatprep.subr.bf16.mxu0 %v3727
    %4306 = vmatpush1.bf16.msra.mxu0 %v3726
    %4307 = vmatprep.subr.bf16.mxu0 %v3735
    %4308 = vmatpush1.bf16.msra.mxu0 %v3734
    %4309 = vmatprep.subr.bf16.mxu0 %v3743
    %4310 = vmatpush1.bf16.msra.mxu0 %v3742
    %4311 = vmatprep.subr.bf16.mxu0 %v3751
    %4312 = vmatpush1.bf16.msra.mxu0 %v3750
    %4313 = vmatprep.subr.bf16.mxu0 %v3759
    %4314 = vmatpush1.bf16.msra.mxu0 %v3758
    %4315 = vmatprep.subr.bf16.mxu0 %v3767
    %4316 = vmatpush1.bf16.msra.mxu0 %v3766
    %4317 = vmatprep.subr.bf16.mxu0 %v3775
    %4318 = vmatpush1.bf16.msra.mxu0 %v3774
    %4319 = vmatprep.subr.bf16.mxu0 %v3783
    %4320 = vmatpush1.bf16.msra.mxu0 %v3782
    %4321 = vmatprep.subr.bf16.mxu0 %v3791
    %4322 = vmatpush1.bf16.msra.mxu0 %v3790
    %4323 = vmatprep.subr.bf16.mxu0 %v3799
    %4324 = vmatpush1.bf16.msra.mxu0 %v3798
    %4325 = vmatprep.subr.bf16.mxu0 %v3807
    %4326 = vmatpush1.bf16.msra.mxu0 %v3806
    %4327 = vmatprep.subr.bf16.mxu0 %v3815
    %4328 = vmatpush1.bf16.msra.mxu0 %v3814
    %4329 = vmatprep.subr.bf16.mxu0 %v3823
    %4330 = vmatpush1.bf16.msra.mxu0 %v3822
    %4331 = vmatprep.subr.bf16.mxu0 %v3831
    %4332 = vmatpush1.bf16.msra.mxu0 %v3830
    %4333 = vmatprep.subr.bf16.mxu0 %v3839
    %4334 = vmatpush1.bf16.msra.mxu0 %v3838
    %4335 = vmatprep.mubr.bf16.mxu0 %v2519
    %4336 = vmatmul.mubr.bf16.gmra.mrb[0].mxu0 %v2518
    %v4337 = vpop.f32.mrb[0].mxu0
    %v4338 = vadd.f32 %v4297, %v4337
    %v4339 = vpop.f32.mrb[0].mxu0
    %v4340 = vadd.f32 %v4299, %v4339
    %v4341 = vpop.f32.mrb[0].mxu0
    %v4342 = vpop.f32.mrb[0].mxu0
    %4343 = vdwg.mxu0
    %4344 = vmatprep.subr.bf16.mxu0 %v3593
    %4345 = vmatpush1.bf16.msra.mxu0 %v3592
    %4346 = vmatprep.subr.bf16.mxu0 %v3601
    %4347 = vmatpush1.bf16.msra.mxu0 %v3600
    %4348 = vmatprep.subr.bf16.mxu0 %v3609
    %4349 = vmatpush1.bf16.msra.mxu0 %v3608
    %4350 = vmatprep.subr.bf16.mxu0 %v3617
    %4351 = vmatpush1.bf16.msra.mxu0 %v3616
    %4352 = vmatprep.subr.bf16.mxu0 %v3625
    %4353 = vmatpush1.bf16.msra.mxu0 %v3624
    %4354 = vmatprep.subr.bf16.mxu0 %v3633
    %4355 = vmatpush1.bf16.msra.mxu0 %v3632
    %4356 = vmatprep.subr.bf16.mxu0 %v3641
    %4357 = vmatpush1.bf16.msra.mxu0 %v3640
    %4358 = vmatprep.subr.bf16.mxu0 %v3649
    %4359 = vmatpush1.bf16.msra.mxu0 %v3648
    %4360 = vmatprep.subr.bf16.mxu0 %v3657
    %4361 = vmatpush1.bf16.msra.mxu0 %v3656
    %4362 = vmatprep.subr.bf16.mxu0 %v3665
    %4363 = vmatpush1.bf16.msra.mxu0 %v3664
    %4364 = vmatprep.subr.bf16.mxu0 %v3673
    %4365 = vmatpush1.bf16.msra.mxu0 %v3672
    %4366 = vmatprep.subr.bf16.mxu0 %v3681
    %4367 = vmatpush1.bf16.msra.mxu0 %v3680
    %4368 = vmatprep.subr.bf16.mxu0 %v3689
    %4369 = vmatpush1.bf16.msra.mxu0 %v3688
    %4370 = vmatprep.subr.bf16.mxu0 %v3697
    %4371 = vmatpush1.bf16.msra.mxu0 %v3696
    %4372 = vmatprep.subr.bf16.mxu0 %v3705
    %4373 = vmatpush1.bf16.msra.mxu0 %v3704
    %4374 = vmatprep.subr.bf16.mxu0 %v3713
    %4375 = vmatpush1.bf16.msra.mxu0 %v3712
    %4376 = vmatprep.mubr.bf16.mxu0 %v2517
    %4377 = vmatmul.mubr.bf16.gmra.mrb[0].mxu0 %v2516
    %v4378 = vpop.f32.mrb[0].mxu0
    %v4379 = vadd.f32 %v2805, %v4378
    %v4380 = vpop.f32.mrb[0].mxu0
    %v4381 = vadd.f32 %v2809, %v4380
    %v4382 = vpop.f32.mrb[0].mxu0
    %v4383 = vpop.f32.mrb[0].mxu0
    %4384 = vdwg.mxu0
    %4385 = vmatprep.subr.bf16.mxu0 %v3721
    %4386 = vmatpush1.bf16.msra.mxu0 %v3720
    %4387 = vmatprep.subr.bf16.mxu0 %v3729
    %4388 = vmatpush1.bf16.msra.mxu0 %v3728
    %4389 = vmatprep.subr.bf16.mxu0 %v3737
    %4390 = vmatpush1.bf16.msra.mxu0 %v3736
    %4391 = vmatprep.subr.bf16.mxu0 %v3745
    %4392 = vmatpush1.bf16.msra.mxu0 %v3744
    %4393 = vmatprep.subr.bf16.mxu0 %v3753
    %4394 = vmatpush1.bf16.msra.mxu0 %v3752
    %4395 = vmatprep.subr.bf16.mxu0 %v3761
    %4396 = vmatpush1.bf16.msra.mxu0 %v3760
    %4397 = vmatprep.subr.bf16.mxu0 %v3769
    %4398 = vmatpush1.bf16.msra.mxu0 %v3768
    %4399 = vmatprep.subr.bf16.mxu0 %v3777
    %4400 = vmatpush1.bf16.msra.mxu0 %v3776
    %4401 = vmatprep.subr.bf16.mxu0 %v3785
    %4402 = vmatpush1.bf16.msra.mxu0 %v3784
    %4403 = vmatprep.subr.bf16.mxu0 %v3793
    %4404 = vmatpush1.bf16.msra.mxu0 %v3792
    %4405 = vmatprep.subr.bf16.mxu0 %v3801
    %4406 = vmatpush1.bf16.msra.mxu0 %v3800
    %4407 = vmatprep.subr.bf16.mxu0 %v3809
    %4408 = vmatpush1.bf16.msra.mxu0 %v3808
    %4409 = vmatprep.subr.bf16.mxu0 %v3817
    %4410 = vmatpush1.bf16.msra.mxu0 %v3816
    %4411 = vmatprep.subr.bf16.mxu0 %v3825
    %4412 = vmatpush1.bf16.msra.mxu0 %v3824
    %4413 = vmatprep.subr.bf16.mxu0 %v3833
    %4414 = vmatpush1.bf16.msra.mxu0 %v3832
    %4415 = vmatprep.subr.bf16.mxu0 %v3841
    %4416 = vmatpush1.bf16.msra.mxu0 %v3840
    %4417 = vmatprep.mubr.bf16.mxu0 %v2519
    %4418 = vmatmul.mubr.bf16.gmra.mrb[0].mxu0 %v2518
    %v4419 = vpop.f32.mrb[0].mxu0
    %v4420 = vadd.f32 %v4379, %v4419
    %v4421 = vpop.f32.mrb[0].mxu0
    %v4422 = vadd.f32 %v4381, %v4421
    %v4423 = vpop.f32.mrb[0].mxu0
    %v4424 = vpop.f32.mrb[0].mxu0
    %4425 = vdwg.mxu0
    %v4426 = vsub.f32 0.0, %v4174
    %v4427 = vsub.f32 0.0, %v4176
    %v4428 = vsub.f32 0.0, %v4256
    %v4429 = vsub.f32 0.0, %v4258
    %v4430 = vsub.f32 0.0, %v4338
    %v4431 = vsub.f32 0.0, %v4340
    %v4432 = vsub.f32 0.0, %v4420
    %v4433 = vsub.f32 0.0, %v4422
    %v4434 = vmul.f32 %v4426, 1.442695
    %v4435 = vpow.pop %v4434
    %v4436 = vmul.f32 %v4427, 1.442695
    %v4437 = vpow.pop %v4436
    %v4438 = vmul.f32 %v4428, 1.442695
    %v4439 = vpow.pop %v4438
    %v4440 = vmul.f32 %v4429, 1.442695
    %v4441 = vpow.pop %v4440
    %v4442 = vmul.f32 %v4430, 1.442695
    %v4443 = vpow.pop %v4442
    %v4444 = vmul.f32 %v4431, 1.442695
    %v4445 = vpow.pop %v4444
    %v4446 = vmul.f32 %v4432, 1.442695
    %v4447 = vpow.pop %v4446
    %v4448 = vmul.f32 %v4433, 1.442695
    %v4449 = vpow.pop %v4448
    %v4450 = vadd.f32 %v4435, 1.0
    %v4451 = vadd.f32 %v4437, 1.0
    %v4452 = vadd.f32 %v4439, 1.0
    %v4453 = vadd.f32 %v4441, 1.0
    %v4454 = vadd.f32 %v4443, 1.0
    %v4455 = vadd.f32 %v4445, 1.0
    %v4456 = vadd.f32 %v4447, 1.0
    %v4457 = vadd.f32 %v4449, 1.0
    %v4458 = vrcp.pop %v4450
    %v4459 = vrcp.pop %v4451
    %v4460 = vrcp.pop %v4452
    %v4461 = vrcp.pop %v4453
    %v4462 = vrcp.pop %v4454
    %v4463 = vrcp.pop %v4455
    %v4464 = vrcp.pop %v4456
    %v4465 = vrcp.pop %v4457
    %4466 = vst [vmem:[#allocation7] sm:$0xff] %v4458
    %4467 = vst [vmem:[#allocation7 + $0x8] sm:$0xff] %v4459
    %4468 = vst [vmem:[#allocation7 + $0x10] sm:$0xff] %v4460
    %4469 = vst [vmem:[#allocation7 + $0x18] sm:$0xff] %v4461
    %4470 = vst [vmem:[#allocation7 + $0x20] sm:$0xff] %v4462
    %4471 = vst [vmem:[#allocation7 + $0x28] sm:$0xff] %v4463
    %4472 = vst [vmem:[#allocation7 + $0x30] sm:$0xff] %v4464
    %4473 = vst [vmem:[#allocation7 + $0x38] sm:$0xff] %v4465
    // Predicated region
    $region46: #{tpu_custom_call.1} parent=1 // pred_check
      _
    $region47: #{tpu_custom_call.1} parent=1 // pred_check_branch
      %4475 = sbr.rel (0) target = $region49
    $region48: #{tpu_custom_call.1} parent=1 // pred_region
      %s4477 = ssub.s32 1024, 1024
      %4478 = vsyncadd [#allocation4], %s4477
      %s4480 = sshll.u32 [#allocation7], 4
      %s4481 = int_to_ptr.vmem [resolvable:$true] %s4480
      %4483 = dma.vmem_to_hbm [thread:$0]  %s4481, 1024, %s9, [#allocation4]
    $region49: #{tpu_custom_call.1} parent=1 // pred_fallthru
      _
    // Predicated region
    $region50: #{tpu_custom_call.1} parent=1 // pred_check
      _
    $region51: #{tpu_custom_call.1} parent=1 // pred_check_branch
      %4485 = sbr.rel (0) target = $region53
    $region52: #{tpu_custom_call.1} parent=1 // pred_region
      %4486 = dma.done [#allocation4], 1024
    $region53: #{tpu_custom_call.1} parent=1 // pred_fallthru
      _
    %4487 = vsyncpa [#allocation3], 1
    %4488 = vsyncpa [#allocation6], 1
    %4489 = vsyncpa [#allocation4], 1

</llo_original>
